<compile_context>
chip_gen: v7x
topology: tpu7x:2x2x1
jax: 0.10.0
libtpu: 0.0.40
codegen_flags: <defaults>
</compile_context>

<pallas_src>
import jax
import jax.numpy as jnp
from jax import lax
from jax.experimental import pallas as pl
from jax.experimental.pallas import tpu as pltpu

HIDDEN = 32      # hidden_size (512 in the original; small for the demo)
VOCAB = 64       # output_size
MAX_LEN = 8      # max_length (35 in the original; small for the demo)

LANE = 128
V_PAD = ((VOCAB + LANE - 1) // LANE) * LANE        # vocab dim padded to 128 lanes
L_PAD = ((MAX_LEN + LANE - 1) // LANE) * LANE      # attention dim padded to 128 lanes
G_PAD = ((3 * HIDDEN + LANE - 1) // LANE) * LANE   # fused GRU gate dim (96 -> 128)
NEG_INF = -1e30                                    # bias for padded softmax lanes


def attn_decoder_kernel(h0_ref,                      # (1, H)        initial hidden
                        enc_ref,                     # (L_PAD, H)    encoder outputs (bf16, zero-padded rows)
                        pre_attn_ref,                # (steps, L_PAD) emb @ w_attn_e (precomputed)
                        pre_comb_ref,                # (steps, H)     emb @ w_comb_e (precomputed)
                        wa_h_ref, ba_ref,            # (H, L_PAD) bf16, (1, L_PAD) f32
                        wc_a_ref, bc_ref,            # (H, H) bf16,     (1, H) f32
                        wih_ref, bih_ref,            # (H, G_PAD) bf16, (1, G_PAD) f32   gates r,z,n fused
                        whh_ref, bhh_ref,            # (H, G_PAD) bf16, (1, G_PAD) f32
                        wo_ref, bo_ref,              # (H, V_PAD) bf16, (1, V_PAD) f32
                        logp_ref,                    # out: (steps, V_PAD)
                        hfin_ref,                    # out: (1, H)
                        attn_ref):                   # out: (steps, L_PAD)
    steps = logp_ref.shape[0]
    H = HIDDEN

    # Tiny weights: load once, resident for the whole decode loop.
    enc = enc_ref[...]
    wa_h, ba = wa_h_ref[...], ba_ref[...]
    wc_a, bc = wc_a_ref[...], bc_ref[...]
    wih, bih = wih_ref[...], bih_ref[...]
    whh, bhh = whh_ref[...], bhh_ref[...]
    wo, bo = wo_ref[...], bo_ref[...]

    def step_fn(t, h):
        h_bf = h.astype(jnp.bfloat16)

        # attention_weights = softmax(Linear_{2H->L}([embedded ; hidden]))
        # (embedded half precomputed in the wrapper; padded lanes carry -1e30 bias)
        attn_logits = (pre_attn_ref[pl.ds(t, 1), :]
                       + jnp.dot(h_bf, wa_h, preferred_element_type=jnp.float32)
                       + ba)                                           # (1, L_PAD)
        m = jnp.max(attn_logits, axis=1, keepdims=True)
        e = jnp.exp(attn_logits - m)                                   # pad lanes -> 0
        attn_w = e / jnp.sum(e, axis=1, keepdims=True)

        # attention_applied = attn_w @ encoder_outputs (padded enc rows are zero)
        attn_applied = jnp.dot(attn_w.astype(jnp.bfloat16), enc,
                               preferred_element_type=jnp.float32)     # (1, H)

        # output = relu(Linear_{2H->H}([embedded ; attention_applied]))
        x = (pre_comb_ref[pl.ds(t, 1), :]
             + jnp.dot(attn_applied.astype(jnp.bfloat16), wc_a,
                       preferred_element_type=jnp.float32)
             + bc)
        x = jnp.maximum(x, 0.0)                                        # (1, H)

        # Single-step GRU, PyTorch gate order (r, z, n), fused gate matmuls.
        gi = jnp.dot(x.astype(jnp.bfloat16), wih,
                     preferred_element_type=jnp.float32) + bih         # (1, G_PAD)
        gh = jnp.dot(h_bf, whh,
                     preferred_element_type=jnp.float32) + bhh         # (1, G_PAD)
        r = jax.nn.sigmoid(gi[:, 0:H] + gh[:, 0:H])
        z = jax.nn.sigmoid(gi[:, H:2 * H] + gh[:, H:2 * H])
        n = jnp.tanh(gi[:, 2 * H:3 * H] + r * gh[:, 2 * H:3 * H])
        h_new = (1.0 - z) * n + z * h                                  # (1, H)

        # output = log_softmax(Linear_{H->V}(h_new)); padded vocab lanes have
        # bias NEG_INF so exp() contributes 0 there and real lanes are exact.
        logits = jnp.dot(h_new.astype(jnp.bfloat16), wo,
                         preferred_element_type=jnp.float32) + bo      # (1, V_PAD)
        mo = jnp.max(logits, axis=1, keepdims=True)
        lse = mo + jnp.log(jnp.sum(jnp.exp(logits - mo), axis=1, keepdims=True))

        logp_ref[pl.ds(t, 1), :] = logits - lse
        attn_ref[pl.ds(t, 1), :] = attn_w
        return h_new

    h_final = lax.fori_loop(0, steps, step_fn, h0_ref[...], unroll=True)
    hfin_ref[...] = h_final


@jax.jit
def attn_decoder_decode(tokens, hidden, encoder_outputs, params):
    """Run `steps` teacher-forced decoder steps in one fused pallas_call.

    tokens: (steps,) int32; hidden: (1,1,H); encoder_outputs: (MAX_LEN, H).
    Returns (log_probs (steps,V), hidden (1,1,H), attn_weights (steps,MAX_LEN)).
    """
    steps = tokens.shape[0]
    tokens = tokens.astype(jnp.int32)
    h0 = hidden.reshape(1, HIDDEN).astype(jnp.float32)

    enc_pad = jnp.zeros((L_PAD, HIDDEN), jnp.bfloat16).at[:MAX_LEN].set(
        encoder_outputs.astype(jnp.bfloat16))

    # Teacher-forced tokens are known up front: gather + the embedded-input
    # halves of the two 2H-input Linears are hoisted out of the recurrence as
    # batched (M=steps) XLA matmuls.
    emb_all = params["embedding"][tokens]                  # (steps, H)
    # TODO(synk): nn.Dropout(p=0.1) on `embedded` treated as identity (eval
    # mode); training-mode dropout would need pltpu.prng_seed/prng_random_bits.
    pre_attn = emb_all @ params["w_attn_e"]                # (steps, L_PAD), pad lanes 0
    pre_comb = emb_all @ params["w_comb_e"]                # (steps, H)

    vmem = pl.BlockSpec(memory_space=pltpu.MemorySpace.VMEM)
    out_shapes = (
        jax.ShapeDtypeStruct((steps, V_PAD), jnp.float32),
        jax.ShapeDtypeStruct((1, HIDDEN), jnp.float32),
        jax.ShapeDtypeStruct((steps, L_PAD), jnp.float32),
    )

    logp_all, h_fin, attn_all = pl.pallas_call(
        attn_decoder_kernel,
        out_shape=out_shapes,
        in_specs=[vmem] * 14,
        out_specs=(vmem, vmem, vmem),
    )(h0, enc_pad, pre_attn, pre_comb,
      params["w_attn_h"], params["b_attn"],
      params["w_comb_a"], params["b_comb"],
      params["w_ih"], params["b_ih"],
      params["w_hh"], params["b_hh"],
      params["w_out"], params["b_out"])

    logp = logp_all[:, :VOCAB]           # slice off the lane padding
    attn = attn_all[:, :MAX_LEN]
    return logp, h_fin.reshape(1, 1, HIDDEN), attn


def attn_decoder_forward(token_id, hidden, encoder_outputs, params):
    """Single step, matching AttnDecoderRNN.forward: ((1,V), (1,1,H), (1,L))."""
    tokens = jnp.asarray(token_id, jnp.int32).reshape(1)
    logp, h_new, attn = attn_decoder_decode(tokens, hidden, encoder_outputs, params)
    return logp, h_new, attn


def reference_decode(tokens, hidden, encoder_outputs, params):
    """Pure-JAX reference with the same bf16-at-matmul convention."""
    H = HIDDEN
    f32 = jnp.float32
    h = hidden.reshape(1, H).astype(f32)
    enc_bf = jnp.zeros((L_PAD, H), jnp.bfloat16).at[:MAX_LEN].set(
        encoder_outputs.astype(jnp.bfloat16))
    emb_all = params["embedding"][tokens]
    pre_attn = emb_all @ params["w_attn_e"]
    pre_comb = emb_all @ params["w_comb_e"]
    logps, attns = [], []
    for t in range(tokens.shape[0]):
        h_bf = h.astype(jnp.bfloat16)
        logits = (pre_attn[t:t + 1]
                  + jnp.dot(h_bf, params["w_attn_h"], preferred_element_type=f32)
                  + params["b_attn"])
        attn_w = jax.nn.softmax(logits, axis=1)
        applied = jnp.dot(attn_w.astype(jnp.bfloat16), enc_bf, preferred_element_type=f32)
        x = (pre_comb[t:t + 1]
             + jnp.dot(applied.astype(jnp.bfloat16), params["w_comb_a"],
                       preferred_element_type=f32)
             + params["b_comb"])
        x = jnp.maximum(x, 0.0)
        gi = jnp.dot(x.astype(jnp.bfloat16), params["w_ih"],
                     preferred_element_type=f32) + params["b_ih"]
        gh = jnp.dot(h_bf, params["w_hh"],
                     preferred_element_type=f32) + params["b_hh"]
        r = jax.nn.sigmoid(gi[:, :H] + gh[:, :H])
        z = jax.nn.sigmoid(gi[:, H:2 * H] + gh[:, H:2 * H])
        n = jnp.tanh(gi[:, 2 * H:3 * H] + r * gh[:, 2 * H:3 * H])
        h = (1.0 - z) * n + z * h
        out = jnp.dot(h.astype(jnp.bfloat16), params["w_out"],
                      preferred_element_type=f32) + params["b_out"]
        logps.append(jax.nn.log_softmax(out[:, :VOCAB], axis=1))
        attns.append(attn_w[:, :MAX_LEN])
    return jnp.concatenate(logps, 0), h.reshape(1, 1, H), jnp.concatenate(attns, 0)


def init_params(key):
    H, V, L = HIDDEN, VOCAB, MAX_LEN
    ks = jax.random.split(key, 13)
    scale = 0.1

    def u(k, shape):
        return jax.random.uniform(k, shape, jnp.float32, -scale, scale)

    def pad_cols(w, n):                 # zero-pad extra output columns
        return jnp.zeros((w.shape[0], n), jnp.float32).at[:, :w.shape[1]].set(w)

    def pad_bias_neg(b, n):             # padded lanes get NEG_INF -> softmax weight 0
        return jnp.full((1, n), NEG_INF, jnp.float32).at[:, :b.shape[1]].set(b)

    def pad_bias_zero(b, n):
        return jnp.zeros((1, n), jnp.float32).at[:, :b.shape[1]].set(b)

    bf16 = jnp.bfloat16
    # Weights stored (in, out) = PyTorch (out, in) transposed. The 2H-input
    # Linears are split into embedded-/hidden- halves (the embedded halves stay
    # f32 because they are consumed by the wrapper-side precompute). The GRU
    # weights are gate-fused on the lane axis: (H, 3H) in (r, z, n) order,
    # lane-padded to (H, G_PAD).
    return {
        "embedding": u(ks[0], (V, H)),                                      # nn.Embedding(V, H)
        "w_attn_e": pad_cols(u(ks[1], (H, L)), L_PAD),                      # nn.Linear(2H, L) emb half (f32)
        "w_attn_h": pad_cols(u(ks[2], (H, L)), L_PAD).astype(bf16),         # nn.Linear(2H, L) hidden half
        "b_attn":   pad_bias_neg(u(ks[3], (1, L)), L_PAD),
        "w_comb_e": u(ks[4], (H, H)),                                       # nn.Linear(2H, H) emb half (f32)
        "w_comb_a": u(ks[5], (H, H)).astype(bf16),                          # nn.Linear(2H, H) attn half
        "b_comb":   u(ks[6], (1, H)),
        "w_ih": pad_cols(u(ks[7], (H, 3 * H)), G_PAD).astype(bf16),         # GRU weight_ih_l0 fused (r,z,n)
        "b_ih": pad_bias_zero(u(ks[8], (1, 3 * H)), G_PAD),
        "w_hh": pad_cols(u(ks[9], (H, 3 * H)), G_PAD).astype(bf16),         # GRU weight_hh_l0 fused (r,z,n)
        "b_hh": pad_bias_zero(u(ks[10], (1, 3 * H)), G_PAD),
        "w_out": pad_cols(u(ks[11], (H, V)), V_PAD).astype(bf16),           # nn.Linear(H, V)
        "b_out": pad_bias_neg(u(ks[12], (1, V)), V_PAD),
    }


if __name__ == "__main__":
    key = jax.random.PRNGKey(0)
    pkey, ekey, tkey = jax.random.split(key, 3)

    params = init_params(pkey)
    encoder_outputs = jax.random.normal(ekey, (MAX_LEN, HIDDEN), jnp.float32)
    hidden0 = jnp.zeros((1, 1, HIDDEN), jnp.float32)          # init_hidden()

    # Fused multi-step decode: all steps in one pallas_call, one kernel launch.
    steps = 6
    tokens = jax.random.randint(tkey, (steps,), 0, VOCAB, jnp.int32)
    logp_seq, h_final, attn_seq = attn_decoder_decode(
        tokens, hidden0, encoder_outputs, params)

    # Single-step call matching AttnDecoderRNN.forward's signature/shapes.
    logp1, h1, attn1 = attn_decoder_forward(
        jnp.int32(5), hidden0, encoder_outputs, params)

    jax.block_until_ready((logp_seq, h_final, attn_seq, logp1, h1, attn1))

    assert logp_seq.shape == (steps, VOCAB)
    assert h_final.shape == (1, 1, HIDDEN)
    assert attn_seq.shape == (steps, MAX_LEN)
    assert logp1.shape == (1, VOCAB)
    assert h1.shape == (1, 1, HIDDEN)
    assert attn1.shape == (1, MAX_LEN)

    # Numerical check against a pure-JAX reference (same bf16 matmul convention).
    ref_logp, ref_h, ref_attn = reference_decode(tokens, hidden0, encoder_outputs, params)
    assert bool(jnp.allclose(logp_seq, ref_logp, atol=2e-2, rtol=2e-2))
    assert bool(jnp.allclose(attn_seq, ref_attn, atol=2e-2, rtol=2e-2))
    assert bool(jnp.allclose(h_final, ref_h, atol=2e-2, rtol=2e-2))

    print("KERNEL_OK")
</pallas_src>

<mosaic_0001>
module attributes {stable_mosaic.version = 11 : i64} {
  func.func @attn_decoder_kernel(%arg0: memref<1x32xf32, #tpu.memory_space<vmem>>, %arg1: memref<128x32xbf16, #tpu.memory_space<vmem>>, %arg2: memref<6x128xf32, #tpu.memory_space<vmem>>, %arg3: memref<6x32xf32, #tpu.memory_space<vmem>>, %arg4: memref<32x128xbf16, #tpu.memory_space<vmem>>, %arg5: memref<1x128xf32, #tpu.memory_space<vmem>>, %arg6: memref<32x32xbf16, #tpu.memory_space<vmem>>, %arg7: memref<1x32xf32, #tpu.memory_space<vmem>>, %arg8: memref<32x128xbf16, #tpu.memory_space<vmem>>, %arg9: memref<1x128xf32, #tpu.memory_space<vmem>>, %arg10: memref<32x128xbf16, #tpu.memory_space<vmem>>, %arg11: memref<1x128xf32, #tpu.memory_space<vmem>>, %arg12: memref<32x128xbf16, #tpu.memory_space<vmem>>, %arg13: memref<1x128xf32, #tpu.memory_space<vmem>>, %arg14: memref<6x128xf32, #tpu.memory_space<vmem>>, %arg15: memref<1x32xf32, #tpu.memory_space<vmem>>, %arg16: memref<6x128xf32, #tpu.memory_space<vmem>>) attributes {dimension_semantics = [], scalar_prefetch = 0 : i64, scratch_operands = 0 : i64, tpu.core_type = #tpu.core_type<tc>} {
    %c0 = arith.constant 0 : index
    %c0_0 = arith.constant 0 : index
    %0 = vector.load %arg1[%c0, %c0_0] : memref<128x32xbf16, #tpu.memory_space<vmem>>, vector<128x32xbf16>
    %c0_1 = arith.constant 0 : index
    %c0_2 = arith.constant 0 : index
    %1 = vector.load %arg4[%c0_1, %c0_2] : memref<32x128xbf16, #tpu.memory_space<vmem>>, vector<32x128xbf16>
    %c0_3 = arith.constant 0 : index
    %c0_4 = arith.constant 0 : index
    %2 = vector.load %arg5[%c0_3, %c0_4] : memref<1x128xf32, #tpu.memory_space<vmem>>, vector<1x128xf32>
    %c0_5 = arith.constant 0 : index
    %c0_6 = arith.constant 0 : index
    %3 = vector.load %arg6[%c0_5, %c0_6] : memref<32x32xbf16, #tpu.memory_space<vmem>>, vector<32x32xbf16>
    %c0_7 = arith.constant 0 : index
    %c0_8 = arith.constant 0 : index
    %4 = vector.load %arg7[%c0_7, %c0_8] : memref<1x32xf32, #tpu.memory_space<vmem>>, vector<1x32xf32>
    %c0_9 = arith.constant 0 : index
    %c0_10 = arith.constant 0 : index
    %5 = vector.load %arg8[%c0_9, %c0_10] : memref<32x128xbf16, #tpu.memory_space<vmem>>, vector<32x128xbf16>
    %c0_11 = arith.constant 0 : index
    %c0_12 = arith.constant 0 : index
    %6 = vector.load %arg9[%c0_11, %c0_12] : memref<1x128xf32, #tpu.memory_space<vmem>>, vector<1x128xf32>
    %c0_13 = arith.constant 0 : index
    %c0_14 = arith.constant 0 : index
    %7 = vector.load %arg10[%c0_13, %c0_14] : memref<32x128xbf16, #tpu.memory_space<vmem>>, vector<32x128xbf16>
    %c0_15 = arith.constant 0 : index
    %c0_16 = arith.constant 0 : index
    %8 = vector.load %arg11[%c0_15, %c0_16] : memref<1x128xf32, #tpu.memory_space<vmem>>, vector<1x128xf32>
    %c0_17 = arith.constant 0 : index
    %c0_18 = arith.constant 0 : index
    %9 = vector.load %arg12[%c0_17, %c0_18] : memref<32x128xbf16, #tpu.memory_space<vmem>>, vector<32x128xbf16>
    %c0_19 = arith.constant 0 : index
    %c0_20 = arith.constant 0 : index
    %10 = vector.load %arg13[%c0_19, %c0_20] : memref<1x128xf32, #tpu.memory_space<vmem>>, vector<1x128xf32>
    %c0_21 = arith.constant 0 : index
    %c0_22 = arith.constant 0 : index
    %11 = vector.load %arg0[%c0_21, %c0_22] : memref<1x32xf32, #tpu.memory_space<vmem>>, vector<1x32xf32>
    %c0_i32 = arith.constant 0 : i32
    %12 = arith.truncf %11 : vector<1x32xf32> to vector<1x32xbf16>
    %13 = arith.index_cast %c0_i32 : i32 to index
    %c0_23 = arith.constant 0 : index
    %14 = vector.load %arg2[%13, %c0_23] : memref<6x128xf32, #tpu.memory_space<vmem>>, vector<1x128xf32>
    %cst = arith.constant dense<0.000000e+00> : vector<1x128xf32>
    %15 = tpu.matmul %12, %1, %cst {dimension_numbers = #tpu.dot_dimension_numbers<[1], [0], [0], [1], [0, 0, 1, 1], [], []>} : vector<1x32xbf16>, vector<32x128xbf16>, vector<1x128xf32> -> vector<1x128xf32>
    %16 = arith.addf %14, %15 : vector<1x128xf32>
    %17 = arith.addf %16, %2 : vector<1x128xf32>
    %cst_24 = arith.constant dense<0xFF800000> : vector<1xf32>
    %18 = vector.multi_reduction <maximumf>, %17, %cst_24 [1] : vector<1x128xf32> to vector<1xf32>
    %19 = vector.shape_cast %18 : vector<1xf32> to vector<1x1xf32>
    %20 = vector.broadcast %19 : vector<1x1xf32> to vector<1x128xf32>
    %21 = arith.subf %17, %20 : vector<1x128xf32>
    %22 = math.exp %21 : vector<1x128xf32>
    %cst_25 = arith.constant dense<0.000000e+00> : vector<1xf32>
    %23 = vector.multi_reduction <add>, %22, %cst_25 [1] : vector<1x128xf32> to vector<1xf32>
    %24 = vector.shape_cast %23 : vector<1xf32> to vector<1x1xf32>
    %25 = vector.broadcast %24 : vector<1x1xf32> to vector<1x128xf32>
    %26 = arith.divf %22, %25 : vector<1x128xf32>
    %27 = arith.truncf %26 : vector<1x128xf32> to vector<1x128xbf16>
    %cst_26 = arith.constant dense<0.000000e+00> : vector<1x32xf32>
    %28 = tpu.matmul %27, %0, %cst_26 {dimension_numbers = #tpu.dot_dimension_numbers<[1], [0], [0], [1], [0, 0, 1, 1], [], []>} : vector<1x128xbf16>, vector<128x32xbf16>, vector<1x32xf32> -> vector<1x32xf32>
    %29 = arith.index_cast %c0_i32 : i32 to index
    %c0_27 = arith.constant 0 : index
    %30 = vector.load %arg3[%29, %c0_27] : memref<6x32xf32, #tpu.memory_space<vmem>>, vector<1x32xf32>
    %31 = arith.truncf %28 : vector<1x32xf32> to vector<1x32xbf16>
    %cst_28 = arith.constant dense<0.000000e+00> : vector<1x32xf32>
    %32 = tpu.matmul %31, %3, %cst_28 {dimension_numbers = #tpu.dot_dimension_numbers<[1], [0], [0], [1], [0, 0, 1, 1], [], []>} : vector<1x32xbf16>, vector<32x32xbf16>, vector<1x32xf32> -> vector<1x32xf32>
    %33 = arith.addf %30, %32 : vector<1x32xf32>
    %34 = arith.addf %33, %4 : vector<1x32xf32>
    %cst_29 = arith.constant 0.000000e+00 : f32
    %35 = vector.broadcast %cst_29 : f32 to vector<1x32xf32>
    %36 = arith.maximumf %34, %35 : vector<1x32xf32>
    %37 = arith.truncf %36 : vector<1x32xf32> to vector<1x32xbf16>
    %cst_30 = arith.constant dense<0.000000e+00> : vector<1x128xf32>
    %38 = tpu.matmul %37, %5, %cst_30 {dimension_numbers = #tpu.dot_dimension_numbers<[1], [0], [0], [1], [0, 0, 1, 1], [], []>} : vector<1x32xbf16>, vector<32x128xbf16>, vector<1x128xf32> -> vector<1x128xf32>
    %39 = arith.addf %38, %6 : vector<1x128xf32>
    %cst_31 = arith.constant dense<0.000000e+00> : vector<1x128xf32>
    %40 = tpu.matmul %12, %7, %cst_31 {dimension_numbers = #tpu.dot_dimension_numbers<[1], [0], [0], [1], [0, 0, 1, 1], [], []>} : vector<1x32xbf16>, vector<32x128xbf16>, vector<1x128xf32> -> vector<1x128xf32>
    %41 = arith.addf %40, %8 : vector<1x128xf32>
    %42 = vector.extract_strided_slice %39 {offsets = [0, 0], sizes = [1, 32], strides = [1, 1]} : vector<1x128xf32> to vector<1x32xf32>
    %43 = vector.extract_strided_slice %41 {offsets = [0, 0], sizes = [1, 32], strides = [1, 1]} : vector<1x128xf32> to vector<1x32xf32>
    %44 = arith.addf %42, %43 : vector<1x32xf32>
    %45 = arith.negf %44 : vector<1x32xf32>
    %46 = math.exp %45 : vector<1x32xf32>
    %cst_32 = arith.constant 1.000000e+00 : f32
    %47 = vector.broadcast %cst_32 : f32 to vector<1x32xf32>
    %48 = arith.addf %47, %46 : vector<1x32xf32>
    %49 = arith.divf %47, %48 : vector<1x32xf32>
    %50 = vector.extract_strided_slice %39 {offsets = [0, 32], sizes = [1, 32], strides = [1, 1]} : vector<1x128xf32> to vector<1x32xf32>
    %51 = vector.extract_strided_slice %41 {offsets = [0, 32], sizes = [1, 32], strides = [1, 1]} : vector<1x128xf32> to vector<1x32xf32>
    %52 = arith.addf %50, %51 : vector<1x32xf32>
    %53 = arith.negf %52 : vector<1x32xf32>
    %54 = math.exp %53 : vector<1x32xf32>
    %cst_33 = arith.constant 1.000000e+00 : f32
    %55 = vector.broadcast %cst_33 : f32 to vector<1x32xf32>
    %56 = arith.addf %55, %54 : vector<1x32xf32>
    %57 = arith.divf %55, %56 : vector<1x32xf32>
    %58 = vector.extract_strided_slice %39 {offsets = [0, 64], sizes = [1, 32], strides = [1, 1]} : vector<1x128xf32> to vector<1x32xf32>
    %59 = vector.extract_strided_slice %41 {offsets = [0, 64], sizes = [1, 32], strides = [1, 1]} : vector<1x128xf32> to vector<1x32xf32>
    %60 = arith.mulf %49, %59 : vector<1x32xf32>
    %61 = arith.addf %58, %60 : vector<1x32xf32>
    %62 = math.tanh %61 : vector<1x32xf32>
    %cst_34 = arith.constant 1.000000e+00 : f32
    %63 = vector.broadcast %cst_34 : f32 to vector<1x32xf32>
    %64 = arith.subf %63, %57 : vector<1x32xf32>
    %65 = arith.mulf %64, %62 : vector<1x32xf32>
    %66 = arith.mulf %57, %11 : vector<1x32xf32>
    %67 = arith.addf %65, %66 : vector<1x32xf32>
    %68 = arith.truncf %67 : vector<1x32xf32> to vector<1x32xbf16>
    %cst_35 = arith.constant dense<0.000000e+00> : vector<1x128xf32>
    %69 = tpu.matmul %68, %9, %cst_35 {dimension_numbers = #tpu.dot_dimension_numbers<[1], [0], [0], [1], [0, 0, 1, 1], [], []>} : vector<1x32xbf16>, vector<32x128xbf16>, vector<1x128xf32> -> vector<1x128xf32>
    %70 = arith.addf %69, %10 : vector<1x128xf32>
    %cst_36 = arith.constant dense<0xFF800000> : vector<1xf32>
    %71 = vector.multi_reduction <maximumf>, %70, %cst_36 [1] : vector<1x128xf32> to vector<1xf32>
    %72 = vector.shape_cast %71 : vector<1xf32> to vector<1x1xf32>
    %73 = vector.broadcast %72 : vector<1x1xf32> to vector<1x128xf32>
    %74 = arith.subf %70, %73 : vector<1x128xf32>
    %75 = math.exp %74 : vector<1x128xf32>
    %cst_37 = arith.constant dense<0.000000e+00> : vector<1xf32>
    %76 = vector.multi_reduction <add>, %75, %cst_37 [1] : vector<1x128xf32> to vector<1xf32>
    %77 = vector.shape_cast %76 : vector<1xf32> to vector<1x1xf32>
    %78 = math.log %77 : vector<1x1xf32>
    %79 = arith.addf %72, %78 : vector<1x1xf32>
    %80 = vector.broadcast %79 : vector<1x1xf32> to vector<1x128xf32>
    %81 = arith.subf %70, %80 : vector<1x128xf32>
    %82 = arith.index_cast %c0_i32 : i32 to index
    %c0_38 = arith.constant 0 : index
    %83 = vector.load %arg14[%82, %c0_38] : memref<6x128xf32, #tpu.memory_space<vmem>>, vector<1x128xf32>
    tpu.vector_store %arg14[%82, %c0_38], %81 {strides = array<i32>} : memref<6x128xf32, #tpu.memory_space<vmem>>, vector<1x128xf32>,
    %84 = arith.index_cast %c0_i32 : i32 to index
    %c0_39 = arith.constant 0 : index
    %85 = vector.load %arg16[%84, %c0_39] : memref<6x128xf32, #tpu.memory_space<vmem>>, vector<1x128xf32>
    tpu.vector_store %arg16[%84, %c0_39], %26 {strides = array<i32>} : memref<6x128xf32, #tpu.memory_space<vmem>>, vector<1x128xf32>,
    %c1_i32 = arith.constant 1 : i32
    %86 = arith.truncf %67 : vector<1x32xf32> to vector<1x32xbf16>
    %87 = arith.index_cast %c1_i32 : i32 to index
    %c0_40 = arith.constant 0 : index
    %88 = vector.load %arg2[%87, %c0_40] : memref<6x128xf32, #tpu.memory_space<vmem>>, vector<1x128xf32>
    %cst_41 = arith.constant dense<0.000000e+00> : vector<1x128xf32>
    %89 = tpu.matmul %86, %1, %cst_41 {dimension_numbers = #tpu.dot_dimension_numbers<[1], [0], [0], [1], [0, 0, 1, 1], [], []>} : vector<1x32xbf16>, vector<32x128xbf16>, vector<1x128xf32> -> vector<1x128xf32>
    %90 = arith.addf %88, %89 : vector<1x128xf32>
    %91 = arith.addf %90, %2 : vector<1x128xf32>
    %cst_42 = arith.constant dense<0xFF800000> : vector<1xf32>
    %92 = vector.multi_reduction <maximumf>, %91, %cst_42 [1] : vector<1x128xf32> to vector<1xf32>
    %93 = vector.shape_cast %92 : vector<1xf32> to vector<1x1xf32>
    %94 = vector.broadcast %93 : vector<1x1xf32> to vector<1x128xf32>
    %95 = arith.subf %91, %94 : vector<1x128xf32>
    %96 = math.exp %95 : vector<1x128xf32>
    %cst_43 = arith.constant dense<0.000000e+00> : vector<1xf32>
    %97 = vector.multi_reduction <add>, %96, %cst_43 [1] : vector<1x128xf32> to vector<1xf32>
    %98 = vector.shape_cast %97 : vector<1xf32> to vector<1x1xf32>
    %99 = vector.broadcast %98 : vector<1x1xf32> to vector<1x128xf32>
    %100 = arith.divf %96, %99 : vector<1x128xf32>
    %101 = arith.truncf %100 : vector<1x128xf32> to vector<1x128xbf16>
    %cst_44 = arith.constant dense<0.000000e+00> : vector<1x32xf32>
    %102 = tpu.matmul %101, %0, %cst_44 {dimension_numbers = #tpu.dot_dimension_numbers<[1], [0], [0], [1], [0, 0, 1, 1], [], []>} : vector<1x128xbf16>, vector<128x32xbf16>, vector<1x32xf32> -> vector<1x32xf32>
    %103 = arith.index_cast %c1_i32 : i32 to index
    %c0_45 = arith.constant 0 : index
    %104 = vector.load %arg3[%103, %c0_45] : memref<6x32xf32, #tpu.memory_space<vmem>>, vector<1x32xf32>
    %105 = arith.truncf %102 : vector<1x32xf32> to vector<1x32xbf16>
    %cst_46 = arith.constant dense<0.000000e+00> : vector<1x32xf32>
    %106 = tpu.matmul %105, %3, %cst_46 {dimension_numbers = #tpu.dot_dimension_numbers<[1], [0], [0], [1], [0, 0, 1, 1], [], []>} : vector<1x32xbf16>, vector<32x32xbf16>, vector<1x32xf32> -> vector<1x32xf32>
    %107 = arith.addf %104, %106 : vector<1x32xf32>
    %108 = arith.addf %107, %4 : vector<1x32xf32>
    %cst_47 = arith.constant 0.000000e+00 : f32
    %109 = vector.broadcast %cst_47 : f32 to vector<1x32xf32>
    %110 = arith.maximumf %108, %109 : vector<1x32xf32>
    %111 = arith.truncf %110 : vector<1x32xf32> to vector<1x32xbf16>
    %cst_48 = arith.constant dense<0.000000e+00> : vector<1x128xf32>
    %112 = tpu.matmul %111, %5, %cst_48 {dimension_numbers = #tpu.dot_dimension_numbers<[1], [0], [0], [1], [0, 0, 1, 1], [], []>} : vector<1x32xbf16>, vector<32x128xbf16>, vector<1x128xf32> -> vector<1x128xf32>
    %113 = arith.addf %112, %6 : vector<1x128xf32>
    %cst_49 = arith.constant dense<0.000000e+00> : vector<1x128xf32>
    %114 = tpu.matmul %86, %7, %cst_49 {dimension_numbers = #tpu.dot_dimension_numbers<[1], [0], [0], [1], [0, 0, 1, 1], [], []>} : vector<1x32xbf16>, vector<32x128xbf16>, vector<1x128xf32> -> vector<1x128xf32>
    %115 = arith.addf %114, %8 : vector<1x128xf32>
    %116 = vector.extract_strided_slice %113 {offsets = [0, 0], sizes = [1, 32], strides = [1, 1]} : vector<1x128xf32> to vector<1x32xf32>
    %117 = vector.extract_strided_slice %115 {offsets = [0, 0], sizes = [1, 32], strides = [1, 1]} : vector<1x128xf32> to vector<1x32xf32>
    %118 = arith.addf %116, %117 : vector<1x32xf32>
    %119 = arith.negf %118 : vector<1x32xf32>
    %120 = math.exp %119 : vector<1x32xf32>
    %cst_50 = arith.constant 1.000000e+00 : f32
    %121 = vector.broadcast %cst_50 : f32 to vector<1x32xf32>
    %122 = arith.addf %121, %120 : vector<1x32xf32>
    %123 = arith.divf %121, %122 : vector<1x32xf32>
    %124 = vector.extract_strided_slice %113 {offsets = [0, 32], sizes = [1, 32], strides = [1, 1]} : vector<1x128xf32> to vector<1x32xf32>
    %125 = vector.extract_strided_slice %115 {offsets = [0, 32], sizes = [1, 32], strides = [1, 1]} : vector<1x128xf32> to vector<1x32xf32>
    %126 = arith.addf %124, %125 : vector<1x32xf32>
    %127 = arith.negf %126 : vector<1x32xf32>
    %128 = math.exp %127 : vector<1x32xf32>
    %cst_51 = arith.constant 1.000000e+00 : f32
    %129 = vector.broadcast %cst_51 : f32 to vector<1x32xf32>
    %130 = arith.addf %129, %128 : vector<1x32xf32>
    %131 = arith.divf %129, %130 : vector<1x32xf32>
    %132 = vector.extract_strided_slice %113 {offsets = [0, 64], sizes = [1, 32], strides = [1, 1]} : vector<1x128xf32> to vector<1x32xf32>
    %133 = vector.extract_strided_slice %115 {offsets = [0, 64], sizes = [1, 32], strides = [1, 1]} : vector<1x128xf32> to vector<1x32xf32>
    %134 = arith.mulf %123, %133 : vector<1x32xf32>
    %135 = arith.addf %132, %134 : vector<1x32xf32>
    %136 = math.tanh %135 : vector<1x32xf32>
    %cst_52 = arith.constant 1.000000e+00 : f32
    %137 = vector.broadcast %cst_52 : f32 to vector<1x32xf32>
    %138 = arith.subf %137, %131 : vector<1x32xf32>
    %139 = arith.mulf %138, %136 : vector<1x32xf32>
    %140 = arith.mulf %131, %67 : vector<1x32xf32>
    %141 = arith.addf %139, %140 : vector<1x32xf32>
    %142 = arith.truncf %141 : vector<1x32xf32> to vector<1x32xbf16>
    %cst_53 = arith.constant dense<0.000000e+00> : vector<1x128xf32>
    %143 = tpu.matmul %142, %9, %cst_53 {dimension_numbers = #tpu.dot_dimension_numbers<[1], [0], [0], [1], [0, 0, 1, 1], [], []>} : vector<1x32xbf16>, vector<32x128xbf16>, vector<1x128xf32> -> vector<1x128xf32>
    %144 = arith.addf %143, %10 : vector<1x128xf32>
    %cst_54 = arith.constant dense<0xFF800000> : vector<1xf32>
    %145 = vector.multi_reduction <maximumf>, %144, %cst_54 [1] : vector<1x128xf32> to vector<1xf32>
    %146 = vector.shape_cast %145 : vector<1xf32> to vector<1x1xf32>
    %147 = vector.broadcast %146 : vector<1x1xf32> to vector<1x128xf32>
    %148 = arith.subf %144, %147 : vector<1x128xf32>
    %149 = math.exp %148 : vector<1x128xf32>
    %cst_55 = arith.constant dense<0.000000e+00> : vector<1xf32>
    %150 = vector.multi_reduction <add>, %149, %cst_55 [1] : vector<1x128xf32> to vector<1xf32>
    %151 = vector.shape_cast %150 : vector<1xf32> to vector<1x1xf32>
    %152 = math.log %151 : vector<1x1xf32>
    %153 = arith.addf %146, %152 : vector<1x1xf32>
    %154 = vector.broadcast %153 : vector<1x1xf32> to vector<1x128xf32>
    %155 = arith.subf %144, %154 : vector<1x128xf32>
    %156 = arith.index_cast %c1_i32 : i32 to index
    %c0_56 = arith.constant 0 : index
    %157 = vector.load %arg14[%156, %c0_56] : memref<6x128xf32, #tpu.memory_space<vmem>>, vector<1x128xf32>
    tpu.vector_store %arg14[%156, %c0_56], %155 {strides = array<i32>} : memref<6x128xf32, #tpu.memory_space<vmem>>, vector<1x128xf32>,
    %158 = arith.index_cast %c1_i32 : i32 to index
    %c0_57 = arith.constant 0 : index
    %159 = vector.load %arg16[%158, %c0_57] : memref<6x128xf32, #tpu.memory_space<vmem>>, vector<1x128xf32>
    tpu.vector_store %arg16[%158, %c0_57], %100 {strides = array<i32>} : memref<6x128xf32, #tpu.memory_space<vmem>>, vector<1x128xf32>,
    %c2_i32 = arith.constant 2 : i32
    %160 = arith.truncf %141 : vector<1x32xf32> to vector<1x32xbf16>
    %161 = arith.index_cast %c2_i32 : i32 to index
    %c0_58 = arith.constant 0 : index
    %162 = vector.load %arg2[%161, %c0_58] : memref<6x128xf32, #tpu.memory_space<vmem>>, vector<1x128xf32>
    %cst_59 = arith.constant dense<0.000000e+00> : vector<1x128xf32>
    %163 = tpu.matmul %160, %1, %cst_59 {dimension_numbers = #tpu.dot_dimension_numbers<[1], [0], [0], [1], [0, 0, 1, 1], [], []>} : vector<1x32xbf16>, vector<32x128xbf16>, vector<1x128xf32> -> vector<1x128xf32>
    %164 = arith.addf %162, %163 : vector<1x128xf32>
    %165 = arith.addf %164, %2 : vector<1x128xf32>
    %cst_60 = arith.constant dense<0xFF800000> : vector<1xf32>
    %166 = vector.multi_reduction <maximumf>, %165, %cst_60 [1] : vector<1x128xf32> to vector<1xf32>
    %167 = vector.shape_cast %166 : vector<1xf32> to vector<1x1xf32>
    %168 = vector.broadcast %167 : vector<1x1xf32> to vector<1x128xf32>
    %169 = arith.subf %165, %168 : vector<1x128xf32>
    %170 = math.exp %169 : vector<1x128xf32>
    %cst_61 = arith.constant dense<0.000000e+00> : vector<1xf32>
    %171 = vector.multi_reduction <add>, %170, %cst_61 [1] : vector<1x128xf32> to vector<1xf32>
    %172 = vector.shape_cast %171 : vector<1xf32> to vector<1x1xf32>
    %173 = vector.broadcast %172 : vector<1x1xf32> to vector<1x128xf32>
    %174 = arith.divf %170, %173 : vector<1x128xf32>
    %175 = arith.truncf %174 : vector<1x128xf32> to vector<1x128xbf16>
    %cst_62 = arith.constant dense<0.000000e+00> : vector<1x32xf32>
    %176 = tpu.matmul %175, %0, %cst_62 {dimension_numbers = #tpu.dot_dimension_numbers<[1], [0], [0], [1], [0, 0, 1, 1], [], []>} : vector<1x128xbf16>, vector<128x32xbf16>, vector<1x32xf32> -> vector<1x32xf32>
    %177 = arith.index_cast %c2_i32 : i32 to index
    %c0_63 = arith.constant 0 : index
    %178 = vector.load %arg3[%177, %c0_63] : memref<6x32xf32, #tpu.memory_space<vmem>>, vector<1x32xf32>
    %179 = arith.truncf %176 : vector<1x32xf32> to vector<1x32xbf16>
    %cst_64 = arith.constant dense<0.000000e+00> : vector<1x32xf32>
    %180 = tpu.matmul %179, %3, %cst_64 {dimension_numbers = #tpu.dot_dimension_numbers<[1], [0], [0], [1], [0, 0, 1, 1], [], []>} : vector<1x32xbf16>, vector<32x32xbf16>, vector<1x32xf32> -> vector<1x32xf32>
    %181 = arith.addf %178, %180 : vector<1x32xf32>
    %182 = arith.addf %181, %4 : vector<1x32xf32>
    %cst_65 = arith.constant 0.000000e+00 : f32
    %183 = vector.broadcast %cst_65 : f32 to vector<1x32xf32>
    %184 = arith.maximumf %182, %183 : vector<1x32xf32>
    %185 = arith.truncf %184 : vector<1x32xf32> to vector<1x32xbf16>
    %cst_66 = arith.constant dense<0.000000e+00> : vector<1x128xf32>
    %186 = tpu.matmul %185, %5, %cst_66 {dimension_numbers = #tpu.dot_dimension_numbers<[1], [0], [0], [1], [0, 0, 1, 1], [], []>} : vector<1x32xbf16>, vector<32x128xbf16>, vector<1x128xf32> -> vector<1x128xf32>
    %187 = arith.addf %186, %6 : vector<1x128xf32>
    %cst_67 = arith.constant dense<0.000000e+00> : vector<1x128xf32>
    %188 = tpu.matmul %160, %7, %cst_67 {dimension_numbers = #tpu.dot_dimension_numbers<[1], [0], [0], [1], [0, 0, 1, 1], [], []>} : vector<1x32xbf16>, vector<32x128xbf16>, vector<1x128xf32> -> vector<1x128xf32>
    %189 = arith.addf %188, %8 : vector<1x128xf32>
    %190 = vector.extract_strided_slice %187 {offsets = [0, 0], sizes = [1, 32], strides = [1, 1]} : vector<1x128xf32> to vector<1x32xf32>
    %191 = vector.extract_strided_slice %189 {offsets = [0, 0], sizes = [1, 32], strides = [1, 1]} : vector<1x128xf32> to vector<1x32xf32>
    %192 = arith.addf %190, %191 : vector<1x32xf32>
    %193 = arith.negf %192 : vector<1x32xf32>
    %194 = math.exp %193 : vector<1x32xf32>
    %cst_68 = arith.constant 1.000000e+00 : f32
    %195 = vector.broadcast %cst_68 : f32 to vector<1x32xf32>
    %196 = arith.addf %195, %194 : vector<1x32xf32>
    %197 = arith.divf %195, %196 : vector<1x32xf32>
    %198 = vector.extract_strided_slice %187 {offsets = [0, 32], sizes = [1, 32], strides = [1, 1]} : vector<1x128xf32> to vector<1x32xf32>
    %199 = vector.extract_strided_slice %189 {offsets = [0, 32], sizes = [1, 32], strides = [1, 1]} : vector<1x128xf32> to vector<1x32xf32>
    %200 = arith.addf %198, %199 : vector<1x32xf32>
    %201 = arith.negf %200 : vector<1x32xf32>
    %202 = math.exp %201 : vector<1x32xf32>
    %cst_69 = arith.constant 1.000000e+00 : f32
    %203 = vector.broadcast %cst_69 : f32 to vector<1x32xf32>
    %204 = arith.addf %203, %202 : vector<1x32xf32>
    %205 = arith.divf %203, %204 : vector<1x32xf32>
    %206 = vector.extract_strided_slice %187 {offsets = [0, 64], sizes = [1, 32], strides = [1, 1]} : vector<1x128xf32> to vector<1x32xf32>
    %207 = vector.extract_strided_slice %189 {offsets = [0, 64], sizes = [1, 32], strides = [1, 1]} : vector<1x128xf32> to vector<1x32xf32>
    %208 = arith.mulf %197, %207 : vector<1x32xf32>
    %209 = arith.addf %206, %208 : vector<1x32xf32>
    %210 = math.tanh %209 : vector<1x32xf32>
    %cst_70 = arith.constant 1.000000e+00 : f32
    %211 = vector.broadcast %cst_70 : f32 to vector<1x32xf32>
    %212 = arith.subf %211, %205 : vector<1x32xf32>
    %213 = arith.mulf %212, %210 : vector<1x32xf32>
    %214 = arith.mulf %205, %141 : vector<1x32xf32>
    %215 = arith.addf %213, %214 : vector<1x32xf32>
    %216 = arith.truncf %215 : vector<1x32xf32> to vector<1x32xbf16>
    %cst_71 = arith.constant dense<0.000000e+00> : vector<1x128xf32>
    %217 = tpu.matmul %216, %9, %cst_71 {dimension_numbers = #tpu.dot_dimension_numbers<[1], [0], [0], [1], [0, 0, 1, 1], [], []>} : vector<1x32xbf16>, vector<32x128xbf16>, vector<1x128xf32> -> vector<1x128xf32>
    %218 = arith.addf %217, %10 : vector<1x128xf32>
    %cst_72 = arith.constant dense<0xFF800000> : vector<1xf32>
    %219 = vector.multi_reduction <maximumf>, %218, %cst_72 [1] : vector<1x128xf32> to vector<1xf32>
    %220 = vector.shape_cast %219 : vector<1xf32> to vector<1x1xf32>
    %221 = vector.broadcast %220 : vector<1x1xf32> to vector<1x128xf32>
    %222 = arith.subf %218, %221 : vector<1x128xf32>
    %223 = math.exp %222 : vector<1x128xf32>
    %cst_73 = arith.constant dense<0.000000e+00> : vector<1xf32>
    %224 = vector.multi_reduction <add>, %223, %cst_73 [1] : vector<1x128xf32> to vector<1xf32>
    %225 = vector.shape_cast %224 : vector<1xf32> to vector<1x1xf32>
    %226 = math.log %225 : vector<1x1xf32>
    %227 = arith.addf %220, %226 : vector<1x1xf32>
    %228 = vector.broadcast %227 : vector<1x1xf32> to vector<1x128xf32>
    %229 = arith.subf %218, %228 : vector<1x128xf32>
    %230 = arith.index_cast %c2_i32 : i32 to index
    %c0_74 = arith.constant 0 : index
    %231 = vector.load %arg14[%230, %c0_74] : memref<6x128xf32, #tpu.memory_space<vmem>>, vector<1x128xf32>
    tpu.vector_store %arg14[%230, %c0_74], %229 {strides = array<i32>} : memref<6x128xf32, #tpu.memory_space<vmem>>, vector<1x128xf32>,
    %232 = arith.index_cast %c2_i32 : i32 to index
    %c0_75 = arith.constant 0 : index
    %233 = vector.load %arg16[%232, %c0_75] : memref<6x128xf32, #tpu.memory_space<vmem>>, vector<1x128xf32>
    tpu.vector_store %arg16[%232, %c0_75], %174 {strides = array<i32>} : memref<6x128xf32, #tpu.memory_space<vmem>>, vector<1x128xf32>,
    %c3_i32 = arith.constant 3 : i32
    %234 = arith.truncf %215 : vector<1x32xf32> to vector<1x32xbf16>
    %235 = arith.index_cast %c3_i32 : i32 to index
    %c0_76 = arith.constant 0 : index
    %236 = vector.load %arg2[%235, %c0_76] : memref<6x128xf32, #tpu.memory_space<vmem>>, vector<1x128xf32>
    %cst_77 = arith.constant dense<0.000000e+00> : vector<1x128xf32>
    %237 = tpu.matmul %234, %1, %cst_77 {dimension_numbers = #tpu.dot_dimension_numbers<[1], [0], [0], [1], [0, 0, 1, 1], [], []>} : vector<1x32xbf16>, vector<32x128xbf16>, vector<1x128xf32> -> vector<1x128xf32>
    %238 = arith.addf %236, %237 : vector<1x128xf32>
    %239 = arith.addf %238, %2 : vector<1x128xf32>
    %cst_78 = arith.constant dense<0xFF800000> : vector<1xf32>
    %240 = vector.multi_reduction <maximumf>, %239, %cst_78 [1] : vector<1x128xf32> to vector<1xf32>
    %241 = vector.shape_cast %240 : vector<1xf32> to vector<1x1xf32>
    %242 = vector.broadcast %241 : vector<1x1xf32> to vector<1x128xf32>
    %243 = arith.subf %239, %242 : vector<1x128xf32>
    %244 = math.exp %243 : vector<1x128xf32>
    %cst_79 = arith.constant dense<0.000000e+00> : vector<1xf32>
    %245 = vector.multi_reduction <add>, %244, %cst_79 [1] : vector<1x128xf32> to vector<1xf32>
    %246 = vector.shape_cast %245 : vector<1xf32> to vector<1x1xf32>
    %247 = vector.broadcast %246 : vector<1x1xf32> to vector<1x128xf32>
    %248 = arith.divf %244, %247 : vector<1x128xf32>
    %249 = arith.truncf %248 : vector<1x128xf32> to vector<1x128xbf16>
    %cst_80 = arith.constant dense<0.000000e+00> : vector<1x32xf32>
    %250 = tpu.matmul %249, %0, %cst_80 {dimension_numbers = #tpu.dot_dimension_numbers<[1], [0], [0], [1], [0, 0, 1, 1], [], []>} : vector<1x128xbf16>, vector<128x32xbf16>, vector<1x32xf32> -> vector<1x32xf32>
    %251 = arith.index_cast %c3_i32 : i32 to index
    %c0_81 = arith.constant 0 : index
    %252 = vector.load %arg3[%251, %c0_81] : memref<6x32xf32, #tpu.memory_space<vmem>>, vector<1x32xf32>
    %253 = arith.truncf %250 : vector<1x32xf32> to vector<1x32xbf16>
    %cst_82 = arith.constant dense<0.000000e+00> : vector<1x32xf32>
    %254 = tpu.matmul %253, %3, %cst_82 {dimension_numbers = #tpu.dot_dimension_numbers<[1], [0], [0], [1], [0, 0, 1, 1], [], []>} : vector<1x32xbf16>, vector<32x32xbf16>, vector<1x32xf32> -> vector<1x32xf32>
    %255 = arith.addf %252, %254 : vector<1x32xf32>
    %256 = arith.addf %255, %4 : vector<1x32xf32>
    %cst_83 = arith.constant 0.000000e+00 : f32
    %257 = vector.broadcast %cst_83 : f32 to vector<1x32xf32>
    %258 = arith.maximumf %256, %257 : vector<1x32xf32>
    %259 = arith.truncf %258 : vector<1x32xf32> to vector<1x32xbf16>
    %cst_84 = arith.constant dense<0.000000e+00> : vector<1x128xf32>
    %260 = tpu.matmul %259, %5, %cst_84 {dimension_numbers = #tpu.dot_dimension_numbers<[1], [0], [0], [1], [0, 0, 1, 1], [], []>} : vector<1x32xbf16>, vector<32x128xbf16>, vector<1x128xf32> -> vector<1x128xf32>
    %261 = arith.addf %260, %6 : vector<1x128xf32>
    %cst_85 = arith.constant dense<0.000000e+00> : vector<1x128xf32>
    %262 = tpu.matmul %234, %7, %cst_85 {dimension_numbers = #tpu.dot_dimension_numbers<[1], [0], [0], [1], [0, 0, 1, 1], [], []>} : vector<1x32xbf16>, vector<32x128xbf16>, vector<1x128xf32> -> vector<1x128xf32>
    %263 = arith.addf %262, %8 : vector<1x128xf32>
    %264 = vector.extract_strided_slice %261 {offsets = [0, 0], sizes = [1, 32], strides = [1, 1]} : vector<1x128xf32> to vector<1x32xf32>
    %265 = vector.extract_strided_slice %263 {offsets = [0, 0], sizes = [1, 32], strides = [1, 1]} : vector<1x128xf32> to vector<1x32xf32>
    %266 = arith.addf %264, %265 : vector<1x32xf32>
    %267 = arith.negf %266 : vector<1x32xf32>
    %268 = math.exp %267 : vector<1x32xf32>
    %cst_86 = arith.constant 1.000000e+00 : f32
    %269 = vector.broadcast %cst_86 : f32 to vector<1x32xf32>
    %270 = arith.addf %269, %268 : vector<1x32xf32>
    %271 = arith.divf %269, %270 : vector<1x32xf32>
    %272 = vector.extract_strided_slice %261 {offsets = [0, 32], sizes = [1, 32], strides = [1, 1]} : vector<1x128xf32> to vector<1x32xf32>
    %273 = vector.extract_strided_slice %263 {offsets = [0, 32], sizes = [1, 32], strides = [1, 1]} : vector<1x128xf32> to vector<1x32xf32>
    %274 = arith.addf %272, %273 : vector<1x32xf32>
    %275 = arith.negf %274 : vector<1x32xf32>
    %276 = math.exp %275 : vector<1x32xf32>
    %cst_87 = arith.constant 1.000000e+00 : f32
    %277 = vector.broadcast %cst_87 : f32 to vector<1x32xf32>
    %278 = arith.addf %277, %276 : vector<1x32xf32>
    %279 = arith.divf %277, %278 : vector<1x32xf32>
    %280 = vector.extract_strided_slice %261 {offsets = [0, 64], sizes = [1, 32], strides = [1, 1]} : vector<1x128xf32> to vector<1x32xf32>
    %281 = vector.extract_strided_slice %263 {offsets = [0, 64], sizes = [1, 32], strides = [1, 1]} : vector<1x128xf32> to vector<1x32xf32>
    %282 = arith.mulf %271, %281 : vector<1x32xf32>
    %283 = arith.addf %280, %282 : vector<1x32xf32>
    %284 = math.tanh %283 : vector<1x32xf32>
    %cst_88 = arith.constant 1.000000e+00 : f32
    %285 = vector.broadcast %cst_88 : f32 to vector<1x32xf32>
    %286 = arith.subf %285, %279 : vector<1x32xf32>
    %287 = arith.mulf %286, %284 : vector<1x32xf32>
    %288 = arith.mulf %279, %215 : vector<1x32xf32>
    %289 = arith.addf %287, %288 : vector<1x32xf32>
    %290 = arith.truncf %289 : vector<1x32xf32> to vector<1x32xbf16>
    %cst_89 = arith.constant dense<0.000000e+00> : vector<1x128xf32>
    %291 = tpu.matmul %290, %9, %cst_89 {dimension_numbers = #tpu.dot_dimension_numbers<[1], [0], [0], [1], [0, 0, 1, 1], [], []>} : vector<1x32xbf16>, vector<32x128xbf16>, vector<1x128xf32> -> vector<1x128xf32>
    %292 = arith.addf %291, %10 : vector<1x128xf32>
    %cst_90 = arith.constant dense<0xFF800000> : vector<1xf32>
    %293 = vector.multi_reduction <maximumf>, %292, %cst_90 [1] : vector<1x128xf32> to vector<1xf32>
    %294 = vector.shape_cast %293 : vector<1xf32> to vector<1x1xf32>
    %295 = vector.broadcast %294 : vector<1x1xf32> to vector<1x128xf32>
    %296 = arith.subf %292, %295 : vector<1x128xf32>
    %297 = math.exp %296 : vector<1x128xf32>
    %cst_91 = arith.constant dense<0.000000e+00> : vector<1xf32>
    %298 = vector.multi_reduction <add>, %297, %cst_91 [1] : vector<1x128xf32> to vector<1xf32>
    %299 = vector.shape_cast %298 : vector<1xf32> to vector<1x1xf32>
    %300 = math.log %299 : vector<1x1xf32>
    %301 = arith.addf %294, %300 : vector<1x1xf32>
    %302 = vector.broadcast %301 : vector<1x1xf32> to vector<1x128xf32>
    %303 = arith.subf %292, %302 : vector<1x128xf32>
    %304 = arith.index_cast %c3_i32 : i32 to index
    %c0_92 = arith.constant 0 : index
    %305 = vector.load %arg14[%304, %c0_92] : memref<6x128xf32, #tpu.memory_space<vmem>>, vector<1x128xf32>
    tpu.vector_store %arg14[%304, %c0_92], %303 {strides = array<i32>} : memref<6x128xf32, #tpu.memory_space<vmem>>, vector<1x128xf32>,
    %306 = arith.index_cast %c3_i32 : i32 to index
    %c0_93 = arith.constant 0 : index
    %307 = vector.load %arg16[%306, %c0_93] : memref<6x128xf32, #tpu.memory_space<vmem>>, vector<1x128xf32>
    tpu.vector_store %arg16[%306, %c0_93], %248 {strides = array<i32>} : memref<6x128xf32, #tpu.memory_space<vmem>>, vector<1x128xf32>,
    %c4_i32 = arith.constant 4 : i32
    %308 = arith.truncf %289 : vector<1x32xf32> to vector<1x32xbf16>
    %309 = arith.index_cast %c4_i32 : i32 to index
    %c0_94 = arith.constant 0 : index
    %310 = vector.load %arg2[%309, %c0_94] : memref<6x128xf32, #tpu.memory_space<vmem>>, vector<1x128xf32>
    %cst_95 = arith.constant dense<0.000000e+00> : vector<1x128xf32>
    %311 = tpu.matmul %308, %1, %cst_95 {dimension_numbers = #tpu.dot_dimension_numbers<[1], [0], [0], [1], [0, 0, 1, 1], [], []>} : vector<1x32xbf16>, vector<32x128xbf16>, vector<1x128xf32> -> vector<1x128xf32>
    %312 = arith.addf %310, %311 : vector<1x128xf32>
    %313 = arith.addf %312, %2 : vector<1x128xf32>
    %cst_96 = arith.constant dense<0xFF800000> : vector<1xf32>
    %314 = vector.multi_reduction <maximumf>, %313, %cst_96 [1] : vector<1x128xf32> to vector<1xf32>
    %315 = vector.shape_cast %314 : vector<1xf32> to vector<1x1xf32>
    %316 = vector.broadcast %315 : vector<1x1xf32> to vector<1x128xf32>
    %317 = arith.subf %313, %316 : vector<1x128xf32>
    %318 = math.exp %317 : vector<1x128xf32>
    %cst_97 = arith.constant dense<0.000000e+00> : vector<1xf32>
    %319 = vector.multi_reduction <add>, %318, %cst_97 [1] : vector<1x128xf32> to vector<1xf32>
    %320 = vector.shape_cast %319 : vector<1xf32> to vector<1x1xf32>
    %321 = vector.broadcast %320 : vector<1x1xf32> to vector<1x128xf32>
    %322 = arith.divf %318, %321 : vector<1x128xf32>
    %323 = arith.truncf %322 : vector<1x128xf32> to vector<1x128xbf16>
    %cst_98 = arith.constant dense<0.000000e+00> : vector<1x32xf32>
    %324 = tpu.matmul %323, %0, %cst_98 {dimension_numbers = #tpu.dot_dimension_numbers<[1], [0], [0], [1], [0, 0, 1, 1], [], []>} : vector<1x128xbf16>, vector<128x32xbf16>, vector<1x32xf32> -> vector<1x32xf32>
    %325 = arith.index_cast %c4_i32 : i32 to index
    %c0_99 = arith.constant 0 : index
    %326 = vector.load %arg3[%325, %c0_99] : memref<6x32xf32, #tpu.memory_space<vmem>>, vector<1x32xf32>
    %327 = arith.truncf %324 : vector<1x32xf32> to vector<1x32xbf16>
    %cst_100 = arith.constant dense<0.000000e+00> : vector<1x32xf32>
    %328 = tpu.matmul %327, %3, %cst_100 {dimension_numbers = #tpu.dot_dimension_numbers<[1], [0], [0], [1], [0, 0, 1, 1], [], []>} : vector<1x32xbf16>, vector<32x32xbf16>, vector<1x32xf32> -> vector<1x32xf32>
    %329 = arith.addf %326, %328 : vector<1x32xf32>
    %330 = arith.addf %329, %4 : vector<1x32xf32>
    %cst_101 = arith.constant 0.000000e+00 : f32
    %331 = vector.broadcast %cst_101 : f32 to vector<1x32xf32>
    %332 = arith.maximumf %330, %331 : vector<1x32xf32>
    %333 = arith.truncf %332 : vector<1x32xf32> to vector<1x32xbf16>
    %cst_102 = arith.constant dense<0.000000e+00> : vector<1x128xf32>
    %334 = tpu.matmul %333, %5, %cst_102 {dimension_numbers = #tpu.dot_dimension_numbers<[1], [0], [0], [1], [0, 0, 1, 1], [], []>} : vector<1x32xbf16>, vector<32x128xbf16>, vector<1x128xf32> -> vector<1x128xf32>
    %335 = arith.addf %334, %6 : vector<1x128xf32>
    %cst_103 = arith.constant dense<0.000000e+00> : vector<1x128xf32>
    %336 = tpu.matmul %308, %7, %cst_103 {dimension_numbers = #tpu.dot_dimension_numbers<[1], [0], [0], [1], [0, 0, 1, 1], [], []>} : vector<1x32xbf16>, vector<32x128xbf16>, vector<1x128xf32> -> vector<1x128xf32>
    %337 = arith.addf %336, %8 : vector<1x128xf32>
    %338 = vector.extract_strided_slice %335 {offsets = [0, 0], sizes = [1, 32], strides = [1, 1]} : vector<1x128xf32> to vector<1x32xf32>
    %339 = vector.extract_strided_slice %337 {offsets = [0, 0], sizes = [1, 32], strides = [1, 1]} : vector<1x128xf32> to vector<1x32xf32>
    %340 = arith.addf %338, %339 : vector<1x32xf32>
    %341 = arith.negf %340 : vector<1x32xf32>
    %342 = math.exp %341 : vector<1x32xf32>
    %cst_104 = arith.constant 1.000000e+00 : f32
    %343 = vector.broadcast %cst_104 : f32 to vector<1x32xf32>
    %344 = arith.addf %343, %342 : vector<1x32xf32>
    %345 = arith.divf %343, %344 : vector<1x32xf32>
    %346 = vector.extract_strided_slice %335 {offsets = [0, 32], sizes = [1, 32], strides = [1, 1]} : vector<1x128xf32> to vector<1x32xf32>
    %347 = vector.extract_strided_slice %337 {offsets = [0, 32], sizes = [1, 32], strides = [1, 1]} : vector<1x128xf32> to vector<1x32xf32>
    %348 = arith.addf %346, %347 : vector<1x32xf32>
    %349 = arith.negf %348 : vector<1x32xf32>
    %350 = math.exp %349 : vector<1x32xf32>
    %cst_105 = arith.constant 1.000000e+00 : f32
    %351 = vector.broadcast %cst_105 : f32 to vector<1x32xf32>
    %352 = arith.addf %351, %350 : vector<1x32xf32>
    %353 = arith.divf %351, %352 : vector<1x32xf32>
    %354 = vector.extract_strided_slice %335 {offsets = [0, 64], sizes = [1, 32], strides = [1, 1]} : vector<1x128xf32> to vector<1x32xf32>
    %355 = vector.extract_strided_slice %337 {offsets = [0, 64], sizes = [1, 32], strides = [1, 1]} : vector<1x128xf32> to vector<1x32xf32>
    %356 = arith.mulf %345, %355 : vector<1x32xf32>
    %357 = arith.addf %354, %356 : vector<1x32xf32>
    %358 = math.tanh %357 : vector<1x32xf32>
    %cst_106 = arith.constant 1.000000e+00 : f32
    %359 = vector.broadcast %cst_106 : f32 to vector<1x32xf32>
    %360 = arith.subf %359, %353 : vector<1x32xf32>
    %361 = arith.mulf %360, %358 : vector<1x32xf32>
    %362 = arith.mulf %353, %289 : vector<1x32xf32>
    %363 = arith.addf %361, %362 : vector<1x32xf32>
    %364 = arith.truncf %363 : vector<1x32xf32> to vector<1x32xbf16>
    %cst_107 = arith.constant dense<0.000000e+00> : vector<1x128xf32>
    %365 = tpu.matmul %364, %9, %cst_107 {dimension_numbers = #tpu.dot_dimension_numbers<[1], [0], [0], [1], [0, 0, 1, 1], [], []>} : vector<1x32xbf16>, vector<32x128xbf16>, vector<1x128xf32> -> vector<1x128xf32>
    %366 = arith.addf %365, %10 : vector<1x128xf32>
    %cst_108 = arith.constant dense<0xFF800000> : vector<1xf32>
    %367 = vector.multi_reduction <maximumf>, %366, %cst_108 [1] : vector<1x128xf32> to vector<1xf32>
    %368 = vector.shape_cast %367 : vector<1xf32> to vector<1x1xf32>
    %369 = vector.broadcast %368 : vector<1x1xf32> to vector<1x128xf32>
    %370 = arith.subf %366, %369 : vector<1x128xf32>
    %371 = math.exp %370 : vector<1x128xf32>
    %cst_109 = arith.constant dense<0.000000e+00> : vector<1xf32>
    %372 = vector.multi_reduction <add>, %371, %cst_109 [1] : vector<1x128xf32> to vector<1xf32>
    %373 = vector.shape_cast %372 : vector<1xf32> to vector<1x1xf32>
    %374 = math.log %373 : vector<1x1xf32>
    %375 = arith.addf %368, %374 : vector<1x1xf32>
    %376 = vector.broadcast %375 : vector<1x1xf32> to vector<1x128xf32>
    %377 = arith.subf %366, %376 : vector<1x128xf32>
    %378 = arith.index_cast %c4_i32 : i32 to index
    %c0_110 = arith.constant 0 : index
    %379 = vector.load %arg14[%378, %c0_110] : memref<6x128xf32, #tpu.memory_space<vmem>>, vector<1x128xf32>
    tpu.vector_store %arg14[%378, %c0_110], %377 {strides = array<i32>} : memref<6x128xf32, #tpu.memory_space<vmem>>, vector<1x128xf32>,
    %380 = arith.index_cast %c4_i32 : i32 to index
    %c0_111 = arith.constant 0 : index
    %381 = vector.load %arg16[%380, %c0_111] : memref<6x128xf32, #tpu.memory_space<vmem>>, vector<1x128xf32>
    tpu.vector_store %arg16[%380, %c0_111], %322 {strides = array<i32>} : memref<6x128xf32, #tpu.memory_space<vmem>>, vector<1x128xf32>,
    %c5_i32 = arith.constant 5 : i32
    %382 = arith.truncf %363 : vector<1x32xf32> to vector<1x32xbf16>
    %383 = arith.index_cast %c5_i32 : i32 to index
    %c0_112 = arith.constant 0 : index
    %384 = vector.load %arg2[%383, %c0_112] : memref<6x128xf32, #tpu.memory_space<vmem>>, vector<1x128xf32>
    %cst_113 = arith.constant dense<0.000000e+00> : vector<1x128xf32>
    %385 = tpu.matmul %382, %1, %cst_113 {dimension_numbers = #tpu.dot_dimension_numbers<[1], [0], [0], [1], [0, 0, 1, 1], [], []>} : vector<1x32xbf16>, vector<32x128xbf16>, vector<1x128xf32> -> vector<1x128xf32>
    %386 = arith.addf %384, %385 : vector<1x128xf32>
    %387 = arith.addf %386, %2 : vector<1x128xf32>
    %cst_114 = arith.constant dense<0xFF800000> : vector<1xf32>
    %388 = vector.multi_reduction <maximumf>, %387, %cst_114 [1] : vector<1x128xf32> to vector<1xf32>
    %389 = vector.shape_cast %388 : vector<1xf32> to vector<1x1xf32>
    %390 = vector.broadcast %389 : vector<1x1xf32> to vector<1x128xf32>
    %391 = arith.subf %387, %390 : vector<1x128xf32>
    %392 = math.exp %391 : vector<1x128xf32>
    %cst_115 = arith.constant dense<0.000000e+00> : vector<1xf32>
    %393 = vector.multi_reduction <add>, %392, %cst_115 [1] : vector<1x128xf32> to vector<1xf32>
    %394 = vector.shape_cast %393 : vector<1xf32> to vector<1x1xf32>
    %395 = vector.broadcast %394 : vector<1x1xf32> to vector<1x128xf32>
    %396 = arith.divf %392, %395 : vector<1x128xf32>
    %397 = arith.truncf %396 : vector<1x128xf32> to vector<1x128xbf16>
    %cst_116 = arith.constant dense<0.000000e+00> : vector<1x32xf32>
    %398 = tpu.matmul %397, %0, %cst_116 {dimension_numbers = #tpu.dot_dimension_numbers<[1], [0], [0], [1], [0, 0, 1, 1], [], []>} : vector<1x128xbf16>, vector<128x32xbf16>, vector<1x32xf32> -> vector<1x32xf32>
    %399 = arith.index_cast %c5_i32 : i32 to index
    %c0_117 = arith.constant 0 : index
    %400 = vector.load %arg3[%399, %c0_117] : memref<6x32xf32, #tpu.memory_space<vmem>>, vector<1x32xf32>
    %401 = arith.truncf %398 : vector<1x32xf32> to vector<1x32xbf16>
    %cst_118 = arith.constant dense<0.000000e+00> : vector<1x32xf32>
    %402 = tpu.matmul %401, %3, %cst_118 {dimension_numbers = #tpu.dot_dimension_numbers<[1], [0], [0], [1], [0, 0, 1, 1], [], []>} : vector<1x32xbf16>, vector<32x32xbf16>, vector<1x32xf32> -> vector<1x32xf32>
    %403 = arith.addf %400, %402 : vector<1x32xf32>
    %404 = arith.addf %403, %4 : vector<1x32xf32>
    %cst_119 = arith.constant 0.000000e+00 : f32
    %405 = vector.broadcast %cst_119 : f32 to vector<1x32xf32>
    %406 = arith.maximumf %404, %405 : vector<1x32xf32>
    %407 = arith.truncf %406 : vector<1x32xf32> to vector<1x32xbf16>
    %cst_120 = arith.constant dense<0.000000e+00> : vector<1x128xf32>
    %408 = tpu.matmul %407, %5, %cst_120 {dimension_numbers = #tpu.dot_dimension_numbers<[1], [0], [0], [1], [0, 0, 1, 1], [], []>} : vector<1x32xbf16>, vector<32x128xbf16>, vector<1x128xf32> -> vector<1x128xf32>
    %409 = arith.addf %408, %6 : vector<1x128xf32>
    %cst_121 = arith.constant dense<0.000000e+00> : vector<1x128xf32>
    %410 = tpu.matmul %382, %7, %cst_121 {dimension_numbers = #tpu.dot_dimension_numbers<[1], [0], [0], [1], [0, 0, 1, 1], [], []>} : vector<1x32xbf16>, vector<32x128xbf16>, vector<1x128xf32> -> vector<1x128xf32>
    %411 = arith.addf %410, %8 : vector<1x128xf32>
    %412 = vector.extract_strided_slice %409 {offsets = [0, 0], sizes = [1, 32], strides = [1, 1]} : vector<1x128xf32> to vector<1x32xf32>
    %413 = vector.extract_strided_slice %411 {offsets = [0, 0], sizes = [1, 32], strides = [1, 1]} : vector<1x128xf32> to vector<1x32xf32>
    %414 = arith.addf %412, %413 : vector<1x32xf32>
    %415 = arith.negf %414 : vector<1x32xf32>
    %416 = math.exp %415 : vector<1x32xf32>
    %cst_122 = arith.constant 1.000000e+00 : f32
    %417 = vector.broadcast %cst_122 : f32 to vector<1x32xf32>
    %418 = arith.addf %417, %416 : vector<1x32xf32>
    %419 = arith.divf %417, %418 : vector<1x32xf32>
    %420 = vector.extract_strided_slice %409 {offsets = [0, 32], sizes = [1, 32], strides = [1, 1]} : vector<1x128xf32> to vector<1x32xf32>
    %421 = vector.extract_strided_slice %411 {offsets = [0, 32], sizes = [1, 32], strides = [1, 1]} : vector<1x128xf32> to vector<1x32xf32>
    %422 = arith.addf %420, %421 : vector<1x32xf32>
    %423 = arith.negf %422 : vector<1x32xf32>
    %424 = math.exp %423 : vector<1x32xf32>
    %cst_123 = arith.constant 1.000000e+00 : f32
    %425 = vector.broadcast %cst_123 : f32 to vector<1x32xf32>
    %426 = arith.addf %425, %424 : vector<1x32xf32>
    %427 = arith.divf %425, %426 : vector<1x32xf32>
    %428 = vector.extract_strided_slice %409 {offsets = [0, 64], sizes = [1, 32], strides = [1, 1]} : vector<1x128xf32> to vector<1x32xf32>
    %429 = vector.extract_strided_slice %411 {offsets = [0, 64], sizes = [1, 32], strides = [1, 1]} : vector<1x128xf32> to vector<1x32xf32>
    %430 = arith.mulf %419, %429 : vector<1x32xf32>
    %431 = arith.addf %428, %430 : vector<1x32xf32>
    %432 = math.tanh %431 : vector<1x32xf32>
    %cst_124 = arith.constant 1.000000e+00 : f32
    %433 = vector.broadcast %cst_124 : f32 to vector<1x32xf32>
    %434 = arith.subf %433, %427 : vector<1x32xf32>
    %435 = arith.mulf %434, %432 : vector<1x32xf32>
    %436 = arith.mulf %427, %363 : vector<1x32xf32>
    %437 = arith.addf %435, %436 : vector<1x32xf32>
    %438 = arith.truncf %437 : vector<1x32xf32> to vector<1x32xbf16>
    %cst_125 = arith.constant dense<0.000000e+00> : vector<1x128xf32>
    %439 = tpu.matmul %438, %9, %cst_125 {dimension_numbers = #tpu.dot_dimension_numbers<[1], [0], [0], [1], [0, 0, 1, 1], [], []>} : vector<1x32xbf16>, vector<32x128xbf16>, vector<1x128xf32> -> vector<1x128xf32>
    %440 = arith.addf %439, %10 : vector<1x128xf32>
    %cst_126 = arith.constant dense<0xFF800000> : vector<1xf32>
    %441 = vector.multi_reduction <maximumf>, %440, %cst_126 [1] : vector<1x128xf32> to vector<1xf32>
    %442 = vector.shape_cast %441 : vector<1xf32> to vector<1x1xf32>
    %443 = vector.broadcast %442 : vector<1x1xf32> to vector<1x128xf32>
    %444 = arith.subf %440, %443 : vector<1x128xf32>
    %445 = math.exp %444 : vector<1x128xf32>
    %cst_127 = arith.constant dense<0.000000e+00> : vector<1xf32>
    %446 = vector.multi_reduction <add>, %445, %cst_127 [1] : vector<1x128xf32> to vector<1xf32>
    %447 = vector.shape_cast %446 : vector<1xf32> to vector<1x1xf32>
    %448 = math.log %447 : vector<1x1xf32>
    %449 = arith.addf %442, %448 : vector<1x1xf32>
    %450 = vector.broadcast %449 : vector<1x1xf32> to vector<1x128xf32>
    %451 = arith.subf %440, %450 : vector<1x128xf32>
    %452 = arith.index_cast %c5_i32 : i32 to index
    %c0_128 = arith.constant 0 : index
    %453 = vector.load %arg14[%452, %c0_128] : memref<6x128xf32, #tpu.memory_space<vmem>>, vector<1x128xf32>
    tpu.vector_store %arg14[%452, %c0_128], %451 {strides = array<i32>} : memref<6x128xf32, #tpu.memory_space<vmem>>, vector<1x128xf32>,
    %454 = arith.index_cast %c5_i32 : i32 to index
    %c0_129 = arith.constant 0 : index
    %455 = vector.load %arg16[%454, %c0_129] : memref<6x128xf32, #tpu.memory_space<vmem>>, vector<1x128xf32>
    tpu.vector_store %arg16[%454, %c0_129], %396 {strides = array<i32>} : memref<6x128xf32, #tpu.memory_space<vmem>>, vector<1x128xf32>,
    %c6_i32 = arith.constant 6 : i32
    %c0_130 = arith.constant 0 : index
    %c0_131 = arith.constant 0 : index
    %456 = vector.load %arg15[%c0_130, %c0_131] : memref<1x32xf32, #tpu.memory_space<vmem>>, vector<1x32xf32>
    tpu.vector_store %arg15[%c0_130, %c0_131], %437 {strides = array<i32>} : memref<1x32xf32, #tpu.memory_space<vmem>>, vector<1x32xf32>,
    return
  }
}

</mosaic_0001>

<llo_original>
// kernel: attn_decoder_decode.1
$region0: #{attn_decoder_decode.1}
  #allocation0 [shape = 'u32[]', space=smem, size = 0x4, offset = 0x4, fixed_abs, tag = 'smem constant byte address 0x4 - core index']
  #allocation1 [shape = 'u32[144,128]{1,0:T(1,128)}', space=vmem, size = 0x12000, scoped, tag = 'internal scratch']
  %s0 = inlined_call_operand.vmem [shape: f32[1,32], index: 0, kind: input, shape index: {}]
  %s1 = inlined_call_operand.vmem [shape: bf16[128,32], index: 1, kind: input, shape index: {}]
  %s2 = inlined_call_operand.vmem [shape: f32[6,128], index: 2, kind: input, shape index: {}]
  %s3 = inlined_call_operand.vmem [shape: f32[6,32], index: 3, kind: input, shape index: {}]
  %s4 = inlined_call_operand.vmem [shape: bf16[32,128], index: 4, kind: input, shape index: {}]
  %s5 = inlined_call_operand.vmem [shape: f32[1,128], index: 5, kind: input, shape index: {}]
  %s6 = inlined_call_operand.vmem [shape: bf16[32,32], index: 6, kind: input, shape index: {}]
  %s7 = inlined_call_operand.vmem [shape: f32[1,32], index: 7, kind: input, shape index: {}]
  %s8 = inlined_call_operand.vmem [shape: bf16[32,128], index: 8, kind: input, shape index: {}]
  %s9 = inlined_call_operand.vmem [shape: f32[1,128], index: 9, kind: input, shape index: {}]
  %s10 = inlined_call_operand.vmem [shape: bf16[32,128], index: 10, kind: input, shape index: {}]
  %s11 = inlined_call_operand.vmem [shape: f32[1,128], index: 11, kind: input, shape index: {}]
  %s12 = inlined_call_operand.vmem [shape: bf16[32,128], index: 12, kind: input, shape index: {}]
  %s13 = inlined_call_operand.vmem [shape: f32[1,128], index: 13, kind: input, shape index: {}]
  %s14 = inlined_call_operand.hbm [shape: f32[6,128], index: 14, kind: output, shape index: {0}]
  %s15 = inlined_call_operand.hbm [shape: f32[1,32], index: 15, kind: output, shape index: {1}]
  %s16 = inlined_call_operand.hbm [shape: f32[6,128], index: 16, kind: output, shape index: {2}]
  %17 = xla_tuple %s14, %s15, %s16
  %s18 = sld [smem:[#allocation0]]
  $region82: #{attn_decoder_decode.1} parent=0
    _
  %s20 = ssub.s32 1, %s18
  %s21 = scalar_select 0, %s20, %s18
  $region1: #{attn_decoder_decode.1} parent=0
    #allocation2 [shape = 'u8[4096]{0}', space=vmem, size = 0x1000, scoped, tag = 'output window, operand 0, single buffered']
    #allocation3 [shape = 's32[1]{0}', space=sflag, size = 0x4, scoped, tag = 'scoped memory for attn_decoder_decode.1']
    #allocation4 [shape = 'u8[512]{0}', space=vmem, size = 0x400, scoped, tag = 'output window, operand 1, single buffered']
    #allocation5 [shape = 's32[1]{0}', space=sflag, size = 0x4, scoped, tag = 'scoped memory for attn_decoder_decode.1']
    #allocation6 [shape = 'u8[4096]{0}', space=vmem, size = 0x1000, scoped, tag = 'output window, operand 2, single buffered']
    %22 = vsyncpa [#allocation3], 0
    %23 = vsyncpa [#allocation5], 0
    // Predicated region
    $region2: #{attn_decoder_decode.1} parent=1 // pred_check
      _
    $region3: #{attn_decoder_decode.1} parent=1 // pred_check_branch
      %25 = sbr.rel (0) target = $region5
    $region4: #{attn_decoder_decode.1} parent=1 // pred_region
      _
    $region5: #{attn_decoder_decode.1} parent=1 // pred_fallthru
      _
    // Predicated region
    $region6: #{attn_decoder_decode.1} parent=1 // pred_check
      _
    $region7: #{attn_decoder_decode.1} parent=1 // pred_check_branch
      %27 = sbr.rel (0) target = $region9
    $region8: #{attn_decoder_decode.1} parent=1 // pred_region
      _
    $region9: #{attn_decoder_decode.1} parent=1 // pred_fallthru
      _
    // Predicated region
    $region10: #{attn_decoder_decode.1} parent=1 // pred_check
      _
    $region11: #{attn_decoder_decode.1} parent=1 // pred_check_branch
      %29 = sbr.rel (0) target = $region13
    $region12: #{attn_decoder_decode.1} parent=1 // pred_region
      _
    $region13: #{attn_decoder_decode.1} parent=1 // pred_fallthru
      _
    // Predicated region
    $region14: #{attn_decoder_decode.1} parent=1 // pred_check
      _
    $region15: #{attn_decoder_decode.1} parent=1 // pred_check_branch
      %31 = sbr.rel (0) target = $region17
    $region16: #{attn_decoder_decode.1} parent=1 // pred_region
      _
    $region17: #{attn_decoder_decode.1} parent=1 // pred_fallthru
      _
    // Predicated region
    $region18: #{attn_decoder_decode.1} parent=1 // pred_check
      _
    $region19: #{attn_decoder_decode.1} parent=1 // pred_check_branch
      %33 = sbr.rel (0) target = $region21
    $region20: #{attn_decoder_decode.1} parent=1 // pred_region
      _
    $region21: #{attn_decoder_decode.1} parent=1 // pred_fallthru
      _
    // Predicated region
    $region22: #{attn_decoder_decode.1} parent=1 // pred_check
      _
    $region23: #{attn_decoder_decode.1} parent=1 // pred_check_branch
      %35 = sbr.rel (0) target = $region25
    $region24: #{attn_decoder_decode.1} parent=1 // pred_region
      _
    $region25: #{attn_decoder_decode.1} parent=1 // pred_fallthru
      _
    // Predicated region
    $region26: #{attn_decoder_decode.1} parent=1 // pred_check
      _
    $region27: #{attn_decoder_decode.1} parent=1 // pred_check_branch
      %37 = sbr.rel (0) target = $region29
    $region28: #{attn_decoder_decode.1} parent=1 // pred_region
      _
    $region29: #{attn_decoder_decode.1} parent=1 // pred_fallthru
      _
    // Predicated region
    $region30: #{attn_decoder_decode.1} parent=1 // pred_check
      _
    $region31: #{attn_decoder_decode.1} parent=1 // pred_check_branch
      %39 = sbr.rel (0) target = $region33
    $region32: #{attn_decoder_decode.1} parent=1 // pred_region
      _
    $region33: #{attn_decoder_decode.1} parent=1 // pred_fallthru
      _
    // Predicated region
    $region34: #{attn_decoder_decode.1} parent=1 // pred_check
      _
    $region35: #{attn_decoder_decode.1} parent=1 // pred_check_branch
      %41 = sbr.rel (0) target = $region37
    $region36: #{attn_decoder_decode.1} parent=1 // pred_region
      _
    $region37: #{attn_decoder_decode.1} parent=1 // pred_fallthru
      _
    // Predicated region
    $region38: #{attn_decoder_decode.1} parent=1 // pred_check
      _
    $region39: #{attn_decoder_decode.1} parent=1 // pred_check_branch
      %43 = sbr.rel (0) target = $region41
    $region40: #{attn_decoder_decode.1} parent=1 // pred_region
      _
    $region41: #{attn_decoder_decode.1} parent=1 // pred_fallthru
      _
    // Predicated region
    $region42: #{attn_decoder_decode.1} parent=1 // pred_check
      _
    $region43: #{attn_decoder_decode.1} parent=1 // pred_check_branch
      %45 = sbr.rel (0) target = $region45
    $region44: #{attn_decoder_decode.1} parent=1 // pred_region
      _
    $region45: #{attn_decoder_decode.1} parent=1 // pred_fallthru
      _
    // Predicated region
    $region46: #{attn_decoder_decode.1} parent=1 // pred_check
      _
    $region47: #{attn_decoder_decode.1} parent=1 // pred_check_branch
      %47 = sbr.rel (0) target = $region49
    $region48: #{attn_decoder_decode.1} parent=1 // pred_region
      _
    $region49: #{attn_decoder_decode.1} parent=1 // pred_fallthru
      _
    // Predicated region
    $region50: #{attn_decoder_decode.1} parent=1 // pred_check
      _
    $region51: #{attn_decoder_decode.1} parent=1 // pred_check_branch
      %49 = sbr.rel (0) target = $region53
    $region52: #{attn_decoder_decode.1} parent=1 // pred_region
      _
    $region53: #{attn_decoder_decode.1} parent=1 // pred_fallthru
      _
    // Predicated region
    $region54: #{attn_decoder_decode.1} parent=1 // pred_check
      _
    $region55: #{attn_decoder_decode.1} parent=1 // pred_check_branch
      %51 = sbr.rel (0) target = $region57
    $region56: #{attn_decoder_decode.1} parent=1 // pred_region
      _
    $region57: #{attn_decoder_decode.1} parent=1 // pred_fallthru
      _
    %v53 = vld [vmem:[%s1] sm:$0xf]
    %v54 = vld [vmem:[%s1 + $0x4] sm:$0xf]
    %v55 = vld [vmem:[%s1 + $0x8] sm:$0xf]
    %v56 = vld [vmem:[%s1 + $0xc] sm:$0xf]
    %v57 = vld [vmem:[%s1 + $0x10] sm:$0xf]
    %v58 = vld [vmem:[%s1 + $0x14] sm:$0xf]
    %v59 = vld [vmem:[%s1 + $0x18] sm:$0xf]
    %v60 = vld [vmem:[%s1 + $0x1c] sm:$0xf]
    %v61 = vld [vmem:[%s1 + $0x20] sm:$0xf]
    %v62 = vld [vmem:[%s1 + $0x24] sm:$0xf]
    %v63 = vld [vmem:[%s1 + $0x28] sm:$0xf]
    %v64 = vld [vmem:[%s1 + $0x2c] sm:$0xf]
    %v65 = vld [vmem:[%s1 + $0x30] sm:$0xf]
    %v66 = vld [vmem:[%s1 + $0x34] sm:$0xf]
    %v67 = vld [vmem:[%s1 + $0x38] sm:$0xf]
    %v68 = vld [vmem:[%s1 + $0x3c] sm:$0xf]
    %v69 = vld [vmem:[%s4] sm:$0xf]
    %v70 = vld [vmem:[%s4 + $0x4] sm:$0xf]
    %v71 = vld [vmem:[%s4 + $0x8] sm:$0xf]
    %v72 = vld [vmem:[%s4 + $0xc] sm:$0xf]
    %v73 = vld [vmem:[%s5] sm:$0x1]
    %v74 = vld [vmem:[%s6] sm:$0xf]
    %v75 = vld [vmem:[%s6 + $0x4] sm:$0xf]
    %v76 = vld [vmem:[%s6 + $0x8] sm:$0xf]
    %v77 = vld [vmem:[%s6 + $0xc] sm:$0xf]
    %v78 = vld [vmem:[%s7] sm:$0x1]
    %v79 = vld [vmem:[%s8] sm:$0xf]
    %v80 = vld [vmem:[%s8 + $0x4] sm:$0xf]
    %v81 = vld [vmem:[%s8 + $0x8] sm:$0xf]
    %v82 = vld [vmem:[%s8 + $0xc] sm:$0xf]
    %v83 = vld [vmem:[%s9] sm:$0x1]
    %v84 = vld [vmem:[%s10] sm:$0xf]
    %v85 = vld [vmem:[%s10 + $0x4] sm:$0xf]
    %v86 = vld [vmem:[%s10 + $0x8] sm:$0xf]
    %v87 = vld [vmem:[%s10 + $0xc] sm:$0xf]
    %v88 = vld [vmem:[%s11] sm:$0x1]
    %v89 = vld [vmem:[%s12] sm:$0xf]
    %v90 = vld [vmem:[%s12 + $0x4] sm:$0xf]
    %v91 = vld [vmem:[%s12 + $0x8] sm:$0xf]
    %v92 = vld [vmem:[%s12 + $0xc] sm:$0xf]
    %v93 = vld [vmem:[%s13] sm:$0x1]
    %v94 = vld [vmem:[%s0] sm:$0x1]
    %v95 = vpack.c.bf16 %v94, %v94
    %v96 = vld [vmem:[%s2] sm:$0x1]
    %v101 = vunpack.c.l.b16 %v69
    %v102 = vunpack.c.l.b16 %v70
    %v103 = vunpack.c.l.b16 %v71
    %v104 = vunpack.c.l.b16 %v72
    %v105 = vpack.c.b16 %v102, %v101
    %v106 = vpack.c.b16 %v104, %v103
    %vm109 = vcmask 261120
    %v111 = vsel %vm109, %v95, 0
    %113 = vmatprep.subr.bf16.mxu0 0
    %114 = vmatpush1.bf16.msra.mxu0 %v105
    %115 = vmatprep.subr.bf16.mxu0 0
    %116 = vmatpush1.bf16.msra.mxu0 %v106
    %117 = vmatprep.subr.bf16.mxu0 0
    %118 = vmatpush1.bf16.msra.mxu0 0
    %119 = vmatprep.subr.bf16.mxu0 0
    %120 = vmatpush1.bf16.msra.mxu0 0
    %121 = vmatprep.subr.bf16.mxu0 0
    %122 = vmatpush1.bf16.msra.mxu0 0
    %123 = vmatprep.subr.bf16.mxu0 0
    %124 = vmatpush1.bf16.msra.mxu0 0
    %125 = vmatprep.subr.bf16.mxu0 0
    %126 = vmatpush1.bf16.msra.mxu0 0
    %127 = vmatprep.subr.bf16.mxu0 0
    %128 = vmatpush1.bf16.msra.mxu0 0
    %129 = vmatprep.subr.bf16.mxu0 0
    %130 = vmatpush1.bf16.msra.mxu0 0
    %131 = vmatprep.subr.bf16.mxu0 0
    %132 = vmatpush1.bf16.msra.mxu0 0
    %133 = vmatprep.subr.bf16.mxu0 0
    %134 = vmatpush1.bf16.msra.mxu0 0
    %135 = vmatprep.subr.bf16.mxu0 0
    %136 = vmatpush1.bf16.msra.mxu0 0
    %137 = vmatprep.subr.bf16.mxu0 0
    %138 = vmatpush1.bf16.msra.mxu0 0
    %139 = vmatprep.subr.bf16.mxu0 0
    %140 = vmatpush1.bf16.msra.mxu0 0
    %141 = vmatprep.subr.bf16.mxu0 0
    %142 = vmatpush1.bf16.msra.mxu0 0
    %143 = vmatprep.subr.bf16.mxu0 0
    %144 = vmatpush1.bf16.msra.mxu0 0
    %145 = vmatprep.mubr.bf16.mxu0 0
    %146 = vmatmul.mubr.bf16.gmra.mrb[0].mxu0 %v111
    %v147 = vpop.f32.mrb[0].mxu0
    %v148 = vadd.f32 0.0, %v147
    %v149 = vpop.f32.mrb[0].mxu0
    %v150 = vpop.f32.mrb[0].mxu0
    %v151 = vpop.f32.mrb[0].mxu0
    %152 = vdwg.mxu0
    %v153 = vadd.f32 %v96, %v148
    %v154 = vadd.f32 %v153, %v73
    %vm155 = vcmask 1040384
    %v156 = vsel %vm155, %v154, -inf
    %157 = vmax.xlane.f32.xlu0 %v156
    %v158 = vpop.xlane.xlu0 %157
    %v159 = vsub.f32 %v154, %v158
    %v160 = vmul.f32 %v159, 1.442695
    %v161 = vpow.pop %v160
    %v162 = vsel %vm155, %v161, 0.0
    %163 = vadd.xlane.f32.xlu0 %v162
    %v164 = vpop.xlane.xlu0 %163
    %v165 = vrcp.pop %v164
    %v166 = vmul.f32 %v161, %v165
    %v167 = vpack.c.bf16 %v166, %v166
    %v184 = vunpack.c.l.b16 %v53
    %v185 = vunpack.c.l.b16 %v54
    %v186 = vunpack.c.l.b16 %v55
    %v187 = vunpack.c.l.b16 %v56
    %v188 = vunpack.c.l.b16 %v57
    %v189 = vunpack.c.l.b16 %v58
    %v190 = vunpack.c.l.b16 %v59
    %v191 = vunpack.c.l.b16 %v60
    %v192 = vunpack.c.l.b16 %v61
    %v193 = vunpack.c.l.b16 %v62
    %v194 = vunpack.c.l.b16 %v63
    %v195 = vunpack.c.l.b16 %v64
    %v196 = vunpack.c.l.b16 %v65
    %v197 = vunpack.c.l.b16 %v66
    %v198 = vunpack.c.l.b16 %v67
    %v199 = vunpack.c.l.b16 %v68
    %v200 = vpack.c.b16 %v185, %v184
    %v201 = vpack.c.b16 %v187, %v186
    %v202 = vpack.c.b16 %v189, %v188
    %v203 = vpack.c.b16 %v191, %v190
    %v204 = vpack.c.b16 %v193, %v192
    %v205 = vpack.c.b16 %v195, %v194
    %v206 = vpack.c.b16 %v197, %v196
    %v207 = vpack.c.b16 %v199, %v198
    %216 = vmatprep.subr.bf16.mxu0 0
    %217 = vmatpush1.bf16.msra.mxu0 %v200
    %218 = vmatprep.subr.bf16.mxu0 0
    %219 = vmatpush1.bf16.msra.mxu0 %v201
    %220 = vmatprep.subr.bf16.mxu0 0
    %221 = vmatpush1.bf16.msra.mxu0 %v202
    %222 = vmatprep.subr.bf16.mxu0 0
    %223 = vmatpush1.bf16.msra.mxu0 %v203
    %224 = vmatprep.subr.bf16.mxu0 0
    %225 = vmatpush1.bf16.msra.mxu0 %v204
    %226 = vmatprep.subr.bf16.mxu0 0
    %227 = vmatpush1.bf16.msra.mxu0 %v205
    %228 = vmatprep.subr.bf16.mxu0 0
    %229 = vmatpush1.bf16.msra.mxu0 %v206
    %230 = vmatprep.subr.bf16.mxu0 0
    %231 = vmatpush1.bf16.msra.mxu0 %v207
    %232 = vmatprep.subr.bf16.mxu0 0
    %233 = vmatpush1.bf16.msra.mxu0 0
    %234 = vmatprep.subr.bf16.mxu0 0
    %235 = vmatpush1.bf16.msra.mxu0 0
    %236 = vmatprep.subr.bf16.mxu0 0
    %237 = vmatpush1.bf16.msra.mxu0 0
    %238 = vmatprep.subr.bf16.mxu0 0
    %239 = vmatpush1.bf16.msra.mxu0 0
    %240 = vmatprep.subr.bf16.mxu0 0
    %241 = vmatpush1.bf16.msra.mxu0 0
    %242 = vmatprep.subr.bf16.mxu0 0
    %243 = vmatpush1.bf16.msra.mxu0 0
    %244 = vmatprep.subr.bf16.mxu0 0
    %245 = vmatpush1.bf16.msra.mxu0 0
    %246 = vmatprep.subr.bf16.mxu0 0
    %247 = vmatpush1.bf16.msra.mxu0 0
    %248 = vmatprep.mubr.bf16.mxu0 0
    %249 = vmatmul.mubr.bf16.gmra.mrb[0].mxu0 %v167
    %v250 = vpop.f32.mrb[0].mxu0
    %v251 = vadd.f32 0.0, %v250
    %v252 = vpop.f32.mrb[0].mxu0
    %v253 = vpop.f32.mrb[0].mxu0
    %v254 = vpop.f32.mrb[0].mxu0
    %255 = vdwg.mxu0
    %v256 = vld [vmem:[%s3] sm:$0x1]
    %v257 = vpack.c.bf16 %v251, %v251
    %v262 = vunpack.c.l.b16 %v74
    %v263 = vunpack.c.l.b16 %v75
    %v264 = vunpack.c.l.b16 %v76
    %v265 = vunpack.c.l.b16 %v77
    %v266 = vpack.c.b16 %v263, %v262
    %v267 = vpack.c.b16 %v265, %v264
    %v271 = vsel %vm109, %v257, 0
    %273 = vmatprep.subr.bf16.mxu0 0
    %274 = vmatpush1.bf16.msra.mxu0 %v266
    %275 = vmatprep.subr.bf16.mxu0 0
    %276 = vmatpush1.bf16.msra.mxu0 %v267
    %277 = vmatprep.subr.bf16.mxu0 0
    %278 = vmatpush1.bf16.msra.mxu0 0
    %279 = vmatprep.subr.bf16.mxu0 0
    %280 = vmatpush1.bf16.msra.mxu0 0
    %281 = vmatprep.subr.bf16.mxu0 0
    %282 = vmatpush1.bf16.msra.mxu0 0
    %283 = vmatprep.subr.bf16.mxu0 0
    %284 = vmatpush1.bf16.msra.mxu0 0
    %285 = vmatprep.subr.bf16.mxu0 0
    %286 = vmatpush1.bf16.msra.mxu0 0
    %287 = vmatprep.subr.bf16.mxu0 0
    %288 = vmatpush1.bf16.msra.mxu0 0
    %289 = vmatprep.subr.bf16.mxu0 0
    %290 = vmatpush1.bf16.msra.mxu0 0
    %291 = vmatprep.subr.bf16.mxu0 0
    %292 = vmatpush1.bf16.msra.mxu0 0
    %293 = vmatprep.subr.bf16.mxu0 0
    %294 = vmatpush1.bf16.msra.mxu0 0
    %295 = vmatprep.subr.bf16.mxu0 0
    %296 = vmatpush1.bf16.msra.mxu0 0
    %297 = vmatprep.subr.bf16.mxu0 0
    %298 = vmatpush1.bf16.msra.mxu0 0
    %299 = vmatprep.subr.bf16.mxu0 0
    %300 = vmatpush1.bf16.msra.mxu0 0
    %301 = vmatprep.subr.bf16.mxu0 0
    %302 = vmatpush1.bf16.msra.mxu0 0
    %303 = vmatprep.subr.bf16.mxu0 0
    %304 = vmatpush1.bf16.msra.mxu0 0
    %305 = vmatprep.mubr.bf16.mxu0 0
    %306 = vmatmul.mubr.bf16.gmra.mrb[0].mxu0 %v271
    %v307 = vpop.f32.mrb[0].mxu0
    %v308 = vadd.f32 0.0, %v307
    %v309 = vpop.f32.mrb[0].mxu0
    %v310 = vpop.f32.mrb[0].mxu0
    %v311 = vpop.f32.mrb[0].mxu0
    %312 = vdwg.mxu0
    %v313 = vadd.f32 %v256, %v308
    %v314 = vadd.f32 %v313, %v78
    %v315 = vmax.f32 %v314, 0.0
    %v316 = vpack.c.bf16 %v315, %v315
    %v321 = vunpack.c.l.b16 %v79
    %v322 = vunpack.c.l.b16 %v80
    %v323 = vunpack.c.l.b16 %v81
    %v324 = vunpack.c.l.b16 %v82
    %v325 = vpack.c.b16 %v322, %v321
    %v326 = vpack.c.b16 %v324, %v323
    %v330 = vsel %vm109, %v316, 0
    %332 = vmatprep.subr.bf16.mxu0 0
    %333 = vmatpush1.bf16.msra.mxu0 %v325
    %334 = vmatprep.subr.bf16.mxu0 0
    %335 = vmatpush1.bf16.msra.mxu0 %v326
    %336 = vmatprep.subr.bf16.mxu0 0
    %337 = vmatpush1.bf16.msra.mxu0 0
    %338 = vmatprep.subr.bf16.mxu0 0
    %339 = vmatpush1.bf16.msra.mxu0 0
    %340 = vmatprep.subr.bf16.mxu0 0
    %341 = vmatpush1.bf16.msra.mxu0 0
    %342 = vmatprep.subr.bf16.mxu0 0
    %343 = vmatpush1.bf16.msra.mxu0 0
    %344 = vmatprep.subr.bf16.mxu0 0
    %345 = vmatpush1.bf16.msra.mxu0 0
    %346 = vmatprep.subr.bf16.mxu0 0
    %347 = vmatpush1.bf16.msra.mxu0 0
    %348 = vmatprep.subr.bf16.mxu0 0
    %349 = vmatpush1.bf16.msra.mxu0 0
    %350 = vmatprep.subr.bf16.mxu0 0
    %351 = vmatpush1.bf16.msra.mxu0 0
    %352 = vmatprep.subr.bf16.mxu0 0
    %353 = vmatpush1.bf16.msra.mxu0 0
    %354 = vmatprep.subr.bf16.mxu0 0
    %355 = vmatpush1.bf16.msra.mxu0 0
    %356 = vmatprep.subr.bf16.mxu0 0
    %357 = vmatpush1.bf16.msra.mxu0 0
    %358 = vmatprep.subr.bf16.mxu0 0
    %359 = vmatpush1.bf16.msra.mxu0 0
    %360 = vmatprep.subr.bf16.mxu0 0
    %361 = vmatpush1.bf16.msra.mxu0 0
    %362 = vmatprep.subr.bf16.mxu0 0
    %363 = vmatpush1.bf16.msra.mxu0 0
    %364 = vmatprep.mubr.bf16.mxu0 0
    %365 = vmatmul.mubr.bf16.gmra.mrb[0].mxu0 %v330
    %v366 = vpop.f32.mrb[0].mxu0
    %v367 = vadd.f32 %v83, %v366
    %v368 = vpop.f32.mrb[0].mxu0
    %v369 = vpop.f32.mrb[0].mxu0
    %v370 = vpop.f32.mrb[0].mxu0
    %371 = vdwg.mxu0
    %v376 = vunpack.c.l.b16 %v84
    %v377 = vunpack.c.l.b16 %v85
    %v378 = vunpack.c.l.b16 %v86
    %v379 = vunpack.c.l.b16 %v87
    %v380 = vpack.c.b16 %v377, %v376
    %v381 = vpack.c.b16 %v379, %v378
    %384 = vmatprep.subr.bf16.mxu0 0
    %385 = vmatpush1.bf16.msra.mxu0 %v380
    %386 = vmatprep.subr.bf16.mxu0 0
    %387 = vmatpush1.bf16.msra.mxu0 %v381
    %388 = vmatprep.subr.bf16.mxu0 0
    %389 = vmatpush1.bf16.msra.mxu0 0
    %390 = vmatprep.subr.bf16.mxu0 0
    %391 = vmatpush1.bf16.msra.mxu0 0
    %392 = vmatprep.subr.bf16.mxu0 0
    %393 = vmatpush1.bf16.msra.mxu0 0
    %394 = vmatprep.subr.bf16.mxu0 0
    %395 = vmatpush1.bf16.msra.mxu0 0
    %396 = vmatprep.subr.bf16.mxu0 0
    %397 = vmatpush1.bf16.msra.mxu0 0
    %398 = vmatprep.subr.bf16.mxu0 0
    %399 = vmatpush1.bf16.msra.mxu0 0
    %400 = vmatprep.subr.bf16.mxu0 0
    %401 = vmatpush1.bf16.msra.mxu0 0
    %402 = vmatprep.subr.bf16.mxu0 0
    %403 = vmatpush1.bf16.msra.mxu0 0
    %404 = vmatprep.subr.bf16.mxu0 0
    %405 = vmatpush1.bf16.msra.mxu0 0
    %406 = vmatprep.subr.bf16.mxu0 0
    %407 = vmatpush1.bf16.msra.mxu0 0
    %408 = vmatprep.subr.bf16.mxu0 0
    %409 = vmatpush1.bf16.msra.mxu0 0
    %410 = vmatprep.subr.bf16.mxu0 0
    %411 = vmatpush1.bf16.msra.mxu0 0
    %412 = vmatprep.subr.bf16.mxu0 0
    %413 = vmatpush1.bf16.msra.mxu0 0
    %414 = vmatprep.subr.bf16.mxu0 0
    %415 = vmatpush1.bf16.msra.mxu0 0
    %416 = vmatprep.mubr.bf16.mxu0 0
    %417 = vmatmul.mubr.bf16.gmra.mrb[0].mxu0 %v111
    %v418 = vpop.f32.mrb[0].mxu0
    %v419 = vadd.f32 %v88, %v418
    %v420 = vpop.f32.mrb[0].mxu0
    %v421 = vpop.f32.mrb[0].mxu0
    %v422 = vpop.f32.mrb[0].mxu0
    %423 = vdwg.mxu0
    %v424 = vadd.f32 %v367, %v419
    %v425 = vxor.u32 %v424, 2147483648
    %v426 = vmul.f32 %v425, 1.442695
    %v427 = vpow.pop %v426
    %v428 = vadd.f32 %v427, 1.0
    %v429 = vrcp.pop %v428
    %v430 = vmul.f32 1.0, %v429
    %432 = vrot.lane.b32.xlu0 %v419, 64
    %v433 = vpop.permute.xlu0 %432
    %v435 = vmul.f32 %v430, %v433
    %437 = vrot.lane.b32.xlu0 %v435, 64
    %v438 = vpop.permute.xlu0 %437
    %v440 = vadd.f32 %v367, %v438
    %v441 = vtanh.pop %v440
    %v442 = vsub.f32 1.0, %v430
    %444 = vrot.lane.b32.xlu0 %v441, 96
    %v445 = vpop.permute.xlu0 %444
    %v447 = vmul.f32 %v442, %v445
    %v449 = vlaneseq
    %v450 = vshrl.u32 %v449, 7
    %v451 = vsub.s32 0, %v450
    %v452 = vrot.slane %v94, %v451
    %453 = vrot.lane.b32.xlu0 %v452, 32
    %v454 = vpop.permute.xlu0 %453
    %v456 = vmul.f32 %v430, %v454
    %v457 = vadd.f32 %v447, %v456
    %v458 = vpack.c.bf16 %v457, %v457
    %460 = vrot.lane.b32.xlu0 %v458, 96
    %v461 = vpop.permute.xlu0 %460
    %v466 = vunpack.c.l.b16 %v89
    %v467 = vunpack.c.l.b16 %v90
    %v468 = vunpack.c.l.b16 %v91
    %v469 = vunpack.c.l.b16 %v92
    %v470 = vpack.c.b16 %v467, %v466
    %v471 = vpack.c.b16 %v469, %v468
    %v475 = vsel %vm109, %v461, 0
    %477 = vmatprep.subr.bf16.mxu0 0
    %478 = vmatpush1.bf16.msra.mxu0 %v470
    %479 = vmatprep.subr.bf16.mxu0 0
    %480 = vmatpush1.bf16.msra.mxu0 %v471
    %481 = vmatprep.subr.bf16.mxu0 0
    %482 = vmatpush1.bf16.msra.mxu0 0
    %483 = vmatprep.subr.bf16.mxu0 0
    %484 = vmatpush1.bf16.msra.mxu0 0
    %485 = vmatprep.subr.bf16.mxu0 0
    %486 = vmatpush1.bf16.msra.mxu0 0
    %487 = vmatprep.subr.bf16.mxu0 0
    %488 = vmatpush1.bf16.msra.mxu0 0
    %489 = vmatprep.subr.bf16.mxu0 0
    %490 = vmatpush1.bf16.msra.mxu0 0
    %491 = vmatprep.subr.bf16.mxu0 0
    %492 = vmatpush1.bf16.msra.mxu0 0
    %493 = vmatprep.subr.bf16.mxu0 0
    %494 = vmatpush1.bf16.msra.mxu0 0
    %495 = vmatprep.subr.bf16.mxu0 0
    %496 = vmatpush1.bf16.msra.mxu0 0
    %497 = vmatprep.subr.bf16.mxu0 0
    %498 = vmatpush1.bf16.msra.mxu0 0
    %499 = vmatprep.subr.bf16.mxu0 0
    %500 = vmatpush1.bf16.msra.mxu0 0
    %501 = vmatprep.subr.bf16.mxu0 0
    %502 = vmatpush1.bf16.msra.mxu0 0
    %503 = vmatprep.subr.bf16.mxu0 0
    %504 = vmatpush1.bf16.msra.mxu0 0
    %505 = vmatprep.subr.bf16.mxu0 0
    %506 = vmatpush1.bf16.msra.mxu0 0
    %507 = vmatprep.subr.bf16.mxu0 0
    %508 = vmatpush1.bf16.msra.mxu0 0
    %509 = vmatprep.mubr.bf16.mxu0 0
    %510 = vmatmul.mubr.bf16.gmra.mrb[0].mxu0 %v475
    %v511 = vpop.f32.mrb[0].mxu0
    %v512 = vadd.f32 %v93, %v511
    %v513 = vpop.f32.mrb[0].mxu0
    %v514 = vpop.f32.mrb[0].mxu0
    %v515 = vpop.f32.mrb[0].mxu0
    %516 = vdwg.mxu0
    %v517 = vsel %vm155, %v512, -inf
    %518 = vmax.xlane.f32.xlu0 %v517
    %v519 = vpop.xlane.xlu0 %518
    %v520 = vsub.f32 %v512, %v519
    %v521 = vmul.f32 %v520, 1.442695
    %v522 = vpow.pop %v521
    %v523 = vsel %vm155, %v522, 0.0
    %524 = vadd.xlane.f32.xlu0 %v523
    %v525 = vpop.xlane.xlu0 %524
    %v526 = vlog2.pop %v525
    %v527 = vmul.f32 %v526, 0.6931472
    %v528 = vadd.f32 %v519, %v527
    %v529 = vsub.f32 %v512, %v528
    %530 = vst [vmem:[#allocation2] sm:$0x1] %v529
    %531 = vst [vmem:[#allocation6] sm:$0x1] %v166
    %v532 = vld [vmem:[%s2 + $0x1] sm:$0x1]
    %533 = vmatprep.subr.bf16.mxu0 0
    %534 = vmatpush1.bf16.msra.mxu0 %v105
    %535 = vmatprep.subr.bf16.mxu0 0
    %536 = vmatpush1.bf16.msra.mxu0 %v106
    %537 = vmatprep.subr.bf16.mxu0 0
    %538 = vmatpush1.bf16.msra.mxu0 0
    %539 = vmatprep.subr.bf16.mxu0 0
    %540 = vmatpush1.bf16.msra.mxu0 0
    %541 = vmatprep.subr.bf16.mxu0 0
    %542 = vmatpush1.bf16.msra.mxu0 0
    %543 = vmatprep.subr.bf16.mxu0 0
    %544 = vmatpush1.bf16.msra.mxu0 0
    %545 = vmatprep.subr.bf16.mxu0 0
    %546 = vmatpush1.bf16.msra.mxu0 0
    %547 = vmatprep.subr.bf16.mxu0 0
    %548 = vmatpush1.bf16.msra.mxu0 0
    %549 = vmatprep.subr.bf16.mxu0 0
    %550 = vmatpush1.bf16.msra.mxu0 0
    %551 = vmatprep.subr.bf16.mxu0 0
    %552 = vmatpush1.bf16.msra.mxu0 0
    %553 = vmatprep.subr.bf16.mxu0 0
    %554 = vmatpush1.bf16.msra.mxu0 0
    %555 = vmatprep.subr.bf16.mxu0 0
    %556 = vmatpush1.bf16.msra.mxu0 0
    %557 = vmatprep.subr.bf16.mxu0 0
    %558 = vmatpush1.bf16.msra.mxu0 0
    %559 = vmatprep.subr.bf16.mxu0 0
    %560 = vmatpush1.bf16.msra.mxu0 0
    %561 = vmatprep.subr.bf16.mxu0 0
    %562 = vmatpush1.bf16.msra.mxu0 0
    %563 = vmatprep.subr.bf16.mxu0 0
    %564 = vmatpush1.bf16.msra.mxu0 0
    %565 = vmatprep.mubr.bf16.mxu0 0
    %566 = vmatmul.mubr.bf16.gmra.mrb[0].mxu0 %v475
    %v567 = vpop.f32.mrb[0].mxu0
    %v568 = vadd.f32 0.0, %v567
    %v569 = vpop.f32.mrb[0].mxu0
    %v570 = vpop.f32.mrb[0].mxu0
    %v571 = vpop.f32.mrb[0].mxu0
    %572 = vdwg.mxu0
    %v573 = vadd.f32 %v532, %v568
    %v574 = vadd.f32 %v573, %v73
    %v575 = vsel %vm155, %v574, -inf
    %576 = vmax.xlane.f32.xlu0 %v575
    %v577 = vpop.xlane.xlu0 %576
    %v578 = vsub.f32 %v574, %v577
    %v579 = vmul.f32 %v578, 1.442695
    %v580 = vpow.pop %v579
    %v581 = vsel %vm155, %v580, 0.0
    %582 = vadd.xlane.f32.xlu0 %v581
    %v583 = vpop.xlane.xlu0 %582
    %v584 = vrcp.pop %v583
    %v585 = vmul.f32 %v580, %v584
    %v586 = vpack.c.bf16 %v585, %v585
    %587 = vmatprep.subr.bf16.mxu0 0
    %588 = vmatpush1.bf16.msra.mxu0 %v200
    %589 = vmatprep.subr.bf16.mxu0 0
    %590 = vmatpush1.bf16.msra.mxu0 %v201
    %591 = vmatprep.subr.bf16.mxu0 0
    %592 = vmatpush1.bf16.msra.mxu0 %v202
    %593 = vmatprep.subr.bf16.mxu0 0
    %594 = vmatpush1.bf16.msra.mxu0 %v203
    %595 = vmatprep.subr.bf16.mxu0 0
    %596 = vmatpush1.bf16.msra.mxu0 %v204
    %597 = vmatprep.subr.bf16.mxu0 0
    %598 = vmatpush1.bf16.msra.mxu0 %v205
    %599 = vmatprep.subr.bf16.mxu0 0
    %600 = vmatpush1.bf16.msra.mxu0 %v206
    %601 = vmatprep.subr.bf16.mxu0 0
    %602 = vmatpush1.bf16.msra.mxu0 %v207
    %603 = vmatprep.subr.bf16.mxu0 0
    %604 = vmatpush1.bf16.msra.mxu0 0
    %605 = vmatprep.subr.bf16.mxu0 0
    %606 = vmatpush1.bf16.msra.mxu0 0
    %607 = vmatprep.subr.bf16.mxu0 0
    %608 = vmatpush1.bf16.msra.mxu0 0
    %609 = vmatprep.subr.bf16.mxu0 0
    %610 = vmatpush1.bf16.msra.mxu0 0
    %611 = vmatprep.subr.bf16.mxu0 0
    %612 = vmatpush1.bf16.msra.mxu0 0
    %613 = vmatprep.subr.bf16.mxu0 0
    %614 = vmatpush1.bf16.msra.mxu0 0
    %615 = vmatprep.subr.bf16.mxu0 0
    %616 = vmatpush1.bf16.msra.mxu0 0
    %617 = vmatprep.subr.bf16.mxu0 0
    %618 = vmatpush1.bf16.msra.mxu0 0
    %619 = vmatprep.mubr.bf16.mxu0 0
    %620 = vmatmul.mubr.bf16.gmra.mrb[0].mxu0 %v586
    %v621 = vpop.f32.mrb[0].mxu0
    %v622 = vadd.f32 0.0, %v621
    %v623 = vpop.f32.mrb[0].mxu0
    %v624 = vpop.f32.mrb[0].mxu0
    %v625 = vpop.f32.mrb[0].mxu0
    %626 = vdwg.mxu0
    %v627 = vld [vmem:[%s3 + $0x1] sm:$0x1]
    %v628 = vpack.c.bf16 %v622, %v622
    %v630 = vsel %vm109, %v628, 0
    %632 = vmatprep.subr.bf16.mxu0 0
    %633 = vmatpush1.bf16.msra.mxu0 %v266
    %634 = vmatprep.subr.bf16.mxu0 0
    %635 = vmatpush1.bf16.msra.mxu0 %v267
    %636 = vmatprep.subr.bf16.mxu0 0
    %637 = vmatpush1.bf16.msra.mxu0 0
    %638 = vmatprep.subr.bf16.mxu0 0
    %639 = vmatpush1.bf16.msra.mxu0 0
    %640 = vmatprep.subr.bf16.mxu0 0
    %641 = vmatpush1.bf16.msra.mxu0 0
    %642 = vmatprep.subr.bf16.mxu0 0
    %643 = vmatpush1.bf16.msra.mxu0 0
    %644 = vmatprep.subr.bf16.mxu0 0
    %645 = vmatpush1.bf16.msra.mxu0 0
    %646 = vmatprep.subr.bf16.mxu0 0
    %647 = vmatpush1.bf16.msra.mxu0 0
    %648 = vmatprep.subr.bf16.mxu0 0
    %649 = vmatpush1.bf16.msra.mxu0 0
    %650 = vmatprep.subr.bf16.mxu0 0
    %651 = vmatpush1.bf16.msra.mxu0 0
    %652 = vmatprep.subr.bf16.mxu0 0
    %653 = vmatpush1.bf16.msra.mxu0 0
    %654 = vmatprep.subr.bf16.mxu0 0
    %655 = vmatpush1.bf16.msra.mxu0 0
    %656 = vmatprep.subr.bf16.mxu0 0
    %657 = vmatpush1.bf16.msra.mxu0 0
    %658 = vmatprep.subr.bf16.mxu0 0
    %659 = vmatpush1.bf16.msra.mxu0 0
    %660 = vmatprep.subr.bf16.mxu0 0
    %661 = vmatpush1.bf16.msra.mxu0 0
    %662 = vmatprep.subr.bf16.mxu0 0
    %663 = vmatpush1.bf16.msra.mxu0 0
    %664 = vmatprep.mubr.bf16.mxu0 0
    %665 = vmatmul.mubr.bf16.gmra.mrb[0].mxu0 %v630
    %v666 = vpop.f32.mrb[0].mxu0
    %v667 = vadd.f32 0.0, %v666
    %v668 = vpop.f32.mrb[0].mxu0
    %v669 = vpop.f32.mrb[0].mxu0
    %v670 = vpop.f32.mrb[0].mxu0
    %671 = vdwg.mxu0
    %v672 = vadd.f32 %v627, %v667
    %v673 = vadd.f32 %v672, %v78
    %v674 = vmax.f32 %v673, 0.0
    %v675 = vpack.c.bf16 %v674, %v674
    %v677 = vsel %vm109, %v675, 0
    %679 = vmatprep.subr.bf16.mxu0 0
    %680 = vmatpush1.bf16.msra.mxu0 %v325
    %681 = vmatprep.subr.bf16.mxu0 0
    %682 = vmatpush1.bf16.msra.mxu0 %v326
    %683 = vmatprep.subr.bf16.mxu0 0
    %684 = vmatpush1.bf16.msra.mxu0 0
    %685 = vmatprep.subr.bf16.mxu0 0
    %686 = vmatpush1.bf16.msra.mxu0 0
    %687 = vmatprep.subr.bf16.mxu0 0
    %688 = vmatpush1.bf16.msra.mxu0 0
    %689 = vmatprep.subr.bf16.mxu0 0
    %690 = vmatpush1.bf16.msra.mxu0 0
    %691 = vmatprep.subr.bf16.mxu0 0
    %692 = vmatpush1.bf16.msra.mxu0 0
    %693 = vmatprep.subr.bf16.mxu0 0
    %694 = vmatpush1.bf16.msra.mxu0 0
    %695 = vmatprep.subr.bf16.mxu0 0
    %696 = vmatpush1.bf16.msra.mxu0 0
    %697 = vmatprep.subr.bf16.mxu0 0
    %698 = vmatpush1.bf16.msra.mxu0 0
    %699 = vmatprep.subr.bf16.mxu0 0
    %700 = vmatpush1.bf16.msra.mxu0 0
    %701 = vmatprep.subr.bf16.mxu0 0
    %702 = vmatpush1.bf16.msra.mxu0 0
    %703 = vmatprep.subr.bf16.mxu0 0
    %704 = vmatpush1.bf16.msra.mxu0 0
    %705 = vmatprep.subr.bf16.mxu0 0
    %706 = vmatpush1.bf16.msra.mxu0 0
    %707 = vmatprep.subr.bf16.mxu0 0
    %708 = vmatpush1.bf16.msra.mxu0 0
    %709 = vmatprep.subr.bf16.mxu0 0
    %710 = vmatpush1.bf16.msra.mxu0 0
    %711 = vmatprep.mubr.bf16.mxu0 0
    %712 = vmatmul.mubr.bf16.gmra.mrb[0].mxu0 %v677
    %v713 = vpop.f32.mrb[0].mxu0
    %v714 = vadd.f32 %v83, %v713
    %v715 = vpop.f32.mrb[0].mxu0
    %v716 = vpop.f32.mrb[0].mxu0
    %v717 = vpop.f32.mrb[0].mxu0
    %718 = vdwg.mxu0
    %719 = vmatprep.subr.bf16.mxu0 0
    %720 = vmatpush1.bf16.msra.mxu0 %v380
    %721 = vmatprep.subr.bf16.mxu0 0
    %722 = vmatpush1.bf16.msra.mxu0 %v381
    %723 = vmatprep.subr.bf16.mxu0 0
    %724 = vmatpush1.bf16.msra.mxu0 0
    %725 = vmatprep.subr.bf16.mxu0 0
    %726 = vmatpush1.bf16.msra.mxu0 0
    %727 = vmatprep.subr.bf16.mxu0 0
    %728 = vmatpush1.bf16.msra.mxu0 0
    %729 = vmatprep.subr.bf16.mxu0 0
    %730 = vmatpush1.bf16.msra.mxu0 0
    %731 = vmatprep.subr.bf16.mxu0 0
    %732 = vmatpush1.bf16.msra.mxu0 0
    %733 = vmatprep.subr.bf16.mxu0 0
    %734 = vmatpush1.bf16.msra.mxu0 0
    %735 = vmatprep.subr.bf16.mxu0 0
    %736 = vmatpush1.bf16.msra.mxu0 0
    %737 = vmatprep.subr.bf16.mxu0 0
    %738 = vmatpush1.bf16.msra.mxu0 0
    %739 = vmatprep.subr.bf16.mxu0 0
    %740 = vmatpush1.bf16.msra.mxu0 0
    %741 = vmatprep.subr.bf16.mxu0 0
    %742 = vmatpush1.bf16.msra.mxu0 0
    %743 = vmatprep.subr.bf16.mxu0 0
    %744 = vmatpush1.bf16.msra.mxu0 0
    %745 = vmatprep.subr.bf16.mxu0 0
    %746 = vmatpush1.bf16.msra.mxu0 0
    %747 = vmatprep.subr.bf16.mxu0 0
    %748 = vmatpush1.bf16.msra.mxu0 0
    %749 = vmatprep.subr.bf16.mxu0 0
    %750 = vmatpush1.bf16.msra.mxu0 0
    %751 = vmatprep.mubr.bf16.mxu0 0
    %752 = vmatmul.mubr.bf16.gmra.mrb[0].mxu0 %v475
    %v753 = vpop.f32.mrb[0].mxu0
    %v754 = vadd.f32 %v88, %v753
    %v755 = vpop.f32.mrb[0].mxu0
    %v756 = vpop.f32.mrb[0].mxu0
    %v757 = vpop.f32.mrb[0].mxu0
    %758 = vdwg.mxu0
    %v759 = vadd.f32 %v714, %v754
    %v760 = vxor.u32 %v759, 2147483648
    %v761 = vmul.f32 %v760, 1.442695
    %v762 = vpow.pop %v761
    %v763 = vadd.f32 %v762, 1.0
    %v764 = vrcp.pop %v763
    %v765 = vmul.f32 1.0, %v764
    %767 = vrot.lane.b32.xlu0 %v754, 64
    %v768 = vpop.permute.xlu0 %767
    %v770 = vmul.f32 %v765, %v768
    %772 = vrot.lane.b32.xlu0 %v770, 64
    %v773 = vpop.permute.xlu0 %772
    %v775 = vadd.f32 %v714, %v773
    %v776 = vtanh.pop %v775
    %v777 = vsub.f32 1.0, %v765
    %779 = vrot.lane.b32.xlu0 %v776, 96
    %v780 = vpop.permute.xlu0 %779
    %v782 = vmul.f32 %v777, %v780
    %v783 = vmul.f32 %v765, %v457
    %v784 = vadd.f32 %v782, %v783
    %v785 = vpack.c.bf16 %v784, %v784
    %787 = vrot.lane.b32.xlu0 %v785, 96
    %v788 = vpop.permute.xlu0 %787
    %v790 = vsel %vm109, %v788, 0
    %792 = vmatprep.subr.bf16.mxu0 0
    %793 = vmatpush1.bf16.msra.mxu0 %v470
    %794 = vmatprep.subr.bf16.mxu0 0
    %795 = vmatpush1.bf16.msra.mxu0 %v471
    %796 = vmatprep.subr.bf16.mxu0 0
    %797 = vmatpush1.bf16.msra.mxu0 0
    %798 = vmatprep.subr.bf16.mxu0 0
    %799 = vmatpush1.bf16.msra.mxu0 0
    %800 = vmatprep.subr.bf16.mxu0 0
    %801 = vmatpush1.bf16.msra.mxu0 0
    %802 = vmatprep.subr.bf16.mxu0 0
    %803 = vmatpush1.bf16.msra.mxu0 0
    %804 = vmatprep.subr.bf16.mxu0 0
    %805 = vmatpush1.bf16.msra.mxu0 0
    %806 = vmatprep.subr.bf16.mxu0 0
    %807 = vmatpush1.bf16.msra.mxu0 0
    %808 = vmatprep.subr.bf16.mxu0 0
    %809 = vmatpush1.bf16.msra.mxu0 0
    %810 = vmatprep.subr.bf16.mxu0 0
    %811 = vmatpush1.bf16.msra.mxu0 0
    %812 = vmatprep.subr.bf16.mxu0 0
    %813 = vmatpush1.bf16.msra.mxu0 0
    %814 = vmatprep.subr.bf16.mxu0 0
    %815 = vmatpush1.bf16.msra.mxu0 0
    %816 = vmatprep.subr.bf16.mxu0 0
    %817 = vmatpush1.bf16.msra.mxu0 0
    %818 = vmatprep.subr.bf16.mxu0 0
    %819 = vmatpush1.bf16.msra.mxu0 0
    %820 = vmatprep.subr.bf16.mxu0 0
    %821 = vmatpush1.bf16.msra.mxu0 0
    %822 = vmatprep.subr.bf16.mxu0 0
    %823 = vmatpush1.bf16.msra.mxu0 0
    %824 = vmatprep.mubr.bf16.mxu0 0
    %825 = vmatmul.mubr.bf16.gmra.mrb[0].mxu0 %v790
    %v826 = vpop.f32.mrb[0].mxu0
    %v827 = vadd.f32 %v93, %v826
    %v828 = vpop.f32.mrb[0].mxu0
    %v829 = vpop.f32.mrb[0].mxu0
    %v830 = vpop.f32.mrb[0].mxu0
    %831 = vdwg.mxu0
    %v832 = vsel %vm155, %v827, -inf
    %833 = vmax.xlane.f32.xlu0 %v832
    %v834 = vpop.xlane.xlu0 %833
    %v835 = vsub.f32 %v827, %v834
    %v836 = vmul.f32 %v835, 1.442695
    %v837 = vpow.pop %v836
    %v838 = vsel %vm155, %v837, 0.0
    %839 = vadd.xlane.f32.xlu0 %v838
    %v840 = vpop.xlane.xlu0 %839
    %v841 = vlog2.pop %v840
    %v842 = vmul.f32 %v841, 0.6931472
    %v843 = vadd.f32 %v834, %v842
    %v844 = vsub.f32 %v827, %v843
    %845 = vst [vmem:[#allocation2 + $0x1] sm:$0x1] %v844
    %846 = vst [vmem:[#allocation6 + $0x1] sm:$0x1] %v585
    %v847 = vld [vmem:[%s2 + $0x2] sm:$0x1]
    %848 = vmatprep.subr.bf16.mxu0 0
    %849 = vmatpush1.bf16.msra.mxu0 %v105
    %850 = vmatprep.subr.bf16.mxu0 0
    %851 = vmatpush1.bf16.msra.mxu0 %v106
    %852 = vmatprep.subr.bf16.mxu0 0
    %853 = vmatpush1.bf16.msra.mxu0 0
    %854 = vmatprep.subr.bf16.mxu0 0
    %855 = vmatpush1.bf16.msra.mxu0 0
    %856 = vmatprep.subr.bf16.mxu0 0
    %857 = vmatpush1.bf16.msra.mxu0 0
    %858 = vmatprep.subr.bf16.mxu0 0
    %859 = vmatpush1.bf16.msra.mxu0 0
    %860 = vmatprep.subr.bf16.mxu0 0
    %861 = vmatpush1.bf16.msra.mxu0 0
    %862 = vmatprep.subr.bf16.mxu0 0
    %863 = vmatpush1.bf16.msra.mxu0 0
    %864 = vmatprep.subr.bf16.mxu0 0
    %865 = vmatpush1.bf16.msra.mxu0 0
    %866 = vmatprep.subr.bf16.mxu0 0
    %867 = vmatpush1.bf16.msra.mxu0 0
    %868 = vmatprep.subr.bf16.mxu0 0
    %869 = vmatpush1.bf16.msra.mxu0 0
    %870 = vmatprep.subr.bf16.mxu0 0
    %871 = vmatpush1.bf16.msra.mxu0 0
    %872 = vmatprep.subr.bf16.mxu0 0
    %873 = vmatpush1.bf16.msra.mxu0 0
    %874 = vmatprep.subr.bf16.mxu0 0
    %875 = vmatpush1.bf16.msra.mxu0 0
    %876 = vmatprep.subr.bf16.mxu0 0
    %877 = vmatpush1.bf16.msra.mxu0 0
    %878 = vmatprep.subr.bf16.mxu0 0
    %879 = vmatpush1.bf16.msra.mxu0 0
    %880 = vmatprep.mubr.bf16.mxu0 0
    %881 = vmatmul.mubr.bf16.gmra.mrb[0].mxu0 %v790
    %v882 = vpop.f32.mrb[0].mxu0
    %v883 = vadd.f32 0.0, %v882
    %v884 = vpop.f32.mrb[0].mxu0
    %v885 = vpop.f32.mrb[0].mxu0
    %v886 = vpop.f32.mrb[0].mxu0
    %887 = vdwg.mxu0
    %v888 = vadd.f32 %v847, %v883
    %v889 = vadd.f32 %v888, %v73
    %v890 = vsel %vm155, %v889, -inf
    %891 = vmax.xlane.f32.xlu0 %v890
    %v892 = vpop.xlane.xlu0 %891
    %v893 = vsub.f32 %v889, %v892
    %v894 = vmul.f32 %v893, 1.442695
    %v895 = vpow.pop %v894
    %v896 = vsel %vm155, %v895, 0.0
    %897 = vadd.xlane.f32.xlu0 %v896
    %v898 = vpop.xlane.xlu0 %897
    %v899 = vrcp.pop %v898
    %v900 = vmul.f32 %v895, %v899
    %v901 = vpack.c.bf16 %v900, %v900
    %902 = vmatprep.subr.bf16.mxu0 0
    %903 = vmatpush1.bf16.msra.mxu0 %v200
    %904 = vmatprep.subr.bf16.mxu0 0
    %905 = vmatpush1.bf16.msra.mxu0 %v201
    %906 = vmatprep.subr.bf16.mxu0 0
    %907 = vmatpush1.bf16.msra.mxu0 %v202
    %908 = vmatprep.subr.bf16.mxu0 0
    %909 = vmatpush1.bf16.msra.mxu0 %v203
    %910 = vmatprep.subr.bf16.mxu0 0
    %911 = vmatpush1.bf16.msra.mxu0 %v204
    %912 = vmatprep.subr.bf16.mxu0 0
    %913 = vmatpush1.bf16.msra.mxu0 %v205
    %914 = vmatprep.subr.bf16.mxu0 0
    %915 = vmatpush1.bf16.msra.mxu0 %v206
    %916 = vmatprep.subr.bf16.mxu0 0
    %917 = vmatpush1.bf16.msra.mxu0 %v207
    %918 = vmatprep.subr.bf16.mxu0 0
    %919 = vmatpush1.bf16.msra.mxu0 0
    %920 = vmatprep.subr.bf16.mxu0 0
    %921 = vmatpush1.bf16.msra.mxu0 0
    %922 = vmatprep.subr.bf16.mxu0 0
    %923 = vmatpush1.bf16.msra.mxu0 0
    %924 = vmatprep.subr.bf16.mxu0 0
    %925 = vmatpush1.bf16.msra.mxu0 0
    %926 = vmatprep.subr.bf16.mxu0 0
    %927 = vmatpush1.bf16.msra.mxu0 0
    %928 = vmatprep.subr.bf16.mxu0 0
    %929 = vmatpush1.bf16.msra.mxu0 0
    %930 = vmatprep.subr.bf16.mxu0 0
    %931 = vmatpush1.bf16.msra.mxu0 0
    %932 = vmatprep.subr.bf16.mxu0 0
    %933 = vmatpush1.bf16.msra.mxu0 0
    %934 = vmatprep.mubr.bf16.mxu0 0
    %935 = vmatmul.mubr.bf16.gmra.mrb[0].mxu0 %v901
    %v936 = vpop.f32.mrb[0].mxu0
    %v937 = vadd.f32 0.0, %v936
    %v938 = vpop.f32.mrb[0].mxu0
    %v939 = vpop.f32.mrb[0].mxu0
    %v940 = vpop.f32.mrb[0].mxu0
    %941 = vdwg.mxu0
    %v942 = vld [vmem:[%s3 + $0x2] sm:$0x1]
    %v943 = vpack.c.bf16 %v937, %v937
    %v945 = vsel %vm109, %v943, 0
    %947 = vmatprep.subr.bf16.mxu0 0
    %948 = vmatpush1.bf16.msra.mxu0 %v266
    %949 = vmatprep.subr.bf16.mxu0 0
    %950 = vmatpush1.bf16.msra.mxu0 %v267
    %951 = vmatprep.subr.bf16.mxu0 0
    %952 = vmatpush1.bf16.msra.mxu0 0
    %953 = vmatprep.subr.bf16.mxu0 0
    %954 = vmatpush1.bf16.msra.mxu0 0
    %955 = vmatprep.subr.bf16.mxu0 0
    %956 = vmatpush1.bf16.msra.mxu0 0
    %957 = vmatprep.subr.bf16.mxu0 0
    %958 = vmatpush1.bf16.msra.mxu0 0
    %959 = vmatprep.subr.bf16.mxu0 0
    %960 = vmatpush1.bf16.msra.mxu0 0
    %961 = vmatprep.subr.bf16.mxu0 0
    %962 = vmatpush1.bf16.msra.mxu0 0
    %963 = vmatprep.subr.bf16.mxu0 0
    %964 = vmatpush1.bf16.msra.mxu0 0
    %965 = vmatprep.subr.bf16.mxu0 0
    %966 = vmatpush1.bf16.msra.mxu0 0
    %967 = vmatprep.subr.bf16.mxu0 0
    %968 = vmatpush1.bf16.msra.mxu0 0
    %969 = vmatprep.subr.bf16.mxu0 0
    %970 = vmatpush1.bf16.msra.mxu0 0
    %971 = vmatprep.subr.bf16.mxu0 0
    %972 = vmatpush1.bf16.msra.mxu0 0
    %973 = vmatprep.subr.bf16.mxu0 0
    %974 = vmatpush1.bf16.msra.mxu0 0
    %975 = vmatprep.subr.bf16.mxu0 0
    %976 = vmatpush1.bf16.msra.mxu0 0
    %977 = vmatprep.subr.bf16.mxu0 0
    %978 = vmatpush1.bf16.msra.mxu0 0
    %979 = vmatprep.mubr.bf16.mxu0 0
    %980 = vmatmul.mubr.bf16.gmra.mrb[0].mxu0 %v945
    %v981 = vpop.f32.mrb[0].mxu0
    %v982 = vadd.f32 0.0, %v981
    %v983 = vpop.f32.mrb[0].mxu0
    %v984 = vpop.f32.mrb[0].mxu0
    %v985 = vpop.f32.mrb[0].mxu0
    %986 = vdwg.mxu0
    %v987 = vadd.f32 %v942, %v982
    %v988 = vadd.f32 %v987, %v78
    %v989 = vmax.f32 %v988, 0.0
    %v990 = vpack.c.bf16 %v989, %v989
    %v992 = vsel %vm109, %v990, 0
    %994 = vmatprep.subr.bf16.mxu0 0
    %995 = vmatpush1.bf16.msra.mxu0 %v325
    %996 = vmatprep.subr.bf16.mxu0 0
    %997 = vmatpush1.bf16.msra.mxu0 %v326
    %998 = vmatprep.subr.bf16.mxu0 0
    %999 = vmatpush1.bf16.msra.mxu0 0
    %1000 = vmatprep.subr.bf16.mxu0 0
    %1001 = vmatpush1.bf16.msra.mxu0 0
    %1002 = vmatprep.subr.bf16.mxu0 0
    %1003 = vmatpush1.bf16.msra.mxu0 0
    %1004 = vmatprep.subr.bf16.mxu0 0
    %1005 = vmatpush1.bf16.msra.mxu0 0
    %1006 = vmatprep.subr.bf16.mxu0 0
    %1007 = vmatpush1.bf16.msra.mxu0 0
    %1008 = vmatprep.subr.bf16.mxu0 0
    %1009 = vmatpush1.bf16.msra.mxu0 0
    %1010 = vmatprep.subr.bf16.mxu0 0
    %1011 = vmatpush1.bf16.msra.mxu0 0
    %1012 = vmatprep.subr.bf16.mxu0 0
    %1013 = vmatpush1.bf16.msra.mxu0 0
    %1014 = vmatprep.subr.bf16.mxu0 0
    %1015 = vmatpush1.bf16.msra.mxu0 0
    %1016 = vmatprep.subr.bf16.mxu0 0
    %1017 = vmatpush1.bf16.msra.mxu0 0
    %1018 = vmatprep.subr.bf16.mxu0 0
    %1019 = vmatpush1.bf16.msra.mxu0 0
    %1020 = vmatprep.subr.bf16.mxu0 0
    %1021 = vmatpush1.bf16.msra.mxu0 0
    %1022 = vmatprep.subr.bf16.mxu0 0
    %1023 = vmatpush1.bf16.msra.mxu0 0
    %1024 = vmatprep.subr.bf16.mxu0 0
    %1025 = vmatpush1.bf16.msra.mxu0 0
    %1026 = vmatprep.mubr.bf16.mxu0 0
    %1027 = vmatmul.mubr.bf16.gmra.mrb[0].mxu0 %v992
    %v1028 = vpop.f32.mrb[0].mxu0
    %v1029 = vadd.f32 %v83, %v1028
    %v1030 = vpop.f32.mrb[0].mxu0
    %v1031 = vpop.f32.mrb[0].mxu0
    %v1032 = vpop.f32.mrb[0].mxu0
    %1033 = vdwg.mxu0
    %1034 = vmatprep.subr.bf16.mxu0 0
    %1035 = vmatpush1.bf16.msra.mxu0 %v380
    %1036 = vmatprep.subr.bf16.mxu0 0
    %1037 = vmatpush1.bf16.msra.mxu0 %v381
    %1038 = vmatprep.subr.bf16.mxu0 0
    %1039 = vmatpush1.bf16.msra.mxu0 0
    %1040 = vmatprep.subr.bf16.mxu0 0
    %1041 = vmatpush1.bf16.msra.mxu0 0
    %1042 = vmatprep.subr.bf16.mxu0 0
    %1043 = vmatpush1.bf16.msra.mxu0 0
    %1044 = vmatprep.subr.bf16.mxu0 0
    %1045 = vmatpush1.bf16.msra.mxu0 0
    %1046 = vmatprep.subr.bf16.mxu0 0
    %1047 = vmatpush1.bf16.msra.mxu0 0
    %1048 = vmatprep.subr.bf16.mxu0 0
    %1049 = vmatpush1.bf16.msra.mxu0 0
    %1050 = vmatprep.subr.bf16.mxu0 0
    %1051 = vmatpush1.bf16.msra.mxu0 0
    %1052 = vmatprep.subr.bf16.mxu0 0
    %1053 = vmatpush1.bf16.msra.mxu0 0
    %1054 = vmatprep.subr.bf16.mxu0 0
    %1055 = vmatpush1.bf16.msra.mxu0 0
    %1056 = vmatprep.subr.bf16.mxu0 0
    %1057 = vmatpush1.bf16.msra.mxu0 0
    %1058 = vmatprep.subr.bf16.mxu0 0
    %1059 = vmatpush1.bf16.msra.mxu0 0
    %1060 = vmatprep.subr.bf16.mxu0 0
    %1061 = vmatpush1.bf16.msra.mxu0 0
    %1062 = vmatprep.subr.bf16.mxu0 0
    %1063 = vmatpush1.bf16.msra.mxu0 0
    %1064 = vmatprep.subr.bf16.mxu0 0
    %1065 = vmatpush1.bf16.msra.mxu0 0
    %1066 = vmatprep.mubr.bf16.mxu0 0
    %1067 = vmatmul.mubr.bf16.gmra.mrb[0].mxu0 %v790
    %v1068 = vpop.f32.mrb[0].mxu0
    %v1069 = vadd.f32 %v88, %v1068
    %v1070 = vpop.f32.mrb[0].mxu0
    %v1071 = vpop.f32.mrb[0].mxu0
    %v1072 = vpop.f32.mrb[0].mxu0
    %1073 = vdwg.mxu0
    %v1074 = vadd.f32 %v1029, %v1069
    %v1075 = vxor.u32 %v1074, 2147483648
    %v1076 = vmul.f32 %v1075, 1.442695
    %v1077 = vpow.pop %v1076
    %v1078 = vadd.f32 %v1077, 1.0
    %v1079 = vrcp.pop %v1078
    %v1080 = vmul.f32 1.0, %v1079
    %1082 = vrot.lane.b32.xlu0 %v1069, 64
    %v1083 = vpop.permute.xlu0 %1082
    %v1085 = vmul.f32 %v1080, %v1083
    %1087 = vrot.lane.b32.xlu0 %v1085, 64
    %v1088 = vpop.permute.xlu0 %1087
    %v1090 = vadd.f32 %v1029, %v1088
    %v1091 = vtanh.pop %v1090
    %v1092 = vsub.f32 1.0, %v1080
    %1094 = vrot.lane.b32.xlu0 %v1091, 96
    %v1095 = vpop.permute.xlu0 %1094
    %v1097 = vmul.f32 %v1092, %v1095
    %v1098 = vmul.f32 %v1080, %v784
    %v1099 = vadd.f32 %v1097, %v1098
    %v1100 = vpack.c.bf16 %v1099, %v1099
    %1102 = vrot.lane.b32.xlu0 %v1100, 96
    %v1103 = vpop.permute.xlu0 %1102
    %v1105 = vsel %vm109, %v1103, 0
    %1107 = vmatprep.subr.bf16.mxu0 0
    %1108 = vmatpush1.bf16.msra.mxu0 %v470
    %1109 = vmatprep.subr.bf16.mxu0 0
    %1110 = vmatpush1.bf16.msra.mxu0 %v471
    %1111 = vmatprep.subr.bf16.mxu0 0
    %1112 = vmatpush1.bf16.msra.mxu0 0
    %1113 = vmatprep.subr.bf16.mxu0 0
    %1114 = vmatpush1.bf16.msra.mxu0 0
    %1115 = vmatprep.subr.bf16.mxu0 0
    %1116 = vmatpush1.bf16.msra.mxu0 0
    %1117 = vmatprep.subr.bf16.mxu0 0
    %1118 = vmatpush1.bf16.msra.mxu0 0
    %1119 = vmatprep.subr.bf16.mxu0 0
    %1120 = vmatpush1.bf16.msra.mxu0 0
    %1121 = vmatprep.subr.bf16.mxu0 0
    %1122 = vmatpush1.bf16.msra.mxu0 0
    %1123 = vmatprep.subr.bf16.mxu0 0
    %1124 = vmatpush1.bf16.msra.mxu0 0
    %1125 = vmatprep.subr.bf16.mxu0 0
    %1126 = vmatpush1.bf16.msra.mxu0 0
    %1127 = vmatprep.subr.bf16.mxu0 0
    %1128 = vmatpush1.bf16.msra.mxu0 0
    %1129 = vmatprep.subr.bf16.mxu0 0
    %1130 = vmatpush1.bf16.msra.mxu0 0
    %1131 = vmatprep.subr.bf16.mxu0 0
    %1132 = vmatpush1.bf16.msra.mxu0 0
    %1133 = vmatprep.subr.bf16.mxu0 0
    %1134 = vmatpush1.bf16.msra.mxu0 0
    %1135 = vmatprep.subr.bf16.mxu0 0
    %1136 = vmatpush1.bf16.msra.mxu0 0
    %1137 = vmatprep.subr.bf16.mxu0 0
    %1138 = vmatpush1.bf16.msra.mxu0 0
    %1139 = vmatprep.mubr.bf16.mxu0 0
    %1140 = vmatmul.mubr.bf16.gmra.mrb[0].mxu0 %v1105
    %v1141 = vpop.f32.mrb[0].mxu0
    %v1142 = vadd.f32 %v93, %v1141
    %v1143 = vpop.f32.mrb[0].mxu0
    %v1144 = vpop.f32.mrb[0].mxu0
    %v1145 = vpop.f32.mrb[0].mxu0
    %1146 = vdwg.mxu0
    %v1147 = vsel %vm155, %v1142, -inf
    %1148 = vmax.xlane.f32.xlu0 %v1147
    %v1149 = vpop.xlane.xlu0 %1148
    %v1150 = vsub.f32 %v1142, %v1149
    %v1151 = vmul.f32 %v1150, 1.442695
    %v1152 = vpow.pop %v1151
    %v1153 = vsel %vm155, %v1152, 0.0
    %1154 = vadd.xlane.f32.xlu0 %v1153
    %v1155 = vpop.xlane.xlu0 %1154
    %v1156 = vlog2.pop %v1155
    %v1157 = vmul.f32 %v1156, 0.6931472
    %v1158 = vadd.f32 %v1149, %v1157
    %v1159 = vsub.f32 %v1142, %v1158
    %1160 = vst [vmem:[#allocation2 + $0x2] sm:$0x1] %v1159
    %1161 = vst [vmem:[#allocation6 + $0x2] sm:$0x1] %v900
    %v1162 = vld [vmem:[%s2 + $0x3] sm:$0x1]
    %1163 = vmatprep.subr.bf16.mxu0 0
    %1164 = vmatpush1.bf16.msra.mxu0 %v105
    %1165 = vmatprep.subr.bf16.mxu0 0
    %1166 = vmatpush1.bf16.msra.mxu0 %v106
    %1167 = vmatprep.subr.bf16.mxu0 0
    %1168 = vmatpush1.bf16.msra.mxu0 0
    %1169 = vmatprep.subr.bf16.mxu0 0
    %1170 = vmatpush1.bf16.msra.mxu0 0
    %1171 = vmatprep.subr.bf16.mxu0 0
    %1172 = vmatpush1.bf16.msra.mxu0 0
    %1173 = vmatprep.subr.bf16.mxu0 0
    %1174 = vmatpush1.bf16.msra.mxu0 0
    %1175 = vmatprep.subr.bf16.mxu0 0
    %1176 = vmatpush1.bf16.msra.mxu0 0
    %1177 = vmatprep.subr.bf16.mxu0 0
    %1178 = vmatpush1.bf16.msra.mxu0 0
    %1179 = vmatprep.subr.bf16.mxu0 0
    %1180 = vmatpush1.bf16.msra.mxu0 0
    %1181 = vmatprep.subr.bf16.mxu0 0
    %1182 = vmatpush1.bf16.msra.mxu0 0
    %1183 = vmatprep.subr.bf16.mxu0 0
    %1184 = vmatpush1.bf16.msra.mxu0 0
    %1185 = vmatprep.subr.bf16.mxu0 0
    %1186 = vmatpush1.bf16.msra.mxu0 0
    %1187 = vmatprep.subr.bf16.mxu0 0
    %1188 = vmatpush1.bf16.msra.mxu0 0
    %1189 = vmatprep.subr.bf16.mxu0 0
    %1190 = vmatpush1.bf16.msra.mxu0 0
    %1191 = vmatprep.subr.bf16.mxu0 0
    %1192 = vmatpush1.bf16.msra.mxu0 0
    %1193 = vmatprep.subr.bf16.mxu0 0
    %1194 = vmatpush1.bf16.msra.mxu0 0
    %1195 = vmatprep.mubr.bf16.mxu0 0
    %1196 = vmatmul.mubr.bf16.gmra.mrb[0].mxu0 %v1105
    %v1197 = vpop.f32.mrb[0].mxu0
    %v1198 = vadd.f32 0.0, %v1197
    %v1199 = vpop.f32.mrb[0].mxu0
    %v1200 = vpop.f32.mrb[0].mxu0
    %v1201 = vpop.f32.mrb[0].mxu0
    %1202 = vdwg.mxu0
    %v1203 = vadd.f32 %v1162, %v1198
    %v1204 = vadd.f32 %v1203, %v73
    %v1205 = vsel %vm155, %v1204, -inf
    %1206 = vmax.xlane.f32.xlu0 %v1205
    %v1207 = vpop.xlane.xlu0 %1206
    %v1208 = vsub.f32 %v1204, %v1207
    %v1209 = vmul.f32 %v1208, 1.442695
    %v1210 = vpow.pop %v1209
    %v1211 = vsel %vm155, %v1210, 0.0
    %1212 = vadd.xlane.f32.xlu0 %v1211
    %v1213 = vpop.xlane.xlu0 %1212
    %v1214 = vrcp.pop %v1213
    %v1215 = vmul.f32 %v1210, %v1214
    %v1216 = vpack.c.bf16 %v1215, %v1215
    %1217 = vmatprep.subr.bf16.mxu0 0
    %1218 = vmatpush1.bf16.msra.mxu0 %v200
    %1219 = vmatprep.subr.bf16.mxu0 0
    %1220 = vmatpush1.bf16.msra.mxu0 %v201
    %1221 = vmatprep.subr.bf16.mxu0 0
    %1222 = vmatpush1.bf16.msra.mxu0 %v202
    %1223 = vmatprep.subr.bf16.mxu0 0
    %1224 = vmatpush1.bf16.msra.mxu0 %v203
    %1225 = vmatprep.subr.bf16.mxu0 0
    %1226 = vmatpush1.bf16.msra.mxu0 %v204
    %1227 = vmatprep.subr.bf16.mxu0 0
    %1228 = vmatpush1.bf16.msra.mxu0 %v205
    %1229 = vmatprep.subr.bf16.mxu0 0
    %1230 = vmatpush1.bf16.msra.mxu0 %v206
    %1231 = vmatprep.subr.bf16.mxu0 0
    %1232 = vmatpush1.bf16.msra.mxu0 %v207
    %1233 = vmatprep.subr.bf16.mxu0 0
    %1234 = vmatpush1.bf16.msra.mxu0 0
    %1235 = vmatprep.subr.bf16.mxu0 0
    %1236 = vmatpush1.bf16.msra.mxu0 0
    %1237 = vmatprep.subr.bf16.mxu0 0
    %1238 = vmatpush1.bf16.msra.mxu0 0
    %1239 = vmatprep.subr.bf16.mxu0 0
    %1240 = vmatpush1.bf16.msra.mxu0 0
    %1241 = vmatprep.subr.bf16.mxu0 0
    %1242 = vmatpush1.bf16.msra.mxu0 0
    %1243 = vmatprep.subr.bf16.mxu0 0
    %1244 = vmatpush1.bf16.msra.mxu0 0
    %1245 = vmatprep.subr.bf16.mxu0 0
    %1246 = vmatpush1.bf16.msra.mxu0 0
    %1247 = vmatprep.subr.bf16.mxu0 0
    %1248 = vmatpush1.bf16.msra.mxu0 0
    %1249 = vmatprep.mubr.bf16.mxu0 0
    %1250 = vmatmul.mubr.bf16.gmra.mrb[0].mxu0 %v1216
    %v1251 = vpop.f32.mrb[0].mxu0
    %v1252 = vadd.f32 0.0, %v1251
    %v1253 = vpop.f32.mrb[0].mxu0
    %v1254 = vpop.f32.mrb[0].mxu0
    %v1255 = vpop.f32.mrb[0].mxu0
    %1256 = vdwg.mxu0
    %v1257 = vld [vmem:[%s3 + $0x3] sm:$0x1]
    %v1258 = vpack.c.bf16 %v1252, %v1252
    %v1260 = vsel %vm109, %v1258, 0
    %1262 = vmatprep.subr.bf16.mxu0 0
    %1263 = vmatpush1.bf16.msra.mxu0 %v266
    %1264 = vmatprep.subr.bf16.mxu0 0
    %1265 = vmatpush1.bf16.msra.mxu0 %v267
    %1266 = vmatprep.subr.bf16.mxu0 0
    %1267 = vmatpush1.bf16.msra.mxu0 0
    %1268 = vmatprep.subr.bf16.mxu0 0
    %1269 = vmatpush1.bf16.msra.mxu0 0
    %1270 = vmatprep.subr.bf16.mxu0 0
    %1271 = vmatpush1.bf16.msra.mxu0 0
    %1272 = vmatprep.subr.bf16.mxu0 0
    %1273 = vmatpush1.bf16.msra.mxu0 0
    %1274 = vmatprep.subr.bf16.mxu0 0
    %1275 = vmatpush1.bf16.msra.mxu0 0
    %1276 = vmatprep.subr.bf16.mxu0 0
    %1277 = vmatpush1.bf16.msra.mxu0 0
    %1278 = vmatprep.subr.bf16.mxu0 0
    %1279 = vmatpush1.bf16.msra.mxu0 0
    %1280 = vmatprep.subr.bf16.mxu0 0
    %1281 = vmatpush1.bf16.msra.mxu0 0
    %1282 = vmatprep.subr.bf16.mxu0 0
    %1283 = vmatpush1.bf16.msra.mxu0 0
    %1284 = vmatprep.subr.bf16.mxu0 0
    %1285 = vmatpush1.bf16.msra.mxu0 0
    %1286 = vmatprep.subr.bf16.mxu0 0
    %1287 = vmatpush1.bf16.msra.mxu0 0
    %1288 = vmatprep.subr.bf16.mxu0 0
    %1289 = vmatpush1.bf16.msra.mxu0 0
    %1290 = vmatprep.subr.bf16.mxu0 0
    %1291 = vmatpush1.bf16.msra.mxu0 0
    %1292 = vmatprep.subr.bf16.mxu0 0
    %1293 = vmatpush1.bf16.msra.mxu0 0
    %1294 = vmatprep.mubr.bf16.mxu0 0
    %1295 = vmatmul.mubr.bf16.gmra.mrb[0].mxu0 %v1260
    %v1296 = vpop.f32.mrb[0].mxu0
    %v1297 = vadd.f32 0.0, %v1296
    %v1298 = vpop.f32.mrb[0].mxu0
    %v1299 = vpop.f32.mrb[0].mxu0
    %v1300 = vpop.f32.mrb[0].mxu0
    %1301 = vdwg.mxu0
    %v1302 = vadd.f32 %v1257, %v1297
    %v1303 = vadd.f32 %v1302, %v78
    %v1304 = vmax.f32 %v1303, 0.0
    %v1305 = vpack.c.bf16 %v1304, %v1304
    %v1307 = vsel %vm109, %v1305, 0
    %1309 = vmatprep.subr.bf16.mxu0 0
    %1310 = vmatpush1.bf16.msra.mxu0 %v325
    %1311 = vmatprep.subr.bf16.mxu0 0
    %1312 = vmatpush1.bf16.msra.mxu0 %v326
    %1313 = vmatprep.subr.bf16.mxu0 0
    %1314 = vmatpush1.bf16.msra.mxu0 0
    %1315 = vmatprep.subr.bf16.mxu0 0
    %1316 = vmatpush1.bf16.msra.mxu0 0
    %1317 = vmatprep.subr.bf16.mxu0 0
    %1318 = vmatpush1.bf16.msra.mxu0 0
    %1319 = vmatprep.subr.bf16.mxu0 0
    %1320 = vmatpush1.bf16.msra.mxu0 0
    %1321 = vmatprep.subr.bf16.mxu0 0
    %1322 = vmatpush1.bf16.msra.mxu0 0
    %1323 = vmatprep.subr.bf16.mxu0 0
    %1324 = vmatpush1.bf16.msra.mxu0 0
    %1325 = vmatprep.subr.bf16.mxu0 0
    %1326 = vmatpush1.bf16.msra.mxu0 0
    %1327 = vmatprep.subr.bf16.mxu0 0
    %1328 = vmatpush1.bf16.msra.mxu0 0
    %1329 = vmatprep.subr.bf16.mxu0 0
    %1330 = vmatpush1.bf16.msra.mxu0 0
    %1331 = vmatprep.subr.bf16.mxu0 0
    %1332 = vmatpush1.bf16.msra.mxu0 0
    %1333 = vmatprep.subr.bf16.mxu0 0
    %1334 = vmatpush1.bf16.msra.mxu0 0
    %1335 = vmatprep.subr.bf16.mxu0 0
    %1336 = vmatpush1.bf16.msra.mxu0 0
    %1337 = vmatprep.subr.bf16.mxu0 0
    %1338 = vmatpush1.bf16.msra.mxu0 0
    %1339 = vmatprep.subr.bf16.mxu0 0
    %1340 = vmatpush1.bf16.msra.mxu0 0
    %1341 = vmatprep.mubr.bf16.mxu0 0
    %1342 = vmatmul.mubr.bf16.gmra.mrb[0].mxu0 %v1307
    %v1343 = vpop.f32.mrb[0].mxu0
    %v1344 = vadd.f32 %v83, %v1343
    %v1345 = vpop.f32.mrb[0].mxu0
    %v1346 = vpop.f32.mrb[0].mxu0
    %v1347 = vpop.f32.mrb[0].mxu0
    %1348 = vdwg.mxu0
    %1349 = vmatprep.subr.bf16.mxu0 0
    %1350 = vmatpush1.bf16.msra.mxu0 %v380
    %1351 = vmatprep.subr.bf16.mxu0 0
    %1352 = vmatpush1.bf16.msra.mxu0 %v381
    %1353 = vmatprep.subr.bf16.mxu0 0
    %1354 = vmatpush1.bf16.msra.mxu0 0
    %1355 = vmatprep.subr.bf16.mxu0 0
    %1356 = vmatpush1.bf16.msra.mxu0 0
    %1357 = vmatprep.subr.bf16.mxu0 0
    %1358 = vmatpush1.bf16.msra.mxu0 0
    %1359 = vmatprep.subr.bf16.mxu0 0
    %1360 = vmatpush1.bf16.msra.mxu0 0
    %1361 = vmatprep.subr.bf16.mxu0 0
    %1362 = vmatpush1.bf16.msra.mxu0 0
    %1363 = vmatprep.subr.bf16.mxu0 0
    %1364 = vmatpush1.bf16.msra.mxu0 0
    %1365 = vmatprep.subr.bf16.mxu0 0
    %1366 = vmatpush1.bf16.msra.mxu0 0
    %1367 = vmatprep.subr.bf16.mxu0 0
    %1368 = vmatpush1.bf16.msra.mxu0 0
    %1369 = vmatprep.subr.bf16.mxu0 0
    %1370 = vmatpush1.bf16.msra.mxu0 0
    %1371 = vmatprep.subr.bf16.mxu0 0
    %1372 = vmatpush1.bf16.msra.mxu0 0
    %1373 = vmatprep.subr.bf16.mxu0 0
    %1374 = vmatpush1.bf16.msra.mxu0 0
    %1375 = vmatprep.subr.bf16.mxu0 0
    %1376 = vmatpush1.bf16.msra.mxu0 0
    %1377 = vmatprep.subr.bf16.mxu0 0
    %1378 = vmatpush1.bf16.msra.mxu0 0
    %1379 = vmatprep.subr.bf16.mxu0 0
    %1380 = vmatpush1.bf16.msra.mxu0 0
    %1381 = vmatprep.mubr.bf16.mxu0 0
    %1382 = vmatmul.mubr.bf16.gmra.mrb[0].mxu0 %v1105
    %v1383 = vpop.f32.mrb[0].mxu0
    %v1384 = vadd.f32 %v88, %v1383
    %v1385 = vpop.f32.mrb[0].mxu0
    %v1386 = vpop.f32.mrb[0].mxu0
    %v1387 = vpop.f32.mrb[0].mxu0
    %1388 = vdwg.mxu0
    %v1389 = vadd.f32 %v1344, %v1384
    %v1390 = vxor.u32 %v1389, 2147483648
    %v1391 = vmul.f32 %v1390, 1.442695
    %v1392 = vpow.pop %v1391
    %v1393 = vadd.f32 %v1392, 1.0
    %v1394 = vrcp.pop %v1393
    %v1395 = vmul.f32 1.0, %v1394
    %1397 = vrot.lane.b32.xlu0 %v1384, 64
    %v1398 = vpop.permute.xlu0 %1397
    %v1400 = vmul.f32 %v1395, %v1398
    %1402 = vrot.lane.b32.xlu0 %v1400, 64
    %v1403 = vpop.permute.xlu0 %1402
    %v1405 = vadd.f32 %v1344, %v1403
    %v1406 = vtanh.pop %v1405
    %v1407 = vsub.f32 1.0, %v1395
    %1409 = vrot.lane.b32.xlu0 %v1406, 96
    %v1410 = vpop.permute.xlu0 %1409
    %v1412 = vmul.f32 %v1407, %v1410
    %v1413 = vmul.f32 %v1395, %v1099
    %v1414 = vadd.f32 %v1412, %v1413
    %v1415 = vpack.c.bf16 %v1414, %v1414
    %1417 = vrot.lane.b32.xlu0 %v1415, 96
    %v1418 = vpop.permute.xlu0 %1417
    %v1420 = vsel %vm109, %v1418, 0
    %1422 = vmatprep.subr.bf16.mxu0 0
    %1423 = vmatpush1.bf16.msra.mxu0 %v470
    %1424 = vmatprep.subr.bf16.mxu0 0
    %1425 = vmatpush1.bf16.msra.mxu0 %v471
    %1426 = vmatprep.subr.bf16.mxu0 0
    %1427 = vmatpush1.bf16.msra.mxu0 0
    %1428 = vmatprep.subr.bf16.mxu0 0
    %1429 = vmatpush1.bf16.msra.mxu0 0
    %1430 = vmatprep.subr.bf16.mxu0 0
    %1431 = vmatpush1.bf16.msra.mxu0 0
    %1432 = vmatprep.subr.bf16.mxu0 0
    %1433 = vmatpush1.bf16.msra.mxu0 0
    %1434 = vmatprep.subr.bf16.mxu0 0
    %1435 = vmatpush1.bf16.msra.mxu0 0
    %1436 = vmatprep.subr.bf16.mxu0 0
    %1437 = vmatpush1.bf16.msra.mxu0 0
    %1438 = vmatprep.subr.bf16.mxu0 0
    %1439 = vmatpush1.bf16.msra.mxu0 0
    %1440 = vmatprep.subr.bf16.mxu0 0
    %1441 = vmatpush1.bf16.msra.mxu0 0
    %1442 = vmatprep.subr.bf16.mxu0 0
    %1443 = vmatpush1.bf16.msra.mxu0 0
    %1444 = vmatprep.subr.bf16.mxu0 0
    %1445 = vmatpush1.bf16.msra.mxu0 0
    %1446 = vmatprep.subr.bf16.mxu0 0
    %1447 = vmatpush1.bf16.msra.mxu0 0
    %1448 = vmatprep.subr.bf16.mxu0 0
    %1449 = vmatpush1.bf16.msra.mxu0 0
    %1450 = vmatprep.subr.bf16.mxu0 0
    %1451 = vmatpush1.bf16.msra.mxu0 0
    %1452 = vmatprep.subr.bf16.mxu0 0
    %1453 = vmatpush1.bf16.msra.mxu0 0
    %1454 = vmatprep.mubr.bf16.mxu0 0
    %1455 = vmatmul.mubr.bf16.gmra.mrb[0].mxu0 %v1420
    %v1456 = vpop.f32.mrb[0].mxu0
    %v1457 = vadd.f32 %v93, %v1456
    %v1458 = vpop.f32.mrb[0].mxu0
    %v1459 = vpop.f32.mrb[0].mxu0
    %v1460 = vpop.f32.mrb[0].mxu0
    %1461 = vdwg.mxu0
    %v1462 = vsel %vm155, %v1457, -inf
    %1463 = vmax.xlane.f32.xlu0 %v1462
    %v1464 = vpop.xlane.xlu0 %1463
    %v1465 = vsub.f32 %v1457, %v1464
    %v1466 = vmul.f32 %v1465, 1.442695
    %v1467 = vpow.pop %v1466
    %v1468 = vsel %vm155, %v1467, 0.0
    %1469 = vadd.xlane.f32.xlu0 %v1468
    %v1470 = vpop.xlane.xlu0 %1469
    %v1471 = vlog2.pop %v1470
    %v1472 = vmul.f32 %v1471, 0.6931472
    %v1473 = vadd.f32 %v1464, %v1472
    %v1474 = vsub.f32 %v1457, %v1473
    %1475 = vst [vmem:[#allocation2 + $0x3] sm:$0x1] %v1474
    %1476 = vst [vmem:[#allocation6 + $0x3] sm:$0x1] %v1215
    %v1477 = vld [vmem:[%s2 + $0x4] sm:$0x1]
    %1478 = vmatprep.subr.bf16.mxu0 0
    %1479 = vmatpush1.bf16.msra.mxu0 %v105
    %1480 = vmatprep.subr.bf16.mxu0 0
    %1481 = vmatpush1.bf16.msra.mxu0 %v106
    %1482 = vmatprep.subr.bf16.mxu0 0
    %1483 = vmatpush1.bf16.msra.mxu0 0
    %1484 = vmatprep.subr.bf16.mxu0 0
    %1485 = vmatpush1.bf16.msra.mxu0 0
    %1486 = vmatprep.subr.bf16.mxu0 0
    %1487 = vmatpush1.bf16.msra.mxu0 0
    %1488 = vmatprep.subr.bf16.mxu0 0
    %1489 = vmatpush1.bf16.msra.mxu0 0
    %1490 = vmatprep.subr.bf16.mxu0 0
    %1491 = vmatpush1.bf16.msra.mxu0 0
    %1492 = vmatprep.subr.bf16.mxu0 0
    %1493 = vmatpush1.bf16.msra.mxu0 0
    %1494 = vmatprep.subr.bf16.mxu0 0
    %1495 = vmatpush1.bf16.msra.mxu0 0
    %1496 = vmatprep.subr.bf16.mxu0 0
    %1497 = vmatpush1.bf16.msra.mxu0 0
    %1498 = vmatprep.subr.bf16.mxu0 0
    %1499 = vmatpush1.bf16.msra.mxu0 0
    %1500 = vmatprep.subr.bf16.mxu0 0
    %1501 = vmatpush1.bf16.msra.mxu0 0
    %1502 = vmatprep.subr.bf16.mxu0 0
    %1503 = vmatpush1.bf16.msra.mxu0 0
    %1504 = vmatprep.subr.bf16.mxu0 0
    %1505 = vmatpush1.bf16.msra.mxu0 0
    %1506 = vmatprep.subr.bf16.mxu0 0
    %1507 = vmatpush1.bf16.msra.mxu0 0
    %1508 = vmatprep.subr.bf16.mxu0 0
    %1509 = vmatpush1.bf16.msra.mxu0 0
    %1510 = vmatprep.mubr.bf16.mxu0 0
    %1511 = vmatmul.mubr.bf16.gmra.mrb[0].mxu0 %v1420
    %v1512 = vpop.f32.mrb[0].mxu0
    %v1513 = vadd.f32 0.0, %v1512
    %v1514 = vpop.f32.mrb[0].mxu0
    %v1515 = vpop.f32.mrb[0].mxu0
    %v1516 = vpop.f32.mrb[0].mxu0
    %1517 = vdwg.mxu0
    %v1518 = vadd.f32 %v1477, %v1513
    %v1519 = vadd.f32 %v1518, %v73
    %v1520 = vsel %vm155, %v1519, -inf
    %1521 = vmax.xlane.f32.xlu0 %v1520
    %v1522 = vpop.xlane.xlu0 %1521
    %v1523 = vsub.f32 %v1519, %v1522
    %v1524 = vmul.f32 %v1523, 1.442695
    %v1525 = vpow.pop %v1524
    %v1526 = vsel %vm155, %v1525, 0.0
    %1527 = vadd.xlane.f32.xlu0 %v1526
    %v1528 = vpop.xlane.xlu0 %1527
    %v1529 = vrcp.pop %v1528
    %v1530 = vmul.f32 %v1525, %v1529
    %v1531 = vpack.c.bf16 %v1530, %v1530
    %1532 = vmatprep.subr.bf16.mxu0 0
    %1533 = vmatpush1.bf16.msra.mxu0 %v200
    %1534 = vmatprep.subr.bf16.mxu0 0
    %1535 = vmatpush1.bf16.msra.mxu0 %v201
    %1536 = vmatprep.subr.bf16.mxu0 0
    %1537 = vmatpush1.bf16.msra.mxu0 %v202
    %1538 = vmatprep.subr.bf16.mxu0 0
    %1539 = vmatpush1.bf16.msra.mxu0 %v203
    %1540 = vmatprep.subr.bf16.mxu0 0
    %1541 = vmatpush1.bf16.msra.mxu0 %v204
    %1542 = vmatprep.subr.bf16.mxu0 0
    %1543 = vmatpush1.bf16.msra.mxu0 %v205
    %1544 = vmatprep.subr.bf16.mxu0 0
    %1545 = vmatpush1.bf16.msra.mxu0 %v206
    %1546 = vmatprep.subr.bf16.mxu0 0
    %1547 = vmatpush1.bf16.msra.mxu0 %v207
    %1548 = vmatprep.subr.bf16.mxu0 0
    %1549 = vmatpush1.bf16.msra.mxu0 0
    %1550 = vmatprep.subr.bf16.mxu0 0
    %1551 = vmatpush1.bf16.msra.mxu0 0
    %1552 = vmatprep.subr.bf16.mxu0 0
    %1553 = vmatpush1.bf16.msra.mxu0 0
    %1554 = vmatprep.subr.bf16.mxu0 0
    %1555 = vmatpush1.bf16.msra.mxu0 0
    %1556 = vmatprep.subr.bf16.mxu0 0
    %1557 = vmatpush1.bf16.msra.mxu0 0
    %1558 = vmatprep.subr.bf16.mxu0 0
    %1559 = vmatpush1.bf16.msra.mxu0 0
    %1560 = vmatprep.subr.bf16.mxu0 0
    %1561 = vmatpush1.bf16.msra.mxu0 0
    %1562 = vmatprep.subr.bf16.mxu0 0
    %1563 = vmatpush1.bf16.msra.mxu0 0
    %1564 = vmatprep.mubr.bf16.mxu0 0
    %1565 = vmatmul.mubr.bf16.gmra.mrb[0].mxu0 %v1531
    %v1566 = vpop.f32.mrb[0].mxu0
    %v1567 = vadd.f32 0.0, %v1566
    %v1568 = vpop.f32.mrb[0].mxu0
    %v1569 = vpop.f32.mrb[0].mxu0
    %v1570 = vpop.f32.mrb[0].mxu0
    %1571 = vdwg.mxu0
    %v1572 = vld [vmem:[%s3 + $0x4] sm:$0x1]
    %v1573 = vpack.c.bf16 %v1567, %v1567
    %v1575 = vsel %vm109, %v1573, 0
    %1577 = vmatprep.subr.bf16.mxu0 0
    %1578 = vmatpush1.bf16.msra.mxu0 %v266
    %1579 = vmatprep.subr.bf16.mxu0 0
    %1580 = vmatpush1.bf16.msra.mxu0 %v267
    %1581 = vmatprep.subr.bf16.mxu0 0
    %1582 = vmatpush1.bf16.msra.mxu0 0
    %1583 = vmatprep.subr.bf16.mxu0 0
    %1584 = vmatpush1.bf16.msra.mxu0 0
    %1585 = vmatprep.subr.bf16.mxu0 0
    %1586 = vmatpush1.bf16.msra.mxu0 0
    %1587 = vmatprep.subr.bf16.mxu0 0
    %1588 = vmatpush1.bf16.msra.mxu0 0
    %1589 = vmatprep.subr.bf16.mxu0 0
    %1590 = vmatpush1.bf16.msra.mxu0 0
    %1591 = vmatprep.subr.bf16.mxu0 0
    %1592 = vmatpush1.bf16.msra.mxu0 0
    %1593 = vmatprep.subr.bf16.mxu0 0
    %1594 = vmatpush1.bf16.msra.mxu0 0
    %1595 = vmatprep.subr.bf16.mxu0 0
    %1596 = vmatpush1.bf16.msra.mxu0 0
    %1597 = vmatprep.subr.bf16.mxu0 0
    %1598 = vmatpush1.bf16.msra.mxu0 0
    %1599 = vmatprep.subr.bf16.mxu0 0
    %1600 = vmatpush1.bf16.msra.mxu0 0
    %1601 = vmatprep.subr.bf16.mxu0 0
    %1602 = vmatpush1.bf16.msra.mxu0 0
    %1603 = vmatprep.subr.bf16.mxu0 0
    %1604 = vmatpush1.bf16.msra.mxu0 0
    %1605 = vmatprep.subr.bf16.mxu0 0
    %1606 = vmatpush1.bf16.msra.mxu0 0
    %1607 = vmatprep.subr.bf16.mxu0 0
    %1608 = vmatpush1.bf16.msra.mxu0 0
    %1609 = vmatprep.mubr.bf16.mxu0 0
    %1610 = vmatmul.mubr.bf16.gmra.mrb[0].mxu0 %v1575
    %v1611 = vpop.f32.mrb[0].mxu0
    %v1612 = vadd.f32 0.0, %v1611
    %v1613 = vpop.f32.mrb[0].mxu0
    %v1614 = vpop.f32.mrb[0].mxu0
    %v1615 = vpop.f32.mrb[0].mxu0
    %1616 = vdwg.mxu0
    %v1617 = vadd.f32 %v1572, %v1612
    %v1618 = vadd.f32 %v1617, %v78
    %v1619 = vmax.f32 %v1618, 0.0
    %v1620 = vpack.c.bf16 %v1619, %v1619
    %v1622 = vsel %vm109, %v1620, 0
    %1624 = vmatprep.subr.bf16.mxu0 0
    %1625 = vmatpush1.bf16.msra.mxu0 %v325
    %1626 = vmatprep.subr.bf16.mxu0 0
    %1627 = vmatpush1.bf16.msra.mxu0 %v326
    %1628 = vmatprep.subr.bf16.mxu0 0
    %1629 = vmatpush1.bf16.msra.mxu0 0
    %1630 = vmatprep.subr.bf16.mxu0 0
    %1631 = vmatpush1.bf16.msra.mxu0 0
    %1632 = vmatprep.subr.bf16.mxu0 0
    %1633 = vmatpush1.bf16.msra.mxu0 0
    %1634 = vmatprep.subr.bf16.mxu0 0
    %1635 = vmatpush1.bf16.msra.mxu0 0
    %1636 = vmatprep.subr.bf16.mxu0 0
    %1637 = vmatpush1.bf16.msra.mxu0 0
    %1638 = vmatprep.subr.bf16.mxu0 0
    %1639 = vmatpush1.bf16.msra.mxu0 0
    %1640 = vmatprep.subr.bf16.mxu0 0
    %1641 = vmatpush1.bf16.msra.mxu0 0
    %1642 = vmatprep.subr.bf16.mxu0 0
    %1643 = vmatpush1.bf16.msra.mxu0 0
    %1644 = vmatprep.subr.bf16.mxu0 0
    %1645 = vmatpush1.bf16.msra.mxu0 0
    %1646 = vmatprep.subr.bf16.mxu0 0
    %1647 = vmatpush1.bf16.msra.mxu0 0
    %1648 = vmatprep.subr.bf16.mxu0 0
    %1649 = vmatpush1.bf16.msra.mxu0 0
    %1650 = vmatprep.subr.bf16.mxu0 0
    %1651 = vmatpush1.bf16.msra.mxu0 0
    %1652 = vmatprep.subr.bf16.mxu0 0
    %1653 = vmatpush1.bf16.msra.mxu0 0
    %1654 = vmatprep.subr.bf16.mxu0 0
    %1655 = vmatpush1.bf16.msra.mxu0 0
    %1656 = vmatprep.mubr.bf16.mxu0 0
    %1657 = vmatmul.mubr.bf16.gmra.mrb[0].mxu0 %v1622
    %v1658 = vpop.f32.mrb[0].mxu0
    %v1659 = vadd.f32 %v83, %v1658
    %v1660 = vpop.f32.mrb[0].mxu0
    %v1661 = vpop.f32.mrb[0].mxu0
    %v1662 = vpop.f32.mrb[0].mxu0
    %1663 = vdwg.mxu0
    %1664 = vmatprep.subr.bf16.mxu0 0
    %1665 = vmatpush1.bf16.msra.mxu0 %v380
    %1666 = vmatprep.subr.bf16.mxu0 0
    %1667 = vmatpush1.bf16.msra.mxu0 %v381
    %1668 = vmatprep.subr.bf16.mxu0 0
    %1669 = vmatpush1.bf16.msra.mxu0 0
    %1670 = vmatprep.subr.bf16.mxu0 0
    %1671 = vmatpush1.bf16.msra.mxu0 0
    %1672 = vmatprep.subr.bf16.mxu0 0
    %1673 = vmatpush1.bf16.msra.mxu0 0
    %1674 = vmatprep.subr.bf16.mxu0 0
    %1675 = vmatpush1.bf16.msra.mxu0 0
    %1676 = vmatprep.subr.bf16.mxu0 0
    %1677 = vmatpush1.bf16.msra.mxu0 0
    %1678 = vmatprep.subr.bf16.mxu0 0
    %1679 = vmatpush1.bf16.msra.mxu0 0
    %1680 = vmatprep.subr.bf16.mxu0 0
    %1681 = vmatpush1.bf16.msra.mxu0 0
    %1682 = vmatprep.subr.bf16.mxu0 0
    %1683 = vmatpush1.bf16.msra.mxu0 0
    %1684 = vmatprep.subr.bf16.mxu0 0
    %1685 = vmatpush1.bf16.msra.mxu0 0
    %1686 = vmatprep.subr.bf16.mxu0 0
    %1687 = vmatpush1.bf16.msra.mxu0 0
    %1688 = vmatprep.subr.bf16.mxu0 0
    %1689 = vmatpush1.bf16.msra.mxu0 0
    %1690 = vmatprep.subr.bf16.mxu0 0
    %1691 = vmatpush1.bf16.msra.mxu0 0
    %1692 = vmatprep.subr.bf16.mxu0 0
    %1693 = vmatpush1.bf16.msra.mxu0 0
    %1694 = vmatprep.subr.bf16.mxu0 0
    %1695 = vmatpush1.bf16.msra.mxu0 0
    %1696 = vmatprep.mubr.bf16.mxu0 0
    %1697 = vmatmul.mubr.bf16.gmra.mrb[0].mxu0 %v1420
    %v1698 = vpop.f32.mrb[0].mxu0
    %v1699 = vadd.f32 %v88, %v1698
    %v1700 = vpop.f32.mrb[0].mxu0
    %v1701 = vpop.f32.mrb[0].mxu0
    %v1702 = vpop.f32.mrb[0].mxu0
    %1703 = vdwg.mxu0
    %v1704 = vadd.f32 %v1659, %v1699
    %v1705 = vxor.u32 %v1704, 2147483648
    %v1706 = vmul.f32 %v1705, 1.442695
    %v1707 = vpow.pop %v1706
    %v1708 = vadd.f32 %v1707, 1.0
    %v1709 = vrcp.pop %v1708
    %v1710 = vmul.f32 1.0, %v1709
    %1712 = vrot.lane.b32.xlu0 %v1699, 64
    %v1713 = vpop.permute.xlu0 %1712
    %v1715 = vmul.f32 %v1710, %v1713
    %1717 = vrot.lane.b32.xlu0 %v1715, 64
    %v1718 = vpop.permute.xlu0 %1717
    %v1720 = vadd.f32 %v1659, %v1718
    %v1721 = vtanh.pop %v1720
    %v1722 = vsub.f32 1.0, %v1710
    %1724 = vrot.lane.b32.xlu0 %v1721, 96
    %v1725 = vpop.permute.xlu0 %1724
    %v1727 = vmul.f32 %v1722, %v1725
    %v1728 = vmul.f32 %v1710, %v1414
    %v1729 = vadd.f32 %v1727, %v1728
    %v1730 = vpack.c.bf16 %v1729, %v1729
    %1732 = vrot.lane.b32.xlu0 %v1730, 96
    %v1733 = vpop.permute.xlu0 %1732
    %v1735 = vsel %vm109, %v1733, 0
    %1737 = vmatprep.subr.bf16.mxu0 0
    %1738 = vmatpush1.bf16.msra.mxu0 %v470
    %1739 = vmatprep.subr.bf16.mxu0 0
    %1740 = vmatpush1.bf16.msra.mxu0 %v471
    %1741 = vmatprep.subr.bf16.mxu0 0
    %1742 = vmatpush1.bf16.msra.mxu0 0
    %1743 = vmatprep.subr.bf16.mxu0 0
    %1744 = vmatpush1.bf16.msra.mxu0 0
    %1745 = vmatprep.subr.bf16.mxu0 0
    %1746 = vmatpush1.bf16.msra.mxu0 0
    %1747 = vmatprep.subr.bf16.mxu0 0
    %1748 = vmatpush1.bf16.msra.mxu0 0
    %1749 = vmatprep.subr.bf16.mxu0 0
    %1750 = vmatpush1.bf16.msra.mxu0 0
    %1751 = vmatprep.subr.bf16.mxu0 0
    %1752 = vmatpush1.bf16.msra.mxu0 0
    %1753 = vmatprep.subr.bf16.mxu0 0
    %1754 = vmatpush1.bf16.msra.mxu0 0
    %1755 = vmatprep.subr.bf16.mxu0 0
    %1756 = vmatpush1.bf16.msra.mxu0 0
    %1757 = vmatprep.subr.bf16.mxu0 0
    %1758 = vmatpush1.bf16.msra.mxu0 0
    %1759 = vmatprep.subr.bf16.mxu0 0
    %1760 = vmatpush1.bf16.msra.mxu0 0
    %1761 = vmatprep.subr.bf16.mxu0 0
    %1762 = vmatpush1.bf16.msra.mxu0 0
    %1763 = vmatprep.subr.bf16.mxu0 0
    %1764 = vmatpush1.bf16.msra.mxu0 0
    %1765 = vmatprep.subr.bf16.mxu0 0
    %1766 = vmatpush1.bf16.msra.mxu0 0
    %1767 = vmatprep.subr.bf16.mxu0 0
    %1768 = vmatpush1.bf16.msra.mxu0 0
    %1769 = vmatprep.mubr.bf16.mxu0 0
    %1770 = vmatmul.mubr.bf16.gmra.mrb[0].mxu0 %v1735
    %v1771 = vpop.f32.mrb[0].mxu0
    %v1772 = vadd.f32 %v93, %v1771
    %v1773 = vpop.f32.mrb[0].mxu0
    %v1774 = vpop.f32.mrb[0].mxu0
    %v1775 = vpop.f32.mrb[0].mxu0
    %1776 = vdwg.mxu0
    %v1777 = vsel %vm155, %v1772, -inf
    %1778 = vmax.xlane.f32.xlu0 %v1777
    %v1779 = vpop.xlane.xlu0 %1778
    %v1780 = vsub.f32 %v1772, %v1779
    %v1781 = vmul.f32 %v1780, 1.442695
    %v1782 = vpow.pop %v1781
    %v1783 = vsel %vm155, %v1782, 0.0
    %1784 = vadd.xlane.f32.xlu0 %v1783
    %v1785 = vpop.xlane.xlu0 %1784
    %v1786 = vlog2.pop %v1785
    %v1787 = vmul.f32 %v1786, 0.6931472
    %v1788 = vadd.f32 %v1779, %v1787
    %v1789 = vsub.f32 %v1772, %v1788
    %1790 = vst [vmem:[#allocation2 + $0x4] sm:$0x1] %v1789
    %1791 = vst [vmem:[#allocation6 + $0x4] sm:$0x1] %v1530
    %v1792 = vld [vmem:[%s2 + $0x5] sm:$0x1]
    %1793 = vmatprep.subr.bf16.mxu0 0
    %1794 = vmatpush1.bf16.msra.mxu0 %v105
    %1795 = vmatprep.subr.bf16.mxu0 0
    %1796 = vmatpush1.bf16.msra.mxu0 %v106
    %1797 = vmatprep.subr.bf16.mxu0 0
    %1798 = vmatpush1.bf16.msra.mxu0 0
    %1799 = vmatprep.subr.bf16.mxu0 0
    %1800 = vmatpush1.bf16.msra.mxu0 0
    %1801 = vmatprep.subr.bf16.mxu0 0
    %1802 = vmatpush1.bf16.msra.mxu0 0
    %1803 = vmatprep.subr.bf16.mxu0 0
    %1804 = vmatpush1.bf16.msra.mxu0 0
    %1805 = vmatprep.subr.bf16.mxu0 0
    %1806 = vmatpush1.bf16.msra.mxu0 0
    %1807 = vmatprep.subr.bf16.mxu0 0
    %1808 = vmatpush1.bf16.msra.mxu0 0
    %1809 = vmatprep.subr.bf16.mxu0 0
    %1810 = vmatpush1.bf16.msra.mxu0 0
    %1811 = vmatprep.subr.bf16.mxu0 0
    %1812 = vmatpush1.bf16.msra.mxu0 0
    %1813 = vmatprep.subr.bf16.mxu0 0
    %1814 = vmatpush1.bf16.msra.mxu0 0
    %1815 = vmatprep.subr.bf16.mxu0 0
    %1816 = vmatpush1.bf16.msra.mxu0 0
    %1817 = vmatprep.subr.bf16.mxu0 0
    %1818 = vmatpush1.bf16.msra.mxu0 0
    %1819 = vmatprep.subr.bf16.mxu0 0
    %1820 = vmatpush1.bf16.msra.mxu0 0
    %1821 = vmatprep.subr.bf16.mxu0 0
    %1822 = vmatpush1.bf16.msra.mxu0 0
    %1823 = vmatprep.subr.bf16.mxu0 0
    %1824 = vmatpush1.bf16.msra.mxu0 0
    %1825 = vmatprep.mubr.bf16.mxu0 0
    %1826 = vmatmul.mubr.bf16.gmra.mrb[0].mxu0 %v1735
    %v1827 = vpop.f32.mrb[0].mxu0
    %v1828 = vadd.f32 0.0, %v1827
    %v1829 = vpop.f32.mrb[0].mxu0
    %v1830 = vpop.f32.mrb[0].mxu0
    %v1831 = vpop.f32.mrb[0].mxu0
    %1832 = vdwg.mxu0
    %v1833 = vadd.f32 %v1792, %v1828
    %v1834 = vadd.f32 %v1833, %v73
    %v1835 = vsel %vm155, %v1834, -inf
    %1836 = vmax.xlane.f32.xlu0 %v1835
    %v1837 = vpop.xlane.xlu0 %1836
    %v1838 = vsub.f32 %v1834, %v1837
    %v1839 = vmul.f32 %v1838, 1.442695
    %v1840 = vpow.pop %v1839
    %v1841 = vsel %vm155, %v1840, 0.0
    %1842 = vadd.xlane.f32.xlu0 %v1841
    %v1843 = vpop.xlane.xlu0 %1842
    %v1844 = vrcp.pop %v1843
    %v1845 = vmul.f32 %v1840, %v1844
    %v1846 = vpack.c.bf16 %v1845, %v1845
    %1847 = vmatprep.subr.bf16.mxu0 0
    %1848 = vmatpush1.bf16.msra.mxu0 %v200
    %1849 = vmatprep.subr.bf16.mxu0 0
    %1850 = vmatpush1.bf16.msra.mxu0 %v201
    %1851 = vmatprep.subr.bf16.mxu0 0
    %1852 = vmatpush1.bf16.msra.mxu0 %v202
    %1853 = vmatprep.subr.bf16.mxu0 0
    %1854 = vmatpush1.bf16.msra.mxu0 %v203
    %1855 = vmatprep.subr.bf16.mxu0 0
    %1856 = vmatpush1.bf16.msra.mxu0 %v204
    %1857 = vmatprep.subr.bf16.mxu0 0
    %1858 = vmatpush1.bf16.msra.mxu0 %v205
    %1859 = vmatprep.subr.bf16.mxu0 0
    %1860 = vmatpush1.bf16.msra.mxu0 %v206
    %1861 = vmatprep.subr.bf16.mxu0 0
    %1862 = vmatpush1.bf16.msra.mxu0 %v207
    %1863 = vmatprep.subr.bf16.mxu0 0
    %1864 = vmatpush1.bf16.msra.mxu0 0
    %1865 = vmatprep.subr.bf16.mxu0 0
    %1866 = vmatpush1.bf16.msra.mxu0 0
    %1867 = vmatprep.subr.bf16.mxu0 0
    %1868 = vmatpush1.bf16.msra.mxu0 0
    %1869 = vmatprep.subr.bf16.mxu0 0
    %1870 = vmatpush1.bf16.msra.mxu0 0
    %1871 = vmatprep.subr.bf16.mxu0 0
    %1872 = vmatpush1.bf16.msra.mxu0 0
    %1873 = vmatprep.subr.bf16.mxu0 0
    %1874 = vmatpush1.bf16.msra.mxu0 0
    %1875 = vmatprep.subr.bf16.mxu0 0
    %1876 = vmatpush1.bf16.msra.mxu0 0
    %1877 = vmatprep.subr.bf16.mxu0 0
    %1878 = vmatpush1.bf16.msra.mxu0 0
    %1879 = vmatprep.mubr.bf16.mxu0 0
    %1880 = vmatmul.mubr.bf16.gmra.mrb[0].mxu0 %v1846
    %v1881 = vpop.f32.mrb[0].mxu0
    %v1882 = vadd.f32 0.0, %v1881
    %v1883 = vpop.f32.mrb[0].mxu0
    %v1884 = vpop.f32.mrb[0].mxu0
    %v1885 = vpop.f32.mrb[0].mxu0
    %1886 = vdwg.mxu0
    %v1887 = vld [vmem:[%s3 + $0x5] sm:$0x1]
    %v1888 = vpack.c.bf16 %v1882, %v1882
    %v1890 = vsel %vm109, %v1888, 0
    %1892 = vmatprep.subr.bf16.mxu0 0
    %1893 = vmatpush1.bf16.msra.mxu0 %v266
    %1894 = vmatprep.subr.bf16.mxu0 0
    %1895 = vmatpush1.bf16.msra.mxu0 %v267
    %1896 = vmatprep.subr.bf16.mxu0 0
    %1897 = vmatpush1.bf16.msra.mxu0 0
    %1898 = vmatprep.subr.bf16.mxu0 0
    %1899 = vmatpush1.bf16.msra.mxu0 0
    %1900 = vmatprep.subr.bf16.mxu0 0
    %1901 = vmatpush1.bf16.msra.mxu0 0
    %1902 = vmatprep.subr.bf16.mxu0 0
    %1903 = vmatpush1.bf16.msra.mxu0 0
    %1904 = vmatprep.subr.bf16.mxu0 0
    %1905 = vmatpush1.bf16.msra.mxu0 0
    %1906 = vmatprep.subr.bf16.mxu0 0
    %1907 = vmatpush1.bf16.msra.mxu0 0
    %1908 = vmatprep.subr.bf16.mxu0 0
    %1909 = vmatpush1.bf16.msra.mxu0 0
    %1910 = vmatprep.subr.bf16.mxu0 0
    %1911 = vmatpush1.bf16.msra.mxu0 0
    %1912 = vmatprep.subr.bf16.mxu0 0
    %1913 = vmatpush1.bf16.msra.mxu0 0
    %1914 = vmatprep.subr.bf16.mxu0 0
    %1915 = vmatpush1.bf16.msra.mxu0 0
    %1916 = vmatprep.subr.bf16.mxu0 0
    %1917 = vmatpush1.bf16.msra.mxu0 0
    %1918 = vmatprep.subr.bf16.mxu0 0
    %1919 = vmatpush1.bf16.msra.mxu0 0
    %1920 = vmatprep.subr.bf16.mxu0 0
    %1921 = vmatpush1.bf16.msra.mxu0 0
    %1922 = vmatprep.subr.bf16.mxu0 0
    %1923 = vmatpush1.bf16.msra.mxu0 0
    %1924 = vmatprep.mubr.bf16.mxu0 0
    %1925 = vmatmul.mubr.bf16.gmra.mrb[0].mxu0 %v1890
    %v1926 = vpop.f32.mrb[0].mxu0
    %v1927 = vadd.f32 0.0, %v1926
    %v1928 = vpop.f32.mrb[0].mxu0
    %v1929 = vpop.f32.mrb[0].mxu0
    %v1930 = vpop.f32.mrb[0].mxu0
    %1931 = vdwg.mxu0
    %v1932 = vadd.f32 %v1887, %v1927
    %v1933 = vadd.f32 %v1932, %v78
    %v1934 = vmax.f32 %v1933, 0.0
    %v1935 = vpack.c.bf16 %v1934, %v1934
    %v1937 = vsel %vm109, %v1935, 0
    %1939 = vmatprep.subr.bf16.mxu0 0
    %1940 = vmatpush1.bf16.msra.mxu0 %v325
    %1941 = vmatprep.subr.bf16.mxu0 0
    %1942 = vmatpush1.bf16.msra.mxu0 %v326
    %1943 = vmatprep.subr.bf16.mxu0 0
    %1944 = vmatpush1.bf16.msra.mxu0 0
    %1945 = vmatprep.subr.bf16.mxu0 0
    %1946 = vmatpush1.bf16.msra.mxu0 0
    %1947 = vmatprep.subr.bf16.mxu0 0
    %1948 = vmatpush1.bf16.msra.mxu0 0
    %1949 = vmatprep.subr.bf16.mxu0 0
    %1950 = vmatpush1.bf16.msra.mxu0 0
    %1951 = vmatprep.subr.bf16.mxu0 0
    %1952 = vmatpush1.bf16.msra.mxu0 0
    %1953 = vmatprep.subr.bf16.mxu0 0
    %1954 = vmatpush1.bf16.msra.mxu0 0
    %1955 = vmatprep.subr.bf16.mxu0 0
    %1956 = vmatpush1.bf16.msra.mxu0 0
    %1957 = vmatprep.subr.bf16.mxu0 0
    %1958 = vmatpush1.bf16.msra.mxu0 0
    %1959 = vmatprep.subr.bf16.mxu0 0
    %1960 = vmatpush1.bf16.msra.mxu0 0
    %1961 = vmatprep.subr.bf16.mxu0 0
    %1962 = vmatpush1.bf16.msra.mxu0 0
    %1963 = vmatprep.subr.bf16.mxu0 0
    %1964 = vmatpush1.bf16.msra.mxu0 0
    %1965 = vmatprep.subr.bf16.mxu0 0
    %1966 = vmatpush1.bf16.msra.mxu0 0
    %1967 = vmatprep.subr.bf16.mxu0 0
    %1968 = vmatpush1.bf16.msra.mxu0 0
    %1969 = vmatprep.subr.bf16.mxu0 0
    %1970 = vmatpush1.bf16.msra.mxu0 0
    %1971 = vmatprep.mubr.bf16.mxu0 0
    %1972 = vmatmul.mubr.bf16.gmra.mrb[0].mxu0 %v1937
    %v1973 = vpop.f32.mrb[0].mxu0
    %v1974 = vadd.f32 %v83, %v1973
    %v1975 = vpop.f32.mrb[0].mxu0
    %v1976 = vpop.f32.mrb[0].mxu0
    %v1977 = vpop.f32.mrb[0].mxu0
    %1978 = vdwg.mxu0
    %1979 = vmatprep.subr.bf16.mxu0 0
    %1980 = vmatpush1.bf16.msra.mxu0 %v380
    %1981 = vmatprep.subr.bf16.mxu0 0
    %1982 = vmatpush1.bf16.msra.mxu0 %v381
    %1983 = vmatprep.subr.bf16.mxu0 0
    %1984 = vmatpush1.bf16.msra.mxu0 0
    %1985 = vmatprep.subr.bf16.mxu0 0
    %1986 = vmatpush1.bf16.msra.mxu0 0
    %1987 = vmatprep.subr.bf16.mxu0 0
    %1988 = vmatpush1.bf16.msra.mxu0 0
    %1989 = vmatprep.subr.bf16.mxu0 0
    %1990 = vmatpush1.bf16.msra.mxu0 0
    %1991 = vmatprep.subr.bf16.mxu0 0
    %1992 = vmatpush1.bf16.msra.mxu0 0
    %1993 = vmatprep.subr.bf16.mxu0 0
    %1994 = vmatpush1.bf16.msra.mxu0 0
    %1995 = vmatprep.subr.bf16.mxu0 0
    %1996 = vmatpush1.bf16.msra.mxu0 0
    %1997 = vmatprep.subr.bf16.mxu0 0
    %1998 = vmatpush1.bf16.msra.mxu0 0
    %1999 = vmatprep.subr.bf16.mxu0 0
    %2000 = vmatpush1.bf16.msra.mxu0 0
    %2001 = vmatprep.subr.bf16.mxu0 0
    %2002 = vmatpush1.bf16.msra.mxu0 0
    %2003 = vmatprep.subr.bf16.mxu0 0
    %2004 = vmatpush1.bf16.msra.mxu0 0
    %2005 = vmatprep.subr.bf16.mxu0 0
    %2006 = vmatpush1.bf16.msra.mxu0 0
    %2007 = vmatprep.subr.bf16.mxu0 0
    %2008 = vmatpush1.bf16.msra.mxu0 0
    %2009 = vmatprep.subr.bf16.mxu0 0
    %2010 = vmatpush1.bf16.msra.mxu0 0
    %2011 = vmatprep.mubr.bf16.mxu0 0
    %2012 = vmatmul.mubr.bf16.gmra.mrb[0].mxu0 %v1735
    %v2013 = vpop.f32.mrb[0].mxu0
    %v2014 = vadd.f32 %v88, %v2013
    %v2015 = vpop.f32.mrb[0].mxu0
    %v2016 = vpop.f32.mrb[0].mxu0
    %v2017 = vpop.f32.mrb[0].mxu0
    %2018 = vdwg.mxu0
    %v2019 = vadd.f32 %v1974, %v2014
    %v2020 = vxor.u32 %v2019, 2147483648
    %v2021 = vmul.f32 %v2020, 1.442695
    %v2022 = vpow.pop %v2021
    %v2023 = vadd.f32 %v2022, 1.0
    %v2024 = vrcp.pop %v2023
    %v2025 = vmul.f32 1.0, %v2024
    %2027 = vrot.lane.b32.xlu0 %v2014, 64
    %v2028 = vpop.permute.xlu0 %2027
    %v2030 = vmul.f32 %v2025, %v2028
    %2032 = vrot.lane.b32.xlu0 %v2030, 64
    %v2033 = vpop.permute.xlu0 %2032
    %v2035 = vadd.f32 %v1974, %v2033
    %v2036 = vtanh.pop %v2035
    %v2037 = vsub.f32 1.0, %v2025
    %2039 = vrot.lane.b32.xlu0 %v2036, 96
    %v2040 = vpop.permute.xlu0 %2039
    %v2042 = vmul.f32 %v2037, %v2040
    %v2043 = vmul.f32 %v2025, %v1729
    %v2044 = vadd.f32 %v2042, %v2043
    %v2045 = vpack.c.bf16 %v2044, %v2044
    %2047 = vrot.lane.b32.xlu0 %v2045, 96
    %v2048 = vpop.permute.xlu0 %2047
    %v2050 = vsel %vm109, %v2048, 0
    %2052 = vmatprep.subr.bf16.mxu0 0
    %2053 = vmatpush1.bf16.msra.mxu0 %v470
    %2054 = vmatprep.subr.bf16.mxu0 0
    %2055 = vmatpush1.bf16.msra.mxu0 %v471
    %2056 = vmatprep.subr.bf16.mxu0 0
    %2057 = vmatpush1.bf16.msra.mxu0 0
    %2058 = vmatprep.subr.bf16.mxu0 0
    %2059 = vmatpush1.bf16.msra.mxu0 0
    %2060 = vmatprep.subr.bf16.mxu0 0
    %2061 = vmatpush1.bf16.msra.mxu0 0
    %2062 = vmatprep.subr.bf16.mxu0 0
    %2063 = vmatpush1.bf16.msra.mxu0 0
    %2064 = vmatprep.subr.bf16.mxu0 0
    %2065 = vmatpush1.bf16.msra.mxu0 0
    %2066 = vmatprep.subr.bf16.mxu0 0
    %2067 = vmatpush1.bf16.msra.mxu0 0
    %2068 = vmatprep.subr.bf16.mxu0 0
    %2069 = vmatpush1.bf16.msra.mxu0 0
    %2070 = vmatprep.subr.bf16.mxu0 0
    %2071 = vmatpush1.bf16.msra.mxu0 0
    %2072 = vmatprep.subr.bf16.mxu0 0
    %2073 = vmatpush1.bf16.msra.mxu0 0
    %2074 = vmatprep.subr.bf16.mxu0 0
    %2075 = vmatpush1.bf16.msra.mxu0 0
    %2076 = vmatprep.subr.bf16.mxu0 0
    %2077 = vmatpush1.bf16.msra.mxu0 0
    %2078 = vmatprep.subr.bf16.mxu0 0
    %2079 = vmatpush1.bf16.msra.mxu0 0
    %2080 = vmatprep.subr.bf16.mxu0 0
    %2081 = vmatpush1.bf16.msra.mxu0 0
    %2082 = vmatprep.subr.bf16.mxu0 0
    %2083 = vmatpush1.bf16.msra.mxu0 0
    %2084 = vmatprep.mubr.bf16.mxu0 0
    %2085 = vmatmul.mubr.bf16.gmra.mrb[0].mxu0 %v2050
    %v2086 = vpop.f32.mrb[0].mxu0
    %v2087 = vadd.f32 %v93, %v2086
    %v2088 = vpop.f32.mrb[0].mxu0
    %v2089 = vpop.f32.mrb[0].mxu0
    %v2090 = vpop.f32.mrb[0].mxu0
    %2091 = vdwg.mxu0
    %v2092 = vsel %vm155, %v2087, -inf
    %2093 = vmax.xlane.f32.xlu0 %v2092
    %v2094 = vpop.xlane.xlu0 %2093
    %v2095 = vsub.f32 %v2087, %v2094
    %v2096 = vmul.f32 %v2095, 1.442695
    %v2097 = vpow.pop %v2096
    %v2098 = vsel %vm155, %v2097, 0.0
    %2099 = vadd.xlane.f32.xlu0 %v2098
    %v2100 = vpop.xlane.xlu0 %2099
    %v2101 = vlog2.pop %v2100
    %v2102 = vmul.f32 %v2101, 0.6931472
    %v2103 = vadd.f32 %v2094, %v2102
    %v2104 = vsub.f32 %v2087, %v2103
    %2105 = vst [vmem:[#allocation2 + $0x5] sm:$0x1] %v2104
    %2106 = vst [vmem:[#allocation6 + $0x5] sm:$0x1] %v1845
    %2108 = vrot.lane.b32.xlu0 %v2044, 96
    %v2109 = vpop.permute.xlu0 %2108
    %vm2111 = vcmask 253952
    %2112 = vst.msk [vmem:[#allocation4] sm:$0x1] %vm2111, %v2109
    // Predicated region
    $region58: #{attn_decoder_decode.1} parent=1 // pred_check
      _
    $region59: #{attn_decoder_decode.1} parent=1 // pred_check_branch
      %2114 = sbr.rel (0) target = $region61
    $region60: #{attn_decoder_decode.1} parent=1 // pred_region
      %s2116 = ssub.s32 128, 128
      %2117 = vsyncadd [#allocation3], %s2116
      %s2119 = sshll.u32 [#allocation2], 4
      %s2120 = int_to_ptr.vmem [resolvable:$true] %s2119
      %2122 = dma.vmem_to_hbm [thread:$0]  %s2120, 128, %s14, [#allocation3]
    $region61: #{attn_decoder_decode.1} parent=1 // pred_fallthru
      _
    // Predicated region
    $region62: #{attn_decoder_decode.1} parent=1 // pred_check
      _
    $region63: #{attn_decoder_decode.1} parent=1 // pred_check_branch
      %2124 = sbr.rel (0) target = $region65
    $region64: #{attn_decoder_decode.1} parent=1 // pred_region
      %s2126 = ssub.s32 16, 16
      %2127 = vsyncadd [#allocation5], %s2126
      %s2129 = sshll.u32 [#allocation4], 4
      %s2130 = int_to_ptr.vmem [resolvable:$true] %s2129
      %2132 = dma.vmem_to_hbm [thread:$0]  %s2130, 16, %s15, [#allocation5]
    $region65: #{attn_decoder_decode.1} parent=1 // pred_fallthru
      _
    // Predicated region
    $region66: #{attn_decoder_decode.1} parent=1 // pred_check
      _
    $region67: #{attn_decoder_decode.1} parent=1 // pred_check_branch
      %2134 = sbr.rel (0) target = $region69
    $region68: #{attn_decoder_decode.1} parent=1 // pred_region
      %s2136 = ssub.s32 128, 128
      %2137 = vsyncadd [#allocation5], %s2136
      %s2139 = sshll.u32 [#allocation6], 4
      %s2140 = int_to_ptr.vmem [resolvable:$true] %s2139
      %2142 = dma.vmem_to_hbm [thread:$0]  %s2140, 128, %s16, [#allocation5]
    $region69: #{attn_decoder_decode.1} parent=1 // pred_fallthru
      _
    // Predicated region
    $region70: #{attn_decoder_decode.1} parent=1 // pred_check
      _
    $region71: #{attn_decoder_decode.1} parent=1 // pred_check_branch
      %2144 = sbr.rel (0) target = $region73
    $region72: #{attn_decoder_decode.1} parent=1 // pred_region
      %2145 = dma.done [#allocation3], 128
    $region73: #{attn_decoder_decode.1} parent=1 // pred_fallthru
      _
    // Predicated region
    $region74: #{attn_decoder_decode.1} parent=1 // pred_check
      _
    $region75: #{attn_decoder_decode.1} parent=1 // pred_check_branch
      %2147 = sbr.rel (0) target = $region77
    $region76: #{attn_decoder_decode.1} parent=1 // pred_region
      %2148 = dma.done [#allocation5], 16
    $region77: #{attn_decoder_decode.1} parent=1 // pred_fallthru
      _
    // Predicated region
    $region78: #{attn_decoder_decode.1} parent=1 // pred_check
      _
    $region79: #{attn_decoder_decode.1} parent=1 // pred_check_branch
      %2150 = sbr.rel (0) target = $region81
    $region80: #{attn_decoder_decode.1} parent=1 // pred_region
      %2151 = dma.done [#allocation5], 128
    $region81: #{attn_decoder_decode.1} parent=1 // pred_fallthru
      _
    %2152 = vsyncpa [#allocation3], 1
    %2153 = vsyncpa [#allocation5], 1

</llo_original>
